<compile_context>
chip_gen: v6e
topology: v6e:2x2x1
jax: 0.10.0
libtpu: 0.0.40
codegen_flags: <defaults>
</compile_context>

<pallas_src>
import math

import jax
import jax.numpy as jnp
from jax import lax
from jax.experimental import pallas as pl
from jax.experimental.pallas import tpu as pltpu

LANE = 128


def _round_up(c, m=LANE):
    return ((c + m - 1) // m) * m


# ----------------------------------------------------------------------------
# Fused kernel: all DWS blocks + final cls conv for one batch element.
# ----------------------------------------------------------------------------
def fused_cls_head_kernel(*refs):
    """refs = (x_ref, w_0..w_{L-1}, b_0..b_{L-1}, o_ref, xpad_ref)

    x_ref   : (1, H, W, Cin)      input block (true channel count)
    w_l     : (9, Cpi_l, Cpo_l)   per-tap folded weights (bf16):
                                  dw_tap * pw * BN_scale for DWS layers,
                                  plain 3x3 weights for the cls layer.
                                  Channel dims zero-padded to multiples of 128.
    b_l     : (1, Cpo_l)          f32 folded BN shift / cls bias (zero-padded)
    o_ref   : (1, H, W, Cpo_last) lane-padded output
    xpad_ref: (H+2, W+2, Cp_max)  VMEM scratch, halo-padded activation (bf16)
    """
    n_conv = (len(refs) - 3) // 2
    x_ref = refs[0]
    w_refs = refs[1:1 + n_conv]
    b_refs = refs[1 + n_conv:1 + 2 * n_conv]
    o_ref = refs[-2]
    xpad_ref = refs[-1]

    _, h, w, cin = x_ref.shape

    # Zero the halo-padded buffer (border == the conv's zero 'same' padding,
    # and the channel padding must be exact zeros), then place the input.
    xpad_ref[...] = jnp.zeros_like(xpad_ref)
    xpad_ref[1:h + 1, 1:w + 1, :cin] = x_ref[0].astype(xpad_ref.dtype)

    for l in range(n_conv):                      # static unroll over layers
        w_l = w_refs[l]
        ci, co = w_l.shape[1], w_l.shape[2]

        # 3x3 conv == 9 accumulating MXU matmuls over halo-shifted windows.
        acc = jnp.zeros((h * w, co), jnp.float32)
        for t in range(9):
            di, dj = t // 3, t % 3
            patch = xpad_ref[di:di + h, dj:dj + w, :ci].reshape(h * w, ci)
            acc = acc + jnp.dot(patch, w_l[t],
                                preferred_element_type=jnp.float32)

        acc = acc + b_refs[l][...]               # folded BN shift / cls bias

        if l < n_conv - 1:
            acc = acc * jax.nn.sigmoid(acc)      # Swish, f32 epilogue
            xpad_ref[1:h + 1, 1:w + 1, :co] = (
                acc.reshape(h, w, co).astype(xpad_ref.dtype))
        else:
            o_ref[...] = acc.reshape(1, h, w, co).astype(o_ref.dtype)


# ----------------------------------------------------------------------------
# Parameter folding / padding (one-time, outside the hot path)
# ----------------------------------------------------------------------------
def _pad_w(w9):
    _, cin, cout = w9.shape
    return jnp.pad(w9, ((0, 0), (0, _round_up(cin) - cin),
                        (0, _round_up(cout) - cout)))


def _pad_b(b):
    return jnp.pad(b, (0, _round_up(b.shape[0]) - b.shape[0])).reshape(1, -1)


def prepare_fused_params(params, compute_dtype=jnp.bfloat16, eps=1e-3):
    """Fold depthwise tap * pointwise * BN-scale into 9 per-tap matrices
    (exact in f32), fold BN shift into a bias, lane-pad channel dims."""
    ws, bs = [], []
    for dw_w, pw_w, gamma, beta, mean, var in params["blocks"]:
        cin, cout = pw_w.shape
        scale = gamma / jnp.sqrt(var + eps)                       # (Cout,)
        shift = beta - mean * scale                               # (Cout,)
        w9 = (dw_w[:, :, :, None] * pw_w[None, None, :, :]
              * scale[None, None, None, :]).reshape(9, cin, cout)
        ws.append(_pad_w(w9).astype(compute_dtype))
        bs.append(_pad_b(shift).astype(jnp.float32))
    cls_w = params["cls_w"]                                       # (3,3,Ci,AC)
    cin, cout = cls_w.shape[2], cls_w.shape[3]
    ws.append(_pad_w(cls_w.reshape(9, cin, cout)).astype(compute_dtype))
    bs.append(_pad_b(params["cls_b"]).astype(jnp.float32))
    return ws, bs


# ----------------------------------------------------------------------------
# Forward wrapper (single pallas_call, grid over batch)
# ----------------------------------------------------------------------------
def cls_head_forward(x_nhwc, params, num_anchors, num_cls,
                     compute_dtype=jnp.bfloat16):
    n, h, w, cin = x_nhwc.shape
    ws, bs = prepare_fused_params(params, compute_dtype)
    cp_out_last = ws[-1].shape[-1]
    cp_max = max(w_l.shape[1] for w_l in ws)     # widest activation we hold

    in_specs = [pl.BlockSpec((1, h, w, cin), lambda b: (b, 0, 0, 0))]
    in_specs += [pl.BlockSpec(w_l.shape, lambda b: (0, 0, 0)) for w_l in ws]
    in_specs += [pl.BlockSpec(b_l.shape, lambda b: (0, 0)) for b_l in bs]

    y = pl.pallas_call(
        fused_cls_head_kernel,
        out_shape=jax.ShapeDtypeStruct((n, h, w, cp_out_last), x_nhwc.dtype),
        grid=(n,),
        in_specs=in_specs,
        out_specs=pl.BlockSpec((1, h, w, cp_out_last), lambda b: (b, 0, 0, 0)),
        scratch_shapes=[pltpu.VMEM((h + 2, w + 2, cp_max), compute_dtype)],
        compiler_params=pltpu.CompilerParams(
            dimension_semantics=("parallel",)),
    )(x_nhwc, *ws, *bs)

    a_c = num_anchors * num_cls
    # NHWC already == PyTorch permute(0,2,3,1); drop lane padding, reshape.
    return y[..., :a_c].reshape(n, h * w * num_anchors, num_cls)


# ----------------------------------------------------------------------------
# Deterministic parameters (matches ClsHead.__init__ init scheme)
# ----------------------------------------------------------------------------
def make_params(key, in_channel, inner_channel, num_layers, num_anchors,
                num_cls, nontrivial_bn=False):
    blocks = []
    for i in range(num_layers):
        cin = in_channel if i == 0 else inner_channel
        cout = inner_channel
        key, k1, k2, k3, k4, k5, k6 = jax.random.split(key, 7)
        dw_w = 0.01 * jax.random.normal(k1, (3, 3, cin), jnp.float32)
        pw_w = 0.01 * jax.random.normal(k2, (cin, cout), jnp.float32)
        if nontrivial_bn:
            gamma = 1.0 + 0.2 * jax.random.normal(k3, (cout,), jnp.float32)
            beta = 0.2 * jax.random.normal(k4, (cout,), jnp.float32)
            mean = 0.2 * jax.random.normal(k5, (cout,), jnp.float32)
            var = jax.random.uniform(k6, (cout,), jnp.float32, 0.5, 1.5)
        else:  # PyTorch fresh-init BN (eval mode)
            gamma = jnp.ones((cout,), jnp.float32)
            beta = jnp.zeros((cout,), jnp.float32)
            mean = jnp.zeros((cout,), jnp.float32)
            var = jnp.ones((cout,), jnp.float32)
        blocks.append((dw_w, pw_w, gamma, beta, mean, var))
    key, k7 = jax.random.split(key)
    a_c = num_anchors * num_cls
    cls_w = 0.01 * jax.random.normal(k7, (3, 3, inner_channel, a_c), jnp.float32)
    cls_b = jnp.full((a_c,), -math.log((1.0 - 0.01) / 0.01), jnp.float32)
    return {"blocks": blocks, "cls_w": cls_w, "cls_b": cls_b}


# ----------------------------------------------------------------------------
# Pure-JAX reference (unfused lax convs, f32) for correctness check
# ----------------------------------------------------------------------------
def ref_forward(x_nhwc, params, num_anchors, num_cls, eps=1e-3):
    dn = ("NHWC", "HWIO", "NHWC")
    y = x_nhwc
    for dw_w, pw_w, gamma, beta, mean, var in params["blocks"]:
        cin = y.shape[-1]
        y = lax.conv_general_dilated(y, dw_w.reshape(3, 3, 1, cin), (1, 1),
                                     "SAME", dimension_numbers=dn,
                                     feature_group_count=cin)
        y = lax.conv_general_dilated(y, pw_w.reshape(1, 1, *pw_w.shape), (1, 1),
                                     "SAME", dimension_numbers=dn)
        y = (y - mean) / jnp.sqrt(var + eps) * gamma + beta
        y = y * jax.nn.sigmoid(y)
    y = lax.conv_general_dilated(y, params["cls_w"], (1, 1), "SAME",
                                 dimension_numbers=dn)
    y = y + params["cls_b"].reshape(1, 1, 1, -1)
    n, h, w, _ = y.shape
    return y.reshape(n, h * w * num_anchors, num_cls)


# ----------------------------------------------------------------------------
if __name__ == "__main__":
    # Small shapes consistent with ClsHead(in_channel, inner_channel, num_layers)
    batch, in_channel, inner_channel = 2, 16, 32
    num_layers, num_anchors, num_cls = 2, 9, 8
    H = W = 8

    key = jax.random.PRNGKey(0)
    key, kx = jax.random.split(key)
    # Input built NCHW (PyTorch convention), moved once to NHWC for the kernel.
    x_nchw = jax.random.normal(kx, (batch, in_channel, H, W), jnp.float32)
    x_nhwc = jnp.transpose(x_nchw, (0, 2, 3, 1))

    # Non-trivial BN statistics so the BN-fold path is actually exercised
    # (fresh-init BN is near-identity and would mask a fold/channel bug).
    params = make_params(key, in_channel, inner_channel, num_layers,
                         num_anchors, num_cls, nontrivial_bn=True)

    out = jax.block_until_ready(
        cls_head_forward(x_nhwc, params, num_anchors, num_cls))
    assert out.shape == (batch, H * W * num_anchors, num_cls), out.shape

    ref = jax.block_until_ready(
        ref_forward(x_nhwc, params, num_anchors, num_cls))
    err = float(jnp.max(jnp.abs(out - ref)))
    # bf16 MXU operands with f32 accumulation -> slightly looser than pure f32.
    assert jnp.allclose(out, ref, atol=2e-3, rtol=2e-3), err

    print("KERNEL_OK")
</pallas_src>

<mosaic_0001>
module attributes {stable_mosaic.version = 11 : i64} {
  func.func @fused_cls_head_kernel(%arg0: i32, %arg1: memref<1x8x8x16xf32, #tpu.memory_space<vmem>>, %arg2: memref<9x128x128xbf16, #tpu.memory_space<vmem>>, %arg3: memref<9x128x128xbf16, #tpu.memory_space<vmem>>, %arg4: memref<9x128x128xbf16, #tpu.memory_space<vmem>>, %arg5: memref<1x128xf32, #tpu.memory_space<vmem>>, %arg6: memref<1x128xf32, #tpu.memory_space<vmem>>, %arg7: memref<1x128xf32, #tpu.memory_space<vmem>>, %arg8: memref<1x8x8x128xf32, #tpu.memory_space<vmem>>, %arg9: memref<10x10x128xbf16, #tpu.memory_space<vmem>>) attributes {dimension_semantics = [#tpu.dimension_semantics<parallel>], iteration_bounds = array<i64: 2>, scalar_prefetch = 0 : i64, scratch_operands = 1 : i64, tpu.core_type = #tpu.core_type<tc>, window_params = [{transform_indices = @transform_0, window_bounds = array<i64: 1, 8, 8, 16>}, {pipeline_mode = #tpu.pipeline_mode<synchronous>, transform_indices = @transform_1, window_bounds = array<i64: 9, 128, 128>}, {pipeline_mode = #tpu.pipeline_mode<synchronous>, transform_indices = @transform_2, window_bounds = array<i64: 9, 128, 128>}, {pipeline_mode = #tpu.pipeline_mode<synchronous>, transform_indices = @transform_3, window_bounds = array<i64: 9, 128, 128>}, {pipeline_mode = #tpu.pipeline_mode<synchronous>, transform_indices = @transform_4, window_bounds = array<i64: 1, 128>}, {pipeline_mode = #tpu.pipeline_mode<synchronous>, transform_indices = @transform_5, window_bounds = array<i64: 1, 128>}, {pipeline_mode = #tpu.pipeline_mode<synchronous>, transform_indices = @transform_6, window_bounds = array<i64: 1, 128>}, {transform_indices = @transform_7, window_bounds = array<i64: 1, 8, 8, 128>}]} {
    %cst = arith.constant 0.000000e+00 : bf16
    %0 = vector.broadcast %cst : bf16 to vector<10x10x128xbf16>
    %c0 = arith.constant 0 : index
    %c0_0 = arith.constant 0 : index
    %c0_1 = arith.constant 0 : index
    %1 = vector.load %arg9[%c0, %c0_0, %c0_1] : memref<10x10x128xbf16, #tpu.memory_space<vmem>>, vector<10x10x128xbf16>
    tpu.vector_store %arg9[%c0, %c0_0, %c0_1], %0 {strides = array<i32>} : memref<10x10x128xbf16, #tpu.memory_space<vmem>>, vector<10x10x128xbf16>,
    %c0_2 = arith.constant 0 : index
    %c0_3 = arith.constant 0 : index
    %c0_4 = arith.constant 0 : index
    %c0_5 = arith.constant 0 : index
    %2 = vector.load %arg1[%c0_2, %c0_3, %c0_4, %c0_5] : memref<1x8x8x16xf32, #tpu.memory_space<vmem>>, vector<1x8x8x16xf32>
    %3 = vector.shape_cast %2 : vector<1x8x8x16xf32> to vector<8x8x16xf32>
    %4 = arith.truncf %3 : vector<8x8x16xf32> to vector<8x8x16xbf16>
    %c1 = arith.constant 1 : index
    %c1_6 = arith.constant 1 : index
    %c0_7 = arith.constant 0 : index
    %5 = vector.load %arg9[%c1, %c1_6, %c0_7] : memref<10x10x128xbf16, #tpu.memory_space<vmem>>, vector<8x8x16xbf16>
    tpu.vector_store %arg9[%c1, %c1_6, %c0_7], %4 {strides = array<i32>} : memref<10x10x128xbf16, #tpu.memory_space<vmem>>, vector<8x8x16xbf16>,
    %cst_8 = arith.constant 0.000000e+00 : f32
    %6 = vector.broadcast %cst_8 : f32 to vector<64x128xf32>
    %c0_9 = arith.constant 0 : index
    %c0_10 = arith.constant 0 : index
    %c0_11 = arith.constant 0 : index
    %7 = vector.load %arg9[%c0_9, %c0_10, %c0_11] : memref<10x10x128xbf16, #tpu.memory_space<vmem>>, vector<8x8x128xbf16>
    %8 = vector.shape_cast %7 : vector<8x8x128xbf16> to vector<64x128xbf16>
    %c0_12 = arith.constant 0 : index
    %c0_13 = arith.constant 0 : index
    %c0_14 = arith.constant 0 : index
    %9 = vector.load %arg2[%c0_12, %c0_13, %c0_14] : memref<9x128x128xbf16, #tpu.memory_space<vmem>>, vector<1x128x128xbf16>
    %10 = vector.shape_cast %9 : vector<1x128x128xbf16> to vector<128x128xbf16>
    %cst_15 = arith.constant dense<0.000000e+00> : vector<64x128xf32>
    %11 = tpu.matmul %8, %10, %cst_15 {dimension_numbers = #tpu.dot_dimension_numbers<[1], [0], [0], [1], [0, 0, 1, 1], [], []>} : vector<64x128xbf16>, vector<128x128xbf16>, vector<64x128xf32> -> vector<64x128xf32>
    %12 = arith.addf %6, %11 : vector<64x128xf32>
    %c0_16 = arith.constant 0 : index
    %c1_17 = arith.constant 1 : index
    %c0_18 = arith.constant 0 : index
    %13 = vector.load %arg9[%c0_16, %c1_17, %c0_18] : memref<10x10x128xbf16, #tpu.memory_space<vmem>>, vector<8x8x128xbf16>
    %14 = vector.shape_cast %13 : vector<8x8x128xbf16> to vector<64x128xbf16>
    %c1_19 = arith.constant 1 : index
    %c0_20 = arith.constant 0 : index
    %c0_21 = arith.constant 0 : index
    %15 = vector.load %arg2[%c1_19, %c0_20, %c0_21] : memref<9x128x128xbf16, #tpu.memory_space<vmem>>, vector<1x128x128xbf16>
    %16 = vector.shape_cast %15 : vector<1x128x128xbf16> to vector<128x128xbf16>
    %cst_22 = arith.constant dense<0.000000e+00> : vector<64x128xf32>
    %17 = tpu.matmul %14, %16, %cst_22 {dimension_numbers = #tpu.dot_dimension_numbers<[1], [0], [0], [1], [0, 0, 1, 1], [], []>} : vector<64x128xbf16>, vector<128x128xbf16>, vector<64x128xf32> -> vector<64x128xf32>
    %18 = arith.addf %12, %17 : vector<64x128xf32>
    %c0_23 = arith.constant 0 : index
    %c2 = arith.constant 2 : index
    %c0_24 = arith.constant 0 : index
    %19 = vector.load %arg9[%c0_23, %c2, %c0_24] : memref<10x10x128xbf16, #tpu.memory_space<vmem>>, vector<8x8x128xbf16>
    %20 = vector.shape_cast %19 : vector<8x8x128xbf16> to vector<64x128xbf16>
    %c2_25 = arith.constant 2 : index
    %c0_26 = arith.constant 0 : index
    %c0_27 = arith.constant 0 : index
    %21 = vector.load %arg2[%c2_25, %c0_26, %c0_27] : memref<9x128x128xbf16, #tpu.memory_space<vmem>>, vector<1x128x128xbf16>
    %22 = vector.shape_cast %21 : vector<1x128x128xbf16> to vector<128x128xbf16>
    %cst_28 = arith.constant dense<0.000000e+00> : vector<64x128xf32>
    %23 = tpu.matmul %20, %22, %cst_28 {dimension_numbers = #tpu.dot_dimension_numbers<[1], [0], [0], [1], [0, 0, 1, 1], [], []>} : vector<64x128xbf16>, vector<128x128xbf16>, vector<64x128xf32> -> vector<64x128xf32>
    %24 = arith.addf %18, %23 : vector<64x128xf32>
    %c1_29 = arith.constant 1 : index
    %c0_30 = arith.constant 0 : index
    %c0_31 = arith.constant 0 : index
    %25 = vector.load %arg9[%c1_29, %c0_30, %c0_31] : memref<10x10x128xbf16, #tpu.memory_space<vmem>>, vector<8x8x128xbf16>
    %26 = vector.shape_cast %25 : vector<8x8x128xbf16> to vector<64x128xbf16>
    %c3 = arith.constant 3 : index
    %c0_32 = arith.constant 0 : index
    %c0_33 = arith.constant 0 : index
    %27 = vector.load %arg2[%c3, %c0_32, %c0_33] : memref<9x128x128xbf16, #tpu.memory_space<vmem>>, vector<1x128x128xbf16>
    %28 = vector.shape_cast %27 : vector<1x128x128xbf16> to vector<128x128xbf16>
    %cst_34 = arith.constant dense<0.000000e+00> : vector<64x128xf32>
    %29 = tpu.matmul %26, %28, %cst_34 {dimension_numbers = #tpu.dot_dimension_numbers<[1], [0], [0], [1], [0, 0, 1, 1], [], []>} : vector<64x128xbf16>, vector<128x128xbf16>, vector<64x128xf32> -> vector<64x128xf32>
    %30 = arith.addf %24, %29 : vector<64x128xf32>
    %c1_35 = arith.constant 1 : index
    %c1_36 = arith.constant 1 : index
    %c0_37 = arith.constant 0 : index
    %31 = vector.load %arg9[%c1_35, %c1_36, %c0_37] : memref<10x10x128xbf16, #tpu.memory_space<vmem>>, vector<8x8x128xbf16>
    %32 = vector.shape_cast %31 : vector<8x8x128xbf16> to vector<64x128xbf16>
    %c4 = arith.constant 4 : index
    %c0_38 = arith.constant 0 : index
    %c0_39 = arith.constant 0 : index
    %33 = vector.load %arg2[%c4, %c0_38, %c0_39] : memref<9x128x128xbf16, #tpu.memory_space<vmem>>, vector<1x128x128xbf16>
    %34 = vector.shape_cast %33 : vector<1x128x128xbf16> to vector<128x128xbf16>
    %cst_40 = arith.constant dense<0.000000e+00> : vector<64x128xf32>
    %35 = tpu.matmul %32, %34, %cst_40 {dimension_numbers = #tpu.dot_dimension_numbers<[1], [0], [0], [1], [0, 0, 1, 1], [], []>} : vector<64x128xbf16>, vector<128x128xbf16>, vector<64x128xf32> -> vector<64x128xf32>
    %36 = arith.addf %30, %35 : vector<64x128xf32>
    %c1_41 = arith.constant 1 : index
    %c2_42 = arith.constant 2 : index
    %c0_43 = arith.constant 0 : index
    %37 = vector.load %arg9[%c1_41, %c2_42, %c0_43] : memref<10x10x128xbf16, #tpu.memory_space<vmem>>, vector<8x8x128xbf16>
    %38 = vector.shape_cast %37 : vector<8x8x128xbf16> to vector<64x128xbf16>
    %c5 = arith.constant 5 : index
    %c0_44 = arith.constant 0 : index
    %c0_45 = arith.constant 0 : index
    %39 = vector.load %arg2[%c5, %c0_44, %c0_45] : memref<9x128x128xbf16, #tpu.memory_space<vmem>>, vector<1x128x128xbf16>
    %40 = vector.shape_cast %39 : vector<1x128x128xbf16> to vector<128x128xbf16>
    %cst_46 = arith.constant dense<0.000000e+00> : vector<64x128xf32>
    %41 = tpu.matmul %38, %40, %cst_46 {dimension_numbers = #tpu.dot_dimension_numbers<[1], [0], [0], [1], [0, 0, 1, 1], [], []>} : vector<64x128xbf16>, vector<128x128xbf16>, vector<64x128xf32> -> vector<64x128xf32>
    %42 = arith.addf %36, %41 : vector<64x128xf32>
    %c2_47 = arith.constant 2 : index
    %c0_48 = arith.constant 0 : index
    %c0_49 = arith.constant 0 : index
    %43 = vector.load %arg9[%c2_47, %c0_48, %c0_49] : memref<10x10x128xbf16, #tpu.memory_space<vmem>>, vector<8x8x128xbf16>
    %44 = vector.shape_cast %43 : vector<8x8x128xbf16> to vector<64x128xbf16>
    %c6 = arith.constant 6 : index
    %c0_50 = arith.constant 0 : index
    %c0_51 = arith.constant 0 : index
    %45 = vector.load %arg2[%c6, %c0_50, %c0_51] : memref<9x128x128xbf16, #tpu.memory_space<vmem>>, vector<1x128x128xbf16>
    %46 = vector.shape_cast %45 : vector<1x128x128xbf16> to vector<128x128xbf16>
    %cst_52 = arith.constant dense<0.000000e+00> : vector<64x128xf32>
    %47 = tpu.matmul %44, %46, %cst_52 {dimension_numbers = #tpu.dot_dimension_numbers<[1], [0], [0], [1], [0, 0, 1, 1], [], []>} : vector<64x128xbf16>, vector<128x128xbf16>, vector<64x128xf32> -> vector<64x128xf32>
    %48 = arith.addf %42, %47 : vector<64x128xf32>
    %c2_53 = arith.constant 2 : index
    %c1_54 = arith.constant 1 : index
    %c0_55 = arith.constant 0 : index
    %49 = vector.load %arg9[%c2_53, %c1_54, %c0_55] : memref<10x10x128xbf16, #tpu.memory_space<vmem>>, vector<8x8x128xbf16>
    %50 = vector.shape_cast %49 : vector<8x8x128xbf16> to vector<64x128xbf16>
    %c7 = arith.constant 7 : index
    %c0_56 = arith.constant 0 : index
    %c0_57 = arith.constant 0 : index
    %51 = vector.load %arg2[%c7, %c0_56, %c0_57] : memref<9x128x128xbf16, #tpu.memory_space<vmem>>, vector<1x128x128xbf16>
    %52 = vector.shape_cast %51 : vector<1x128x128xbf16> to vector<128x128xbf16>
    %cst_58 = arith.constant dense<0.000000e+00> : vector<64x128xf32>
    %53 = tpu.matmul %50, %52, %cst_58 {dimension_numbers = #tpu.dot_dimension_numbers<[1], [0], [0], [1], [0, 0, 1, 1], [], []>} : vector<64x128xbf16>, vector<128x128xbf16>, vector<64x128xf32> -> vector<64x128xf32>
    %54 = arith.addf %48, %53 : vector<64x128xf32>
    %c2_59 = arith.constant 2 : index
    %c2_60 = arith.constant 2 : index
    %c0_61 = arith.constant 0 : index
    %55 = vector.load %arg9[%c2_59, %c2_60, %c0_61] : memref<10x10x128xbf16, #tpu.memory_space<vmem>>, vector<8x8x128xbf16>
    %56 = vector.shape_cast %55 : vector<8x8x128xbf16> to vector<64x128xbf16>
    %c8 = arith.constant 8 : index
    %c0_62 = arith.constant 0 : index
    %c0_63 = arith.constant 0 : index
    %57 = vector.load %arg2[%c8, %c0_62, %c0_63] : memref<9x128x128xbf16, #tpu.memory_space<vmem>>, vector<1x128x128xbf16>
    %58 = vector.shape_cast %57 : vector<1x128x128xbf16> to vector<128x128xbf16>
    %cst_64 = arith.constant dense<0.000000e+00> : vector<64x128xf32>
    %59 = tpu.matmul %56, %58, %cst_64 {dimension_numbers = #tpu.dot_dimension_numbers<[1], [0], [0], [1], [0, 0, 1, 1], [], []>} : vector<64x128xbf16>, vector<128x128xbf16>, vector<64x128xf32> -> vector<64x128xf32>
    %60 = arith.addf %54, %59 : vector<64x128xf32>
    %c0_65 = arith.constant 0 : index
    %c0_66 = arith.constant 0 : index
    %61 = vector.load %arg5[%c0_65, %c0_66] : memref<1x128xf32, #tpu.memory_space<vmem>>, vector<1x128xf32>
    %62 = vector.broadcast %61 : vector<1x128xf32> to vector<64x128xf32>
    %63 = arith.addf %60, %62 : vector<64x128xf32>
    %64 = arith.negf %63 : vector<64x128xf32>
    %65 = math.exp %64 : vector<64x128xf32>
    %cst_67 = arith.constant 1.000000e+00 : f32
    %66 = vector.broadcast %cst_67 : f32 to vector<64x128xf32>
    %67 = arith.addf %66, %65 : vector<64x128xf32>
    %68 = arith.divf %66, %67 : vector<64x128xf32>
    %69 = arith.mulf %63, %68 : vector<64x128xf32>
    %70 = vector.shape_cast %69 : vector<64x128xf32> to vector<8x8x128xf32>
    %71 = arith.truncf %70 : vector<8x8x128xf32> to vector<8x8x128xbf16>
    %c1_68 = arith.constant 1 : index
    %c1_69 = arith.constant 1 : index
    %c0_70 = arith.constant 0 : index
    %72 = vector.load %arg9[%c1_68, %c1_69, %c0_70] : memref<10x10x128xbf16, #tpu.memory_space<vmem>>, vector<8x8x128xbf16>
    tpu.vector_store %arg9[%c1_68, %c1_69, %c0_70], %71 {strides = array<i32>} : memref<10x10x128xbf16, #tpu.memory_space<vmem>>, vector<8x8x128xbf16>,
    %cst_71 = arith.constant 0.000000e+00 : f32
    %73 = vector.broadcast %cst_71 : f32 to vector<64x128xf32>
    %c0_72 = arith.constant 0 : index
    %c0_73 = arith.constant 0 : index
    %c0_74 = arith.constant 0 : index
    %74 = vector.load %arg9[%c0_72, %c0_73, %c0_74] : memref<10x10x128xbf16, #tpu.memory_space<vmem>>, vector<8x8x128xbf16>
    %75 = vector.shape_cast %74 : vector<8x8x128xbf16> to vector<64x128xbf16>
    %c0_75 = arith.constant 0 : index
    %c0_76 = arith.constant 0 : index
    %c0_77 = arith.constant 0 : index
    %76 = vector.load %arg3[%c0_75, %c0_76, %c0_77] : memref<9x128x128xbf16, #tpu.memory_space<vmem>>, vector<1x128x128xbf16>
    %77 = vector.shape_cast %76 : vector<1x128x128xbf16> to vector<128x128xbf16>
    %cst_78 = arith.constant dense<0.000000e+00> : vector<64x128xf32>
    %78 = tpu.matmul %75, %77, %cst_78 {dimension_numbers = #tpu.dot_dimension_numbers<[1], [0], [0], [1], [0, 0, 1, 1], [], []>} : vector<64x128xbf16>, vector<128x128xbf16>, vector<64x128xf32> -> vector<64x128xf32>
    %79 = arith.addf %73, %78 : vector<64x128xf32>
    %c0_79 = arith.constant 0 : index
    %c1_80 = arith.constant 1 : index
    %c0_81 = arith.constant 0 : index
    %80 = vector.load %arg9[%c0_79, %c1_80, %c0_81] : memref<10x10x128xbf16, #tpu.memory_space<vmem>>, vector<8x8x128xbf16>
    %81 = vector.shape_cast %80 : vector<8x8x128xbf16> to vector<64x128xbf16>
    %c1_82 = arith.constant 1 : index
    %c0_83 = arith.constant 0 : index
    %c0_84 = arith.constant 0 : index
    %82 = vector.load %arg3[%c1_82, %c0_83, %c0_84] : memref<9x128x128xbf16, #tpu.memory_space<vmem>>, vector<1x128x128xbf16>
    %83 = vector.shape_cast %82 : vector<1x128x128xbf16> to vector<128x128xbf16>
    %cst_85 = arith.constant dense<0.000000e+00> : vector<64x128xf32>
    %84 = tpu.matmul %81, %83, %cst_85 {dimension_numbers = #tpu.dot_dimension_numbers<[1], [0], [0], [1], [0, 0, 1, 1], [], []>} : vector<64x128xbf16>, vector<128x128xbf16>, vector<64x128xf32> -> vector<64x128xf32>
    %85 = arith.addf %79, %84 : vector<64x128xf32>
    %c0_86 = arith.constant 0 : index
    %c2_87 = arith.constant 2 : index
    %c0_88 = arith.constant 0 : index
    %86 = vector.load %arg9[%c0_86, %c2_87, %c0_88] : memref<10x10x128xbf16, #tpu.memory_space<vmem>>, vector<8x8x128xbf16>
    %87 = vector.shape_cast %86 : vector<8x8x128xbf16> to vector<64x128xbf16>
    %c2_89 = arith.constant 2 : index
    %c0_90 = arith.constant 0 : index
    %c0_91 = arith.constant 0 : index
    %88 = vector.load %arg3[%c2_89, %c0_90, %c0_91] : memref<9x128x128xbf16, #tpu.memory_space<vmem>>, vector<1x128x128xbf16>
    %89 = vector.shape_cast %88 : vector<1x128x128xbf16> to vector<128x128xbf16>
    %cst_92 = arith.constant dense<0.000000e+00> : vector<64x128xf32>
    %90 = tpu.matmul %87, %89, %cst_92 {dimension_numbers = #tpu.dot_dimension_numbers<[1], [0], [0], [1], [0, 0, 1, 1], [], []>} : vector<64x128xbf16>, vector<128x128xbf16>, vector<64x128xf32> -> vector<64x128xf32>
    %91 = arith.addf %85, %90 : vector<64x128xf32>
    %c1_93 = arith.constant 1 : index
    %c0_94 = arith.constant 0 : index
    %c0_95 = arith.constant 0 : index
    %92 = vector.load %arg9[%c1_93, %c0_94, %c0_95] : memref<10x10x128xbf16, #tpu.memory_space<vmem>>, vector<8x8x128xbf16>
    %93 = vector.shape_cast %92 : vector<8x8x128xbf16> to vector<64x128xbf16>
    %c3_96 = arith.constant 3 : index
    %c0_97 = arith.constant 0 : index
    %c0_98 = arith.constant 0 : index
    %94 = vector.load %arg3[%c3_96, %c0_97, %c0_98] : memref<9x128x128xbf16, #tpu.memory_space<vmem>>, vector<1x128x128xbf16>
    %95 = vector.shape_cast %94 : vector<1x128x128xbf16> to vector<128x128xbf16>
    %cst_99 = arith.constant dense<0.000000e+00> : vector<64x128xf32>
    %96 = tpu.matmul %93, %95, %cst_99 {dimension_numbers = #tpu.dot_dimension_numbers<[1], [0], [0], [1], [0, 0, 1, 1], [], []>} : vector<64x128xbf16>, vector<128x128xbf16>, vector<64x128xf32> -> vector<64x128xf32>
    %97 = arith.addf %91, %96 : vector<64x128xf32>
    %c1_100 = arith.constant 1 : index
    %c1_101 = arith.constant 1 : index
    %c0_102 = arith.constant 0 : index
    %98 = vector.load %arg9[%c1_100, %c1_101, %c0_102] : memref<10x10x128xbf16, #tpu.memory_space<vmem>>, vector<8x8x128xbf16>
    %99 = vector.shape_cast %98 : vector<8x8x128xbf16> to vector<64x128xbf16>
    %c4_103 = arith.constant 4 : index
    %c0_104 = arith.constant 0 : index
    %c0_105 = arith.constant 0 : index
    %100 = vector.load %arg3[%c4_103, %c0_104, %c0_105] : memref<9x128x128xbf16, #tpu.memory_space<vmem>>, vector<1x128x128xbf16>
    %101 = vector.shape_cast %100 : vector<1x128x128xbf16> to vector<128x128xbf16>
    %cst_106 = arith.constant dense<0.000000e+00> : vector<64x128xf32>
    %102 = tpu.matmul %99, %101, %cst_106 {dimension_numbers = #tpu.dot_dimension_numbers<[1], [0], [0], [1], [0, 0, 1, 1], [], []>} : vector<64x128xbf16>, vector<128x128xbf16>, vector<64x128xf32> -> vector<64x128xf32>
    %103 = arith.addf %97, %102 : vector<64x128xf32>
    %c1_107 = arith.constant 1 : index
    %c2_108 = arith.constant 2 : index
    %c0_109 = arith.constant 0 : index
    %104 = vector.load %arg9[%c1_107, %c2_108, %c0_109] : memref<10x10x128xbf16, #tpu.memory_space<vmem>>, vector<8x8x128xbf16>
    %105 = vector.shape_cast %104 : vector<8x8x128xbf16> to vector<64x128xbf16>
    %c5_110 = arith.constant 5 : index
    %c0_111 = arith.constant 0 : index
    %c0_112 = arith.constant 0 : index
    %106 = vector.load %arg3[%c5_110, %c0_111, %c0_112] : memref<9x128x128xbf16, #tpu.memory_space<vmem>>, vector<1x128x128xbf16>
    %107 = vector.shape_cast %106 : vector<1x128x128xbf16> to vector<128x128xbf16>
    %cst_113 = arith.constant dense<0.000000e+00> : vector<64x128xf32>
    %108 = tpu.matmul %105, %107, %cst_113 {dimension_numbers = #tpu.dot_dimension_numbers<[1], [0], [0], [1], [0, 0, 1, 1], [], []>} : vector<64x128xbf16>, vector<128x128xbf16>, vector<64x128xf32> -> vector<64x128xf32>
    %109 = arith.addf %103, %108 : vector<64x128xf32>
    %c2_114 = arith.constant 2 : index
    %c0_115 = arith.constant 0 : index
    %c0_116 = arith.constant 0 : index
    %110 = vector.load %arg9[%c2_114, %c0_115, %c0_116] : memref<10x10x128xbf16, #tpu.memory_space<vmem>>, vector<8x8x128xbf16>
    %111 = vector.shape_cast %110 : vector<8x8x128xbf16> to vector<64x128xbf16>
    %c6_117 = arith.constant 6 : index
    %c0_118 = arith.constant 0 : index
    %c0_119 = arith.constant 0 : index
    %112 = vector.load %arg3[%c6_117, %c0_118, %c0_119] : memref<9x128x128xbf16, #tpu.memory_space<vmem>>, vector<1x128x128xbf16>
    %113 = vector.shape_cast %112 : vector<1x128x128xbf16> to vector<128x128xbf16>
    %cst_120 = arith.constant dense<0.000000e+00> : vector<64x128xf32>
    %114 = tpu.matmul %111, %113, %cst_120 {dimension_numbers = #tpu.dot_dimension_numbers<[1], [0], [0], [1], [0, 0, 1, 1], [], []>} : vector<64x128xbf16>, vector<128x128xbf16>, vector<64x128xf32> -> vector<64x128xf32>
    %115 = arith.addf %109, %114 : vector<64x128xf32>
    %c2_121 = arith.constant 2 : index
    %c1_122 = arith.constant 1 : index
    %c0_123 = arith.constant 0 : index
    %116 = vector.load %arg9[%c2_121, %c1_122, %c0_123] : memref<10x10x128xbf16, #tpu.memory_space<vmem>>, vector<8x8x128xbf16>
    %117 = vector.shape_cast %116 : vector<8x8x128xbf16> to vector<64x128xbf16>
    %c7_124 = arith.constant 7 : index
    %c0_125 = arith.constant 0 : index
    %c0_126 = arith.constant 0 : index
    %118 = vector.load %arg3[%c7_124, %c0_125, %c0_126] : memref<9x128x128xbf16, #tpu.memory_space<vmem>>, vector<1x128x128xbf16>
    %119 = vector.shape_cast %118 : vector<1x128x128xbf16> to vector<128x128xbf16>
    %cst_127 = arith.constant dense<0.000000e+00> : vector<64x128xf32>
    %120 = tpu.matmul %117, %119, %cst_127 {dimension_numbers = #tpu.dot_dimension_numbers<[1], [0], [0], [1], [0, 0, 1, 1], [], []>} : vector<64x128xbf16>, vector<128x128xbf16>, vector<64x128xf32> -> vector<64x128xf32>
    %121 = arith.addf %115, %120 : vector<64x128xf32>
    %c2_128 = arith.constant 2 : index
    %c2_129 = arith.constant 2 : index
    %c0_130 = arith.constant 0 : index
    %122 = vector.load %arg9[%c2_128, %c2_129, %c0_130] : memref<10x10x128xbf16, #tpu.memory_space<vmem>>, vector<8x8x128xbf16>
    %123 = vector.shape_cast %122 : vector<8x8x128xbf16> to vector<64x128xbf16>
    %c8_131 = arith.constant 8 : index
    %c0_132 = arith.constant 0 : index
    %c0_133 = arith.constant 0 : index
    %124 = vector.load %arg3[%c8_131, %c0_132, %c0_133] : memref<9x128x128xbf16, #tpu.memory_space<vmem>>, vector<1x128x128xbf16>
    %125 = vector.shape_cast %124 : vector<1x128x128xbf16> to vector<128x128xbf16>
    %cst_134 = arith.constant dense<0.000000e+00> : vector<64x128xf32>
    %126 = tpu.matmul %123, %125, %cst_134 {dimension_numbers = #tpu.dot_dimension_numbers<[1], [0], [0], [1], [0, 0, 1, 1], [], []>} : vector<64x128xbf16>, vector<128x128xbf16>, vector<64x128xf32> -> vector<64x128xf32>
    %127 = arith.addf %121, %126 : vector<64x128xf32>
    %c0_135 = arith.constant 0 : index
    %c0_136 = arith.constant 0 : index
    %128 = vector.load %arg6[%c0_135, %c0_136] : memref<1x128xf32, #tpu.memory_space<vmem>>, vector<1x128xf32>
    %129 = vector.broadcast %128 : vector<1x128xf32> to vector<64x128xf32>
    %130 = arith.addf %127, %129 : vector<64x128xf32>
    %131 = arith.negf %130 : vector<64x128xf32>
    %132 = math.exp %131 : vector<64x128xf32>
    %cst_137 = arith.constant 1.000000e+00 : f32
    %133 = vector.broadcast %cst_137 : f32 to vector<64x128xf32>
    %134 = arith.addf %133, %132 : vector<64x128xf32>
    %135 = arith.divf %133, %134 : vector<64x128xf32>
    %136 = arith.mulf %130, %135 : vector<64x128xf32>
    %137 = vector.shape_cast %136 : vector<64x128xf32> to vector<8x8x128xf32>
    %138 = arith.truncf %137 : vector<8x8x128xf32> to vector<8x8x128xbf16>
    %c1_138 = arith.constant 1 : index
    %c1_139 = arith.constant 1 : index
    %c0_140 = arith.constant 0 : index
    %139 = vector.load %arg9[%c1_138, %c1_139, %c0_140] : memref<10x10x128xbf16, #tpu.memory_space<vmem>>, vector<8x8x128xbf16>
    tpu.vector_store %arg9[%c1_138, %c1_139, %c0_140], %138 {strides = array<i32>} : memref<10x10x128xbf16, #tpu.memory_space<vmem>>, vector<8x8x128xbf16>,
    %cst_141 = arith.constant 0.000000e+00 : f32
    %140 = vector.broadcast %cst_141 : f32 to vector<64x128xf32>
    %c0_142 = arith.constant 0 : index
    %c0_143 = arith.constant 0 : index
    %c0_144 = arith.constant 0 : index
    %141 = vector.load %arg9[%c0_142, %c0_143, %c0_144] : memref<10x10x128xbf16, #tpu.memory_space<vmem>>, vector<8x8x128xbf16>
    %142 = vector.shape_cast %141 : vector<8x8x128xbf16> to vector<64x128xbf16>
    %c0_145 = arith.constant 0 : index
    %c0_146 = arith.constant 0 : index
    %c0_147 = arith.constant 0 : index
    %143 = vector.load %arg4[%c0_145, %c0_146, %c0_147] : memref<9x128x128xbf16, #tpu.memory_space<vmem>>, vector<1x128x128xbf16>
    %144 = vector.shape_cast %143 : vector<1x128x128xbf16> to vector<128x128xbf16>
    %cst_148 = arith.constant dense<0.000000e+00> : vector<64x128xf32>
    %145 = tpu.matmul %142, %144, %cst_148 {dimension_numbers = #tpu.dot_dimension_numbers<[1], [0], [0], [1], [0, 0, 1, 1], [], []>} : vector<64x128xbf16>, vector<128x128xbf16>, vector<64x128xf32> -> vector<64x128xf32>
    %146 = arith.addf %140, %145 : vector<64x128xf32>
    %c0_149 = arith.constant 0 : index
    %c1_150 = arith.constant 1 : index
    %c0_151 = arith.constant 0 : index
    %147 = vector.load %arg9[%c0_149, %c1_150, %c0_151] : memref<10x10x128xbf16, #tpu.memory_space<vmem>>, vector<8x8x128xbf16>
    %148 = vector.shape_cast %147 : vector<8x8x128xbf16> to vector<64x128xbf16>
    %c1_152 = arith.constant 1 : index
    %c0_153 = arith.constant 0 : index
    %c0_154 = arith.constant 0 : index
    %149 = vector.load %arg4[%c1_152, %c0_153, %c0_154] : memref<9x128x128xbf16, #tpu.memory_space<vmem>>, vector<1x128x128xbf16>
    %150 = vector.shape_cast %149 : vector<1x128x128xbf16> to vector<128x128xbf16>
    %cst_155 = arith.constant dense<0.000000e+00> : vector<64x128xf32>
    %151 = tpu.matmul %148, %150, %cst_155 {dimension_numbers = #tpu.dot_dimension_numbers<[1], [0], [0], [1], [0, 0, 1, 1], [], []>} : vector<64x128xbf16>, vector<128x128xbf16>, vector<64x128xf32> -> vector<64x128xf32>
    %152 = arith.addf %146, %151 : vector<64x128xf32>
    %c0_156 = arith.constant 0 : index
    %c2_157 = arith.constant 2 : index
    %c0_158 = arith.constant 0 : index
    %153 = vector.load %arg9[%c0_156, %c2_157, %c0_158] : memref<10x10x128xbf16, #tpu.memory_space<vmem>>, vector<8x8x128xbf16>
    %154 = vector.shape_cast %153 : vector<8x8x128xbf16> to vector<64x128xbf16>
    %c2_159 = arith.constant 2 : index
    %c0_160 = arith.constant 0 : index
    %c0_161 = arith.constant 0 : index
    %155 = vector.load %arg4[%c2_159, %c0_160, %c0_161] : memref<9x128x128xbf16, #tpu.memory_space<vmem>>, vector<1x128x128xbf16>
    %156 = vector.shape_cast %155 : vector<1x128x128xbf16> to vector<128x128xbf16>
    %cst_162 = arith.constant dense<0.000000e+00> : vector<64x128xf32>
    %157 = tpu.matmul %154, %156, %cst_162 {dimension_numbers = #tpu.dot_dimension_numbers<[1], [0], [0], [1], [0, 0, 1, 1], [], []>} : vector<64x128xbf16>, vector<128x128xbf16>, vector<64x128xf32> -> vector<64x128xf32>
    %158 = arith.addf %152, %157 : vector<64x128xf32>
    %c1_163 = arith.constant 1 : index
    %c0_164 = arith.constant 0 : index
    %c0_165 = arith.constant 0 : index
    %159 = vector.load %arg9[%c1_163, %c0_164, %c0_165] : memref<10x10x128xbf16, #tpu.memory_space<vmem>>, vector<8x8x128xbf16>
    %160 = vector.shape_cast %159 : vector<8x8x128xbf16> to vector<64x128xbf16>
    %c3_166 = arith.constant 3 : index
    %c0_167 = arith.constant 0 : index
    %c0_168 = arith.constant 0 : index
    %161 = vector.load %arg4[%c3_166, %c0_167, %c0_168] : memref<9x128x128xbf16, #tpu.memory_space<vmem>>, vector<1x128x128xbf16>
    %162 = vector.shape_cast %161 : vector<1x128x128xbf16> to vector<128x128xbf16>
    %cst_169 = arith.constant dense<0.000000e+00> : vector<64x128xf32>
    %163 = tpu.matmul %160, %162, %cst_169 {dimension_numbers = #tpu.dot_dimension_numbers<[1], [0], [0], [1], [0, 0, 1, 1], [], []>} : vector<64x128xbf16>, vector<128x128xbf16>, vector<64x128xf32> -> vector<64x128xf32>
    %164 = arith.addf %158, %163 : vector<64x128xf32>
    %c1_170 = arith.constant 1 : index
    %c1_171 = arith.constant 1 : index
    %c0_172 = arith.constant 0 : index
    %165 = vector.load %arg9[%c1_170, %c1_171, %c0_172] : memref<10x10x128xbf16, #tpu.memory_space<vmem>>, vector<8x8x128xbf16>
    %166 = vector.shape_cast %165 : vector<8x8x128xbf16> to vector<64x128xbf16>
    %c4_173 = arith.constant 4 : index
    %c0_174 = arith.constant 0 : index
    %c0_175 = arith.constant 0 : index
    %167 = vector.load %arg4[%c4_173, %c0_174, %c0_175] : memref<9x128x128xbf16, #tpu.memory_space<vmem>>, vector<1x128x128xbf16>
    %168 = vector.shape_cast %167 : vector<1x128x128xbf16> to vector<128x128xbf16>
    %cst_176 = arith.constant dense<0.000000e+00> : vector<64x128xf32>
    %169 = tpu.matmul %166, %168, %cst_176 {dimension_numbers = #tpu.dot_dimension_numbers<[1], [0], [0], [1], [0, 0, 1, 1], [], []>} : vector<64x128xbf16>, vector<128x128xbf16>, vector<64x128xf32> -> vector<64x128xf32>
    %170 = arith.addf %164, %169 : vector<64x128xf32>
    %c1_177 = arith.constant 1 : index
    %c2_178 = arith.constant 2 : index
    %c0_179 = arith.constant 0 : index
    %171 = vector.load %arg9[%c1_177, %c2_178, %c0_179] : memref<10x10x128xbf16, #tpu.memory_space<vmem>>, vector<8x8x128xbf16>
    %172 = vector.shape_cast %171 : vector<8x8x128xbf16> to vector<64x128xbf16>
    %c5_180 = arith.constant 5 : index
    %c0_181 = arith.constant 0 : index
    %c0_182 = arith.constant 0 : index
    %173 = vector.load %arg4[%c5_180, %c0_181, %c0_182] : memref<9x128x128xbf16, #tpu.memory_space<vmem>>, vector<1x128x128xbf16>
    %174 = vector.shape_cast %173 : vector<1x128x128xbf16> to vector<128x128xbf16>
    %cst_183 = arith.constant dense<0.000000e+00> : vector<64x128xf32>
    %175 = tpu.matmul %172, %174, %cst_183 {dimension_numbers = #tpu.dot_dimension_numbers<[1], [0], [0], [1], [0, 0, 1, 1], [], []>} : vector<64x128xbf16>, vector<128x128xbf16>, vector<64x128xf32> -> vector<64x128xf32>
    %176 = arith.addf %170, %175 : vector<64x128xf32>
    %c2_184 = arith.constant 2 : index
    %c0_185 = arith.constant 0 : index
    %c0_186 = arith.constant 0 : index
    %177 = vector.load %arg9[%c2_184, %c0_185, %c0_186] : memref<10x10x128xbf16, #tpu.memory_space<vmem>>, vector<8x8x128xbf16>
    %178 = vector.shape_cast %177 : vector<8x8x128xbf16> to vector<64x128xbf16>
    %c6_187 = arith.constant 6 : index
    %c0_188 = arith.constant 0 : index
    %c0_189 = arith.constant 0 : index
    %179 = vector.load %arg4[%c6_187, %c0_188, %c0_189] : memref<9x128x128xbf16, #tpu.memory_space<vmem>>, vector<1x128x128xbf16>
    %180 = vector.shape_cast %179 : vector<1x128x128xbf16> to vector<128x128xbf16>
    %cst_190 = arith.constant dense<0.000000e+00> : vector<64x128xf32>
    %181 = tpu.matmul %178, %180, %cst_190 {dimension_numbers = #tpu.dot_dimension_numbers<[1], [0], [0], [1], [0, 0, 1, 1], [], []>} : vector<64x128xbf16>, vector<128x128xbf16>, vector<64x128xf32> -> vector<64x128xf32>
    %182 = arith.addf %176, %181 : vector<64x128xf32>
    %c2_191 = arith.constant 2 : index
    %c1_192 = arith.constant 1 : index
    %c0_193 = arith.constant 0 : index
    %183 = vector.load %arg9[%c2_191, %c1_192, %c0_193] : memref<10x10x128xbf16, #tpu.memory_space<vmem>>, vector<8x8x128xbf16>
    %184 = vector.shape_cast %183 : vector<8x8x128xbf16> to vector<64x128xbf16>
    %c7_194 = arith.constant 7 : index
    %c0_195 = arith.constant 0 : index
    %c0_196 = arith.constant 0 : index
    %185 = vector.load %arg4[%c7_194, %c0_195, %c0_196] : memref<9x128x128xbf16, #tpu.memory_space<vmem>>, vector<1x128x128xbf16>
    %186 = vector.shape_cast %185 : vector<1x128x128xbf16> to vector<128x128xbf16>
    %cst_197 = arith.constant dense<0.000000e+00> : vector<64x128xf32>
    %187 = tpu.matmul %184, %186, %cst_197 {dimension_numbers = #tpu.dot_dimension_numbers<[1], [0], [0], [1], [0, 0, 1, 1], [], []>} : vector<64x128xbf16>, vector<128x128xbf16>, vector<64x128xf32> -> vector<64x128xf32>
    %188 = arith.addf %182, %187 : vector<64x128xf32>
    %c2_198 = arith.constant 2 : index
    %c2_199 = arith.constant 2 : index
    %c0_200 = arith.constant 0 : index
    %189 = vector.load %arg9[%c2_198, %c2_199, %c0_200] : memref<10x10x128xbf16, #tpu.memory_space<vmem>>, vector<8x8x128xbf16>
    %190 = vector.shape_cast %189 : vector<8x8x128xbf16> to vector<64x128xbf16>
    %c8_201 = arith.constant 8 : index
    %c0_202 = arith.constant 0 : index
    %c0_203 = arith.constant 0 : index
    %191 = vector.load %arg4[%c8_201, %c0_202, %c0_203] : memref<9x128x128xbf16, #tpu.memory_space<vmem>>, vector<1x128x128xbf16>
    %192 = vector.shape_cast %191 : vector<1x128x128xbf16> to vector<128x128xbf16>
    %cst_204 = arith.constant dense<0.000000e+00> : vector<64x128xf32>
    %193 = tpu.matmul %190, %192, %cst_204 {dimension_numbers = #tpu.dot_dimension_numbers<[1], [0], [0], [1], [0, 0, 1, 1], [], []>} : vector<64x128xbf16>, vector<128x128xbf16>, vector<64x128xf32> -> vector<64x128xf32>
    %194 = arith.addf %188, %193 : vector<64x128xf32>
    %c0_205 = arith.constant 0 : index
    %c0_206 = arith.constant 0 : index
    %195 = vector.load %arg7[%c0_205, %c0_206] : memref<1x128xf32, #tpu.memory_space<vmem>>, vector<1x128xf32>
    %196 = vector.broadcast %195 : vector<1x128xf32> to vector<64x128xf32>
    %197 = arith.addf %194, %196 : vector<64x128xf32>
    %198 = vector.shape_cast %197 : vector<64x128xf32> to vector<1x8x8x128xf32>
    %c0_207 = arith.constant 0 : index
    %c0_208 = arith.constant 0 : index
    %c0_209 = arith.constant 0 : index
    %c0_210 = arith.constant 0 : index
    %199 = vector.load %arg8[%c0_207, %c0_208, %c0_209, %c0_210] : memref<1x8x8x128xf32, #tpu.memory_space<vmem>>, vector<1x8x8x128xf32>
    tpu.vector_store %arg8[%c0_207, %c0_208, %c0_209, %c0_210], %198 {strides = array<i32>} : memref<1x8x8x128xf32, #tpu.memory_space<vmem>>, vector<1x8x8x128xf32>,
    return
  }
  func.func @transform_0(%arg0: i32) -> (i32, i32, i32, i32) {
    %c0_i32 = arith.constant 0 : i32
    %c0_i32_0 = arith.constant 0 : i32
    %c0_i32_1 = arith.constant 0 : i32
    %c0_i32_2 = arith.constant 0 : i32
    return %arg0, %c0_i32, %c0_i32_0, %c0_i32_1 : i32, i32, i32, i32
  }
  func.func @transform_1(%arg0: i32) -> (i32, i32, i32) {
    %c0_i32 = arith.constant 0 : i32
    %c0_i32_0 = arith.constant 0 : i32
    %c0_i32_1 = arith.constant 0 : i32
    %c0_i32_2 = arith.constant 0 : i32
    return %c0_i32, %c0_i32_0, %c0_i32_1 : i32, i32, i32
  }
  func.func @transform_2(%arg0: i32) -> (i32, i32, i32) {
    %c0_i32 = arith.constant 0 : i32
    %c0_i32_0 = arith.constant 0 : i32
    %c0_i32_1 = arith.constant 0 : i32
    %c0_i32_2 = arith.constant 0 : i32
    return %c0_i32, %c0_i32_0, %c0_i32_1 : i32, i32, i32
  }
  func.func @transform_3(%arg0: i32) -> (i32, i32, i32) {
    %c0_i32 = arith.constant 0 : i32
    %c0_i32_0 = arith.constant 0 : i32
    %c0_i32_1 = arith.constant 0 : i32
    %c0_i32_2 = arith.constant 0 : i32
    return %c0_i32, %c0_i32_0, %c0_i32_1 : i32, i32, i32
  }
  func.func @transform_4(%arg0: i32) -> (i32, i32) {
    %c0_i32 = arith.constant 0 : i32
    %c0_i32_0 = arith.constant 0 : i32
    %c0_i32_1 = arith.constant 0 : i32
    return %c0_i32, %c0_i32_0 : i32, i32
  }
  func.func @transform_5(%arg0: i32) -> (i32, i32) {
    %c0_i32 = arith.constant 0 : i32
    %c0_i32_0 = arith.constant 0 : i32
    %c0_i32_1 = arith.constant 0 : i32
    return %c0_i32, %c0_i32_0 : i32, i32
  }
  func.func @transform_6(%arg0: i32) -> (i32, i32) {
    %c0_i32 = arith.constant 0 : i32
    %c0_i32_0 = arith.constant 0 : i32
    %c0_i32_1 = arith.constant 0 : i32
    return %c0_i32, %c0_i32_0 : i32, i32
  }
  func.func @transform_7(%arg0: i32) -> (i32, i32, i32, i32) {
    %c0_i32 = arith.constant 0 : i32
    %c0_i32_0 = arith.constant 0 : i32
    %c0_i32_1 = arith.constant 0 : i32
    %c0_i32_2 = arith.constant 0 : i32
    return %arg0, %c0_i32, %c0_i32_0, %c0_i32_1 : i32, i32, i32, i32
  }
}

</mosaic_0001>

<llo_original>
// kernel: tpu_custom_call.1
$region0: #{tpu_custom_call.1}
  #allocation0 [shape = 'u32[]', space=smem, size = 0x4, offset = 0x4, fixed_abs, tag = 'smem constant byte address 0x4 - core index']
  #allocation1 [shape = 'u32[144,128]{1,0:T(1,128)}', space=vmem, size = 0x12000, scoped, tag = 'internal scratch']
  #allocation2 [shape = 'bf16[10,10,128]{2,1,0:T(8,128)(2,1)}', space=vmem, size = 0xa000, scoped, tag = 'scratch operand']
  %s0 = inlined_call_operand.hbm [shape: f32[2,8,8,16], index: 0, kind: input, shape index: {}]
  %s1 = inlined_call_operand.hbm [shape: bf16[9,128,128], index: 1, kind: input, shape index: {}]
  %s2 = inlined_call_operand.hbm [shape: bf16[9,128,128], index: 2, kind: input, shape index: {}]
  %s3 = inlined_call_operand.hbm [shape: bf16[9,128,128], index: 3, kind: input, shape index: {}]
  %s4 = inlined_call_operand.vmem [shape: f32[1,128], index: 4, kind: input, shape index: {}]
  %s5 = inlined_call_operand.vmem [shape: f32[1,128], index: 5, kind: input, shape index: {}]
  %s6 = inlined_call_operand.vmem [shape: f32[1,128], index: 6, kind: input, shape index: {}]
  %s7 = inlined_call_operand.hbm [shape: f32[2,8,8,128], index: 7, kind: output, shape index: {}]
  %s8 = sld [smem:[#allocation0]]
  $region77: #{tpu_custom_call.1} parent=0
    _
  %s10 = ssub.s32 1, %s8
  %s11 = scalar_select 0, %s10, %s8
  $region1: #{tpu_custom_call.1} parent=0
    #allocation3 [shape = 'u8[65536]{0}', space=vmem, size = 0x10000, scoped, tag = 'input window, operand 0']
    #allocation4 [shape = 's32[2]{0}', space=sflag, size = 0x8, scoped, tag = 'scoped memory for tpu_custom_call.1']
    #allocation5 [shape = 's32[2]{0}', space=sflag, size = 0x8, scoped, tag = 'scoped memory for tpu_custom_call.1']
    #allocation6 [shape = 'u8[294912]{0}', space=vmem, size = 0x48000, scoped, tag = 'input window, operand 1, single buffered']
    #allocation7 [shape = 's32[1]{0}', space=sflag, size = 0x4, scoped, tag = 'scoped memory for tpu_custom_call.1']
    #allocation8 [shape = 'u8[294912]{0}', space=vmem, size = 0x48000, scoped, tag = 'input window, operand 2, single buffered']
    #allocation9 [shape = 'u8[294912]{0}', space=vmem, size = 0x48000, scoped, tag = 'input window, operand 3, single buffered']
    #allocation10 [shape = 's32[1]{0}', space=sflag, size = 0x4, scoped, tag = 'scoped memory for tpu_custom_call.1']
    #allocation11 [shape = 'u8[65536]{0}', space=vmem, size = 0x10000, scoped, tag = 'output window, operand 0']
    %12 = vsyncpa [#allocation4], 0
    %s13 = scalar_lea.sflag [#allocation4], 1
    %14 = vsyncpa %s13, 0
    %15 = vsyncpa [#allocation7], 0
    %16 = vsyncpa [#allocation10], 0
    %17 = vsyncpa [#allocation5], 0
    %s18 = scalar_lea.sflag [#allocation5], 1
    %19 = vsyncpa %s18, 0
    loop: start=0, step=1, limit=4
    $region2: #{tpu_custom_call.1} parent=1 // loop_pre_header
      _
    $region3: #{tpu_custom_call.1} parent=1 // loop_header
      %s21 = sphi 0, %s25
      %p22 = scmp.ge.s32.totalorder %s21, 4
      %s31 = sphi 0, %s33
      %s34 = sphi 0, %s31
      %s35 = sphi 0, %s34
      %s51 = sphi 0, %s35
      %s55 = sphi 0, %s55
      %s57 = sphi 0, %s55
      %s58 = sphi 0, %s57
      %s72 = sphi 0, %s58
      %s76 = sphi 0, %s76
      %s78 = sphi 0, %s76
      %s79 = sphi 0, %s78
      %s93 = sphi 0, %s79
      %s97 = sphi 0, %s97
      %s99 = sphi 0, %s97
      %s100 = sphi 0, %s99
      %s114 = sphi 0, %s100
      %s118 = sphi 0, %s118
      %s120 = sphi 0, %s118
      %s121 = sphi 0, %s120
      %s135 = sphi 0, %s121
      %s139 = sphi 0, %s139
      %s141 = sphi 0, %s139
      %s142 = sphi 0, %s141
      %s156 = sphi 0, %s142
      %s160 = sphi 0, %s160
      %s162 = sphi 0, %s160
      %s163 = sphi 0, %s162
      %s177 = sphi 0, %s163
      %s183 = sphi 0, %s185
      %s186 = sphi 0, %s183
      %s187 = sphi 0, %s186
      %s203 = sphi 0, %s187
    $region4: #{tpu_custom_call.1} parent=1 // loop_header_branch
      %24 = sbr.rel (%p22) target = $region8
    $region5: #{tpu_custom_call.1} parent=1 // loop_body
      %s26 = ssub.s32 %s21, 1
      %s27 = ssub.s32 %s21, 2
      %s28 = sadd.s32 %s21, 1
      %s29 = ssub.s32 %s21, %s28
      %p30 = scmp.eq.s32.totalorder %s29, 0
      %s32 = sadd.s32 %s31, 1
      %s33 = scalar_select %p30, %s31, %s32
      %p36 = pneg %p30
      %p37 = scmp.eq.s32.totalorder %s21, 1
      %p38 = por %p36, %p37
      %p39 = scmp.ne.s32.totalorder %s31, %s34
      %p40 = scmp.eq.s32.totalorder %s21, 0
      %p41 = por %p39, %p40
      %p42 = scmp.ne.s32.totalorder %s31, %s34
      %p43 = scmp.eq.s32.totalorder %s26, 1
      %p44 = por %p42, %p43
      %p45 = scmp.ne.s32.totalorder %s34, %s35
      %p46 = scmp.eq.s32.totalorder %s26, 0
      %p47 = por %p45, %p46
      %p48 = scmp.ne.s32.totalorder %s34, %s35
      %p49 = scmp.eq.s32.totalorder %s27, 1
      %p50 = por %p48, %p49
      %p52 = scmp.ne.s32.totalorder %s35, %s51
      %p53 = scmp.eq.s32.totalorder %s27, 0
      %p54 = por %p52, %p53
      %s56 = sadd.s32 %s55, 1
      %p59 = scmp.eq.s32.totalorder %s21, 1
      %p60 = scmp.ne.s32.totalorder %s55, %s57
      %p61 = scmp.eq.s32.totalorder %s21, 0
      %p62 = por %p60, %p61
      %p63 = scmp.ne.s32.totalorder %s55, %s57
      %p64 = scmp.eq.s32.totalorder %s26, 1
      %p65 = por %p63, %p64
      %p66 = scmp.ne.s32.totalorder %s57, %s58
      %p67 = scmp.eq.s32.totalorder %s26, 0
      %p68 = por %p66, %p67
      %p69 = scmp.ne.s32.totalorder %s57, %s58
      %p70 = scmp.eq.s32.totalorder %s27, 1
      %p71 = por %p69, %p70
      %p73 = scmp.ne.s32.totalorder %s58, %s72
      %p74 = scmp.eq.s32.totalorder %s27, 0
      %p75 = por %p73, %p74
      %s77 = sadd.s32 %s76, 1
      %p80 = scmp.eq.s32.totalorder %s21, 1
      %p81 = scmp.ne.s32.totalorder %s76, %s78
      %p82 = scmp.eq.s32.totalorder %s21, 0
      %p83 = por %p81, %p82
      %p84 = scmp.ne.s32.totalorder %s76, %s78
      %p85 = scmp.eq.s32.totalorder %s26, 1
      %p86 = por %p84, %p85
      %p87 = scmp.ne.s32.totalorder %s78, %s79
      %p88 = scmp.eq.s32.totalorder %s26, 0
      %p89 = por %p87, %p88
      %p90 = scmp.ne.s32.totalorder %s78, %s79
      %p91 = scmp.eq.s32.totalorder %s27, 1
      %p92 = por %p90, %p91
      %p94 = scmp.ne.s32.totalorder %s79, %s93
      %p95 = scmp.eq.s32.totalorder %s27, 0
      %p96 = por %p94, %p95
      %s98 = sadd.s32 %s97, 1
      %p101 = scmp.eq.s32.totalorder %s21, 1
      %p102 = scmp.ne.s32.totalorder %s97, %s99
      %p103 = scmp.eq.s32.totalorder %s21, 0
      %p104 = por %p102, %p103
      %p105 = scmp.ne.s32.totalorder %s97, %s99
      %p106 = scmp.eq.s32.totalorder %s26, 1
      %p107 = por %p105, %p106
      %p108 = scmp.ne.s32.totalorder %s99, %s100
      %p109 = scmp.eq.s32.totalorder %s26, 0
      %p110 = por %p108, %p109
      %p111 = scmp.ne.s32.totalorder %s99, %s100
      %p112 = scmp.eq.s32.totalorder %s27, 1
      %p113 = por %p111, %p112
      %p115 = scmp.ne.s32.totalorder %s100, %s114
      %p116 = scmp.eq.s32.totalorder %s27, 0
      %p117 = por %p115, %p116
      %s119 = sadd.s32 %s118, 1
      %p122 = scmp.eq.s32.totalorder %s21, 1
      %p123 = scmp.ne.s32.totalorder %s118, %s120
      %p124 = scmp.eq.s32.totalorder %s21, 0
      %p125 = por %p123, %p124
      %p126 = scmp.ne.s32.totalorder %s118, %s120
      %p127 = scmp.eq.s32.totalorder %s26, 1
      %p128 = por %p126, %p127
      %p129 = scmp.ne.s32.totalorder %s120, %s121
      %p130 = scmp.eq.s32.totalorder %s26, 0
      %p131 = por %p129, %p130
      %p132 = scmp.ne.s32.totalorder %s120, %s121
      %p133 = scmp.eq.s32.totalorder %s27, 1
      %p134 = por %p132, %p133
      %p136 = scmp.ne.s32.totalorder %s121, %s135
      %p137 = scmp.eq.s32.totalorder %s27, 0
      %p138 = por %p136, %p137
      %s140 = sadd.s32 %s139, 1
      %p143 = scmp.eq.s32.totalorder %s21, 1
      %p144 = scmp.ne.s32.totalorder %s139, %s141
      %p145 = scmp.eq.s32.totalorder %s21, 0
      %p146 = por %p144, %p145
      %p147 = scmp.ne.s32.totalorder %s139, %s141
      %p148 = scmp.eq.s32.totalorder %s26, 1
      %p149 = por %p147, %p148
      %p150 = scmp.ne.s32.totalorder %s141, %s142
      %p151 = scmp.eq.s32.totalorder %s26, 0
      %p152 = por %p150, %p151
      %p153 = scmp.ne.s32.totalorder %s141, %s142
      %p154 = scmp.eq.s32.totalorder %s27, 1
      %p155 = por %p153, %p154
      %p157 = scmp.ne.s32.totalorder %s142, %s156
      %p158 = scmp.eq.s32.totalorder %s27, 0
      %p159 = por %p157, %p158
      %s161 = sadd.s32 %s160, 1
      %p164 = scmp.eq.s32.totalorder %s21, 1
      %p165 = scmp.ne.s32.totalorder %s160, %s162
      %p166 = scmp.eq.s32.totalorder %s21, 0
      %p167 = por %p165, %p166
      %p168 = scmp.ne.s32.totalorder %s160, %s162
      %p169 = scmp.eq.s32.totalorder %s26, 1
      %p170 = por %p168, %p169
      %p171 = scmp.ne.s32.totalorder %s162, %s163
      %p172 = scmp.eq.s32.totalorder %s26, 0
      %p173 = por %p171, %p172
      %p174 = scmp.ne.s32.totalorder %s162, %s163
      %p175 = scmp.eq.s32.totalorder %s27, 1
      %p176 = por %p174, %p175
      %p178 = scmp.ne.s32.totalorder %s163, %s177
      %p179 = scmp.eq.s32.totalorder %s27, 0
      %p180 = por %p178, %p179
      %s181 = ssub.s32 %s21, %s28
      %p182 = scmp.eq.s32.totalorder %s181, 0
      %s184 = sadd.s32 %s183, 1
      %s185 = scalar_select %p182, %s183, %s184
      %p188 = pneg %p182
      %p189 = scmp.eq.s32.totalorder %s21, 1
      %p190 = por %p188, %p189
      %p191 = scmp.ne.s32.totalorder %s183, %s186
      %p192 = scmp.eq.s32.totalorder %s21, 0
      %p193 = por %p191, %p192
      %p194 = scmp.ne.s32.totalorder %s183, %s186
      %p195 = scmp.eq.s32.totalorder %s26, 1
      %p196 = por %p194, %p195
      %p197 = scmp.ne.s32.totalorder %s186, %s187
      %p198 = scmp.eq.s32.totalorder %s26, 0
      %p199 = por %p197, %p198
      %p200 = scmp.ne.s32.totalorder %s186, %s187
      %p201 = scmp.eq.s32.totalorder %s27, 1
      %p202 = por %p200, %p201
      %p204 = scmp.ne.s32.totalorder %s187, %s203
      %p205 = scmp.eq.s32.totalorder %s27, 0
      %p206 = por %p204, %p205
      %p207 = scmp.le.s32.totalorder 1, %s21
      %p208 = scmp.lt.s32.totalorder %s21, 3
      %p209 = pnand %p207, %p208
      %p210 = pneg %p209
      // Predicated region
      $region9: #{tpu_custom_call.1} parent=5 // pred_check
        _
      $region10: #{tpu_custom_call.1} parent=5 // pred_check_branch
        %212 = sbr.rel (%p209) target = $region12
      $region11: #{tpu_custom_call.1} parent=5 // pred_region
        %s213 = ssub.s32 %s21, 1
        // Predicated region
        $region13: #{tpu_custom_call.1} parent=11 // pred_check
          %p214 = pneg %p68
        $region14: #{tpu_custom_call.1} parent=11 // pred_check_branch
          %216 = sbr.rel (%p214) target = $region16
        $region15: #{tpu_custom_call.1} parent=11 // pred_region
          %s218 = ssub.s32 9216, 9216
          %219 = vsyncadd [#allocation7], %s218
          %s220 = sshll.u32 [#allocation6], 4
          %s221 = int_to_ptr.vmem [resolvable:$true] %s220
          %226 = dma.hbm_to_vmem [thread:$0]  %s1, 9216, %s221, [#allocation7], 64, 64, 4
        $region16: #{tpu_custom_call.1} parent=11 // pred_fallthru
          _
        // Predicated region
        $region17: #{tpu_custom_call.1} parent=11 // pred_check
          %p227 = pneg %p89
        $region18: #{tpu_custom_call.1} parent=11 // pred_check_branch
          %229 = sbr.rel (%p227) target = $region20
        $region19: #{tpu_custom_call.1} parent=11 // pred_region
          %s231 = ssub.s32 9216, 9216
          %232 = vsyncadd [#allocation7], %s231
          %s233 = sshll.u32 [#allocation8], 4
          %s234 = int_to_ptr.vmem [resolvable:$true] %s233
          %239 = dma.hbm_to_vmem [thread:$0]  %s2, 9216, %s234, [#allocation7], 64, 64, 4
        $region20: #{tpu_custom_call.1} parent=11 // pred_fallthru
          _
        // Predicated region
        $region21: #{tpu_custom_call.1} parent=11 // pred_check
          %p240 = pneg %p110
        $region22: #{tpu_custom_call.1} parent=11 // pred_check_branch
          %242 = sbr.rel (%p240) target = $region24
        $region23: #{tpu_custom_call.1} parent=11 // pred_region
          %s244 = ssub.s32 9216, 9216
          %245 = vsyncadd [#allocation10], %s244
          %s246 = sshll.u32 [#allocation9], 4
          %s247 = int_to_ptr.vmem [resolvable:$true] %s246
          %252 = dma.hbm_to_vmem [thread:$0]  %s3, 9216, %s247, [#allocation10], 64, 64, 4
        $region24: #{tpu_custom_call.1} parent=11 // pred_fallthru
          _
        // Predicated region
        $region25: #{tpu_custom_call.1} parent=11 // pred_check
          %p253 = pneg %p131
        $region26: #{tpu_custom_call.1} parent=11 // pred_check_branch
          %255 = sbr.rel (%p253) target = $region28
        $region27: #{tpu_custom_call.1} parent=11 // pred_region
          _
        $region28: #{tpu_custom_call.1} parent=11 // pred_fallthru
          _
        // Predicated region
        $region29: #{tpu_custom_call.1} parent=11 // pred_check
          %p256 = pneg %p152
        $region30: #{tpu_custom_call.1} parent=11 // pred_check_branch
          %258 = sbr.rel (%p256) target = $region32
        $region31: #{tpu_custom_call.1} parent=11 // pred_region
          _
        $region32: #{tpu_custom_call.1} parent=11 // pred_fallthru
          _
        // Predicated region
        $region33: #{tpu_custom_call.1} parent=11 // pred_check
          %p259 = pneg %p173
        $region34: #{tpu_custom_call.1} parent=11 // pred_check_branch
          %261 = sbr.rel (%p259) target = $region36
        $region35: #{tpu_custom_call.1} parent=11 // pred_region
          _
        $region36: #{tpu_custom_call.1} parent=11 // pred_fallthru
          _
      $region12: #{tpu_custom_call.1} parent=5 // pred_fallthru
        _
      %p262 = scmp.lt.s32.totalorder %s21, 2
      // Predicated region
      $region37: #{tpu_custom_call.1} parent=5 // pred_check
        %p263 = pneg %p262
      $region38: #{tpu_custom_call.1} parent=5 // pred_check_branch
        %265 = sbr.rel (%p263) target = $region40
      $region39: #{tpu_custom_call.1} parent=5 // pred_region
        // Predicated region
        $region41: #{tpu_custom_call.1} parent=39 // pred_check
          %p266 = pneg %p41
        $region42: #{tpu_custom_call.1} parent=39 // pred_check_branch
          %268 = sbr.rel (%p266) target = $region44
        $region43: #{tpu_custom_call.1} parent=39 // pred_region
          %s269 = sand.u32 %s31, 1
          %s270 = scalar_lea.sflag [#allocation4], %s269
          %s271 = sand.u32 %s31, 1
          %s272 = smul.addr %s271, 64
          %s273 = scalar_lea.vmem [#allocation3], %s272
          %s275 = ssub.s32 1024, 1024
          %276 = vsyncadd %s270, %s275
          %s277 = smul.addr %s21, 8
          %s278 = smul.addr %s277, 128
          %s279 = scalar_lea.hbm %s0, %s278
          %s280 = sshll.u32 %s273, 4
          %s281 = int_to_ptr.vmem [resolvable:$true] %s280
          %286 = dma.hbm_to_vmem [thread:$0]  %s279, 1024, %s281, %s270, 128, 128, 8
        $region44: #{tpu_custom_call.1} parent=39 // pred_fallthru
          _
      $region40: #{tpu_custom_call.1} parent=5 // pred_fallthru
        _
      %p287 = scmp.le.s32.totalorder 1, %s21
      %p288 = scmp.lt.s32.totalorder %s21, 3
      %p289 = pnand %p287, %p288
      %p290 = pneg %p289
      // Predicated region
      $region45: #{tpu_custom_call.1} parent=5 // pred_check
        _
      $region46: #{tpu_custom_call.1} parent=5 // pred_check_branch
        %292 = sbr.rel (%p289) target = $region48
      $region47: #{tpu_custom_call.1} parent=5 // pred_region
        %s293 = ssub.s32 %s21, 1
        %s294 = sand.u32 %s34, 1
        %s295 = scalar_lea.sflag [#allocation4], %s294
        %s296 = sand.u32 %s34, 1
        %s297 = smul.addr %s296, 64
        %s298 = scalar_lea.vmem [#allocation3], %s297
        // Predicated region
        $region49: #{tpu_custom_call.1} parent=47 // pred_check
          %p299 = pneg %p47
        $region50: #{tpu_custom_call.1} parent=47 // pred_check_branch
          %301 = sbr.rel (%p299) target = $region52
        $region51: #{tpu_custom_call.1} parent=47 // pred_region
          %302 = dma.done %s295, 1024
        $region52: #{tpu_custom_call.1} parent=47 // pred_fallthru
          _
        // Predicated region
        $region53: #{tpu_custom_call.1} parent=47 // pred_check
          %p303 = pneg %p68
        $region54: #{tpu_custom_call.1} parent=47 // pred_check_branch
          %305 = sbr.rel (%p303) target = $region56
        $region55: #{tpu_custom_call.1} parent=47 // pred_region
          %306 = dma.done [#allocation7], 9216
        $region56: #{tpu_custom_call.1} parent=47 // pred_fallthru
          _
        // Predicated region
        $region57: #{tpu_custom_call.1} parent=47 // pred_check
          %p307 = pneg %p89
        $region58: #{tpu_custom_call.1} parent=47 // pred_check_branch
          %309 = sbr.rel (%p307) target = $region60
        $region59: #{tpu_custom_call.1} parent=47 // pred_region
          %310 = dma.done [#allocation7], 9216
        $region60: #{tpu_custom_call.1} parent=47 // pred_fallthru
          _
        // Predicated region
        $region61: #{tpu_custom_call.1} parent=47 // pred_check
          %p311 = pneg %p110
        $region62: #{tpu_custom_call.1} parent=47 // pred_check_branch
          %313 = sbr.rel (%p311) target = $region64
        $region63: #{tpu_custom_call.1} parent=47 // pred_region
          %314 = dma.done [#allocation10], 9216
        $region64: #{tpu_custom_call.1} parent=47 // pred_fallthru
          _
        %s315 = sand.u32 %s34, 1
        %s316 = scalar_lea.sflag [#allocation4], %s315
        %s317 = sand.u32 %s34, 1
        %s318 = smul.addr %s317, 64
        %s319 = scalar_lea.vmem [#allocation3], %s318
        %p320 = pneg %p47
        %p321 = pneg %p44
        %p322 = pneg %p68
        %p323 = pneg %p65
        %p324 = pneg %p89
        %p325 = pneg %p86
        %p326 = pneg %p110
        %p327 = pneg %p107
        %p328 = pneg %p131
        %p329 = pneg %p128
        %p330 = pneg %p152
        %p331 = pneg %p149
        %p332 = pneg %p173
        %p333 = pneg %p170
        %p334 = pneg %p199
        %p335 = pneg %p196
        %s336 = sand.u32 %s186, 1
        %s337 = scalar_lea.sflag [#allocation5], %s336
        %s338 = sand.u32 %s186, 1
        %s339 = smul.addr %s338, 64
        %s340 = scalar_lea.vmem [#allocation11], %s339
        %342 = vst [vmem:[#allocation2] sm:$0xf] 0
        %343 = vst [vmem:[#allocation2 + $0x4] sm:$0x1] 0
        %344 = vst [vmem:[#allocation2 + $0x8] sm:$0xf] 0
        %345 = vst [vmem:[#allocation2 + $0xc] sm:$0x1] 0
        %346 = vst [vmem:[#allocation2 + $0x10] sm:$0xf] 0
        %347 = vst [vmem:[#allocation2 + $0x14] sm:$0x1] 0
        %348 = vst [vmem:[#allocation2 + $0x18] sm:$0xf] 0
        %349 = vst [vmem:[#allocation2 + $0x1c] sm:$0x1] 0
        %350 = vst [vmem:[#allocation2 + $0x20] sm:$0xf] 0
        %351 = vst [vmem:[#allocation2 + $0x24] sm:$0x1] 0
        %352 = vst [vmem:[#allocation2 + $0x28] sm:$0xf] 0
        %353 = vst [vmem:[#allocation2 + $0x2c] sm:$0x1] 0
        %354 = vst [vmem:[#allocation2 + $0x30] sm:$0xf] 0
        %355 = vst [vmem:[#allocation2 + $0x34] sm:$0x1] 0
        %356 = vst [vmem:[#allocation2 + $0x38] sm:$0xf] 0
        %357 = vst [vmem:[#allocation2 + $0x3c] sm:$0x1] 0
        %358 = vst [vmem:[#allocation2 + $0x40] sm:$0xf] 0
        %359 = vst [vmem:[#allocation2 + $0x44] sm:$0x1] 0
        %360 = vst [vmem:[#allocation2 + $0x48] sm:$0xf] 0
        %361 = vst [vmem:[#allocation2 + $0x4c] sm:$0x1] 0
        %v362 = vld [vmem:[%s298] sm:$0xff]
        %v363 = vld [vmem:[%s298 + $0x8] sm:$0xff]
        %v364 = vld [vmem:[%s298 + $0x10] sm:$0xff]
        %v365 = vld [vmem:[%s298 + $0x18] sm:$0xff]
        %v366 = vld [vmem:[%s298 + $0x20] sm:$0xff]
        %v367 = vld [vmem:[%s298 + $0x28] sm:$0xff]
        %v368 = vld [vmem:[%s298 + $0x30] sm:$0xff]
        %v369 = vld [vmem:[%s298 + $0x38] sm:$0xff]
        %v370 = vpack.c.bf16 %v362, %v362
        %v371 = vpack.c.bf16 %v363, %v363
        %v372 = vpack.c.bf16 %v364, %v364
        %v373 = vpack.c.bf16 %v365, %v365
        %v374 = vpack.c.bf16 %v366, %v366
        %v375 = vpack.c.bf16 %v367, %v367
        %v376 = vpack.c.bf16 %v368, %v368
        %v377 = vpack.c.bf16 %v369, %v369
        %v386 = vunpack.c.l.b16 %v370
        %v387 = vunpack.c.l.b16 %v371
        %v388 = vunpack.c.l.b16 %v372
        %v389 = vunpack.c.l.b16 %v373
        %v390 = vunpack.c.l.b16 %v374
        %v391 = vunpack.c.l.b16 %v375
        %v392 = vunpack.c.l.b16 %v376
        %v393 = vunpack.c.l.b16 %v377
        %v394 = vpack.c.b16 %v386, %v386
        %v395 = vpack.c.b16 %v387, %v387
        %v396 = vpack.c.b16 %v388, %v388
        %v397 = vpack.c.b16 %v389, %v389
        %v398 = vpack.c.b16 %v390, %v390
        %v399 = vpack.c.b16 %v391, %v391
        %v400 = vpack.c.b16 %v392, %v392
        %v401 = vpack.c.b16 %v393, %v393
        %v403 = vshrl.u32 %v394, 16
        %v405 = vrot.slane %v403, 7
        %v406 = vshll.u32 %v394, 16
        %v408 = vor.u32 %v405, %v406
        %v409 = vrot.slane %v405, 4
        %v411 = vshrl.u32 %v395, 16
        %v413 = vrot.slane %v411, 7
        %v414 = vshll.u32 %v395, 16
        %v416 = vor.u32 %v413, %v414
        %v417 = vrot.slane %v413, 4
        %v419 = vshrl.u32 %v396, 16
        %v421 = vrot.slane %v419, 7
        %v422 = vshll.u32 %v396, 16
        %v424 = vor.u32 %v421, %v422
        %v425 = vrot.slane %v421, 4
        %v427 = vshrl.u32 %v397, 16
        %v429 = vrot.slane %v427, 7
        %v430 = vshll.u32 %v397, 16
        %v432 = vor.u32 %v429, %v430
        %v433 = vrot.slane %v429, 4
        %v435 = vshrl.u32 %v398, 16
        %v437 = vrot.slane %v435, 7
        %v438 = vshll.u32 %v398, 16
        %v440 = vor.u32 %v437, %v438
        %v441 = vrot.slane %v437, 4
        %v443 = vshrl.u32 %v399, 16
        %v445 = vrot.slane %v443, 7
        %v446 = vshll.u32 %v399, 16
        %v448 = vor.u32 %v445, %v446
        %v449 = vrot.slane %v445, 4
        %v451 = vshrl.u32 %v400, 16
        %v453 = vrot.slane %v451, 7
        %v454 = vshll.u32 %v400, 16
        %v456 = vor.u32 %v453, %v454
        %v457 = vrot.slane %v453, 4
        %v459 = vshrl.u32 %v401, 16
        %v461 = vrot.slane %v459, 7
        %v462 = vshll.u32 %v401, 16
        %v464 = vor.u32 %v461, %v462
        %v465 = vrot.slane %v461, 4
        %s482 = scalar_lea.vmem [#allocation2], 8
        %vm483 = vcmask 125952
        %vm484 = vsmask.f32 7938
        %vm485 = vmand %vm483, %vm484
        %v486 = vld [vmem:[%s482] sm:$0xf]
        %v487 = vsel %vm485, %v408, %v486
        %488 = vst [vmem:[%s482] sm:$0xf] %v487
        %vm489 = vcmask 122880
        %vm490 = vsmask.f32 256
        %vm491 = vmand %vm489, %vm490
        %v492 = vld [vmem:[%s482 + $0x4] sm:$0x1]
        %v493 = vsel %vm491, %v409, %v492
        %494 = vst [vmem:[%s482 + $0x4] sm:$0x1] %v493
        %v495 = vld [vmem:[%s482 + $0x8] sm:$0xf]
        %v496 = vsel %vm485, %v416, %v495
        %497 = vst [vmem:[%s482 + $0x8] sm:$0xf] %v496
        %v498 = vld [vmem:[%s482 + $0xc] sm:$0x1]
        %v499 = vsel %vm491, %v417, %v498
        %500 = vst [vmem:[%s482 + $0xc] sm:$0x1] %v499
        %v501 = vld [vmem:[%s482 + $0x10] sm:$0xf]
        %v502 = vsel %vm485, %v424, %v501
        %503 = vst [vmem:[%s482 + $0x10] sm:$0xf] %v502
        %v504 = vld [vmem:[%s482 + $0x14] sm:$0x1]
        %v505 = vsel %vm491, %v425, %v504
        %506 = vst [vmem:[%s482 + $0x14] sm:$0x1] %v505
        %v507 = vld [vmem:[%s482 + $0x18] sm:$0xf]
        %v508 = vsel %vm485, %v432, %v507
        %509 = vst [vmem:[%s482 + $0x18] sm:$0xf] %v508
        %v510 = vld [vmem:[%s482 + $0x1c] sm:$0x1]
        %v511 = vsel %vm491, %v433, %v510
        %512 = vst [vmem:[%s482 + $0x1c] sm:$0x1] %v511
        %v513 = vld [vmem:[%s482 + $0x20] sm:$0xf]
        %v514 = vsel %vm485, %v440, %v513
        %515 = vst [vmem:[%s482 + $0x20] sm:$0xf] %v514
        %v516 = vld [vmem:[%s482 + $0x24] sm:$0x1]
        %v517 = vsel %vm491, %v441, %v516
        %518 = vst [vmem:[%s482 + $0x24] sm:$0x1] %v517
        %v519 = vld [vmem:[%s482 + $0x28] sm:$0xf]
        %v520 = vsel %vm485, %v448, %v519
        %521 = vst [vmem:[%s482 + $0x28] sm:$0xf] %v520
        %v522 = vld [vmem:[%s482 + $0x2c] sm:$0x1]
        %v523 = vsel %vm491, %v449, %v522
        %524 = vst [vmem:[%s482 + $0x2c] sm:$0x1] %v523
        %v525 = vld [vmem:[%s482 + $0x30] sm:$0xf]
        %v526 = vsel %vm485, %v456, %v525
        %527 = vst [vmem:[%s482 + $0x30] sm:$0xf] %v526
        %v528 = vld [vmem:[%s482 + $0x34] sm:$0x1]
        %v529 = vsel %vm491, %v457, %v528
        %530 = vst [vmem:[%s482 + $0x34] sm:$0x1] %v529
        %v531 = vld [vmem:[%s482 + $0x38] sm:$0xf]
        %v532 = vsel %vm485, %v464, %v531
        %533 = vst [vmem:[%s482 + $0x38] sm:$0xf] %v532
        %v534 = vld [vmem:[%s482 + $0x3c] sm:$0x1]
        %v535 = vsel %vm491, %v465, %v534
        %536 = vst [vmem:[%s482 + $0x3c] sm:$0x1] %v535
        %v537 = vld [vmem:[#allocation2] sm:$0xf]
        %v538 = vld [vmem:[#allocation2 + $0x8] sm:$0xf]
        %v539 = vld [vmem:[#allocation2 + $0x10] sm:$0xf]
        %v540 = vld [vmem:[#allocation2 + $0x18] sm:$0xf]
        %v541 = vld [vmem:[#allocation2 + $0x20] sm:$0xf]
        %v542 = vld [vmem:[#allocation2 + $0x28] sm:$0xf]
        %v543 = vld [vmem:[#allocation2 + $0x30] sm:$0xf]
        %v544 = vld [vmem:[#allocation2 + $0x38] sm:$0xf]
        %v545 = vld [vmem:[#allocation6] sm:$0xf]
        %v546 = vld [vmem:[#allocation6 + $0x4] sm:$0xf]
        %v547 = vld [vmem:[#allocation6 + $0x8] sm:$0xf]
        %v548 = vld [vmem:[#allocation6 + $0xc] sm:$0xf]
        %v549 = vld [vmem:[#allocation6 + $0x10] sm:$0xf]
        %v550 = vld [vmem:[#allocation6 + $0x14] sm:$0xf]
        %v551 = vld [vmem:[#allocation6 + $0x18] sm:$0xf]
        %v552 = vld [vmem:[#allocation6 + $0x1c] sm:$0xf]
        %v553 = vld [vmem:[#allocation6 + $0x20] sm:$0xf]
        %v554 = vld [vmem:[#allocation6 + $0x24] sm:$0xf]
        %v555 = vld [vmem:[#allocation6 + $0x28] sm:$0xf]
        %v556 = vld [vmem:[#allocation6 + $0x2c] sm:$0xf]
        %v557 = vld [vmem:[#allocation6 + $0x30] sm:$0xf]
        %v558 = vld [vmem:[#allocation6 + $0x34] sm:$0xf]
        %v559 = vld [vmem:[#allocation6 + $0x38] sm:$0xf]
        %v560 = vld [vmem:[#allocation6 + $0x3c] sm:$0xf]
        %v561 = vld [vmem:[#allocation2 + $0x4] sm:$0x1]
        %v562 = vld [vmem:[#allocation2 + $0xc] sm:$0x1]
        %v563 = vld [vmem:[#allocation2 + $0x14] sm:$0x1]
        %v564 = vld [vmem:[#allocation2 + $0x1c] sm:$0x1]
        %v565 = vld [vmem:[#allocation2 + $0x24] sm:$0x1]
        %v566 = vld [vmem:[#allocation2 + $0x2c] sm:$0x1]
        %v567 = vld [vmem:[#allocation2 + $0x34] sm:$0x1]
        %v568 = vld [vmem:[#allocation2 + $0x3c] sm:$0x1]
        %vm569 = vsmask.f32 3328
        %vm570 = vsmask.f32 7440
        %vm571 = vmor %vm569, %vm570
        %v573 = vshrl.u32 %v537, 16
        %v575 = vrot.slane %v573, 4
        %v576 = vshll.u32 %v537, 16
        %v578 = vrot.slane %v576, 5
        %v579 = vor.u32 %v575, %v578
        %v580 = vrot.slane %v579, 4
        %v582 = vshll.u32 %v561, 16
        %v584 = vrot.slane %v582, 5
        %v585 = vsel %vm571, %v580, %v584
        %v587 = vshrl.u32 %v538, 16
        %v589 = vrot.slane %v587, 4
        %v590 = vshll.u32 %v538, 16
        %v592 = vrot.slane %v590, 5
        %v593 = vor.u32 %v589, %v592
        %v594 = vrot.slane %v593, 4
        %v596 = vshll.u32 %v562, 16
        %v598 = vrot.slane %v596, 5
        %v599 = vsel %vm571, %v594, %v598
        %v601 = vshrl.u32 %v539, 16
        %v603 = vrot.slane %v601, 4
        %v604 = vshll.u32 %v539, 16
        %v606 = vrot.slane %v604, 5
        %v607 = vor.u32 %v603, %v606
        %v608 = vrot.slane %v607, 4
        %v610 = vshll.u32 %v563, 16
        %v612 = vrot.slane %v610, 5
        %v613 = vsel %vm571, %v608, %v612
        %v615 = vshrl.u32 %v540, 16
        %v617 = vrot.slane %v615, 4
        %v618 = vshll.u32 %v540, 16
        %v620 = vrot.slane %v618, 5
        %v621 = vor.u32 %v617, %v620
        %v622 = vrot.slane %v621, 4
        %v624 = vshll.u32 %v564, 16
        %v626 = vrot.slane %v624, 5
        %v627 = vsel %vm571, %v622, %v626
        %v629 = vshrl.u32 %v541, 16
        %v631 = vrot.slane %v629, 4
        %v632 = vshll.u32 %v541, 16
        %v634 = vrot.slane %v632, 5
        %v635 = vor.u32 %v631, %v634
        %v636 = vrot.slane %v635, 4
        %v638 = vshll.u32 %v565, 16
        %v640 = vrot.slane %v638, 5
        %v641 = vsel %vm571, %v636, %v640
        %v643 = vshrl.u32 %v542, 16
        %v645 = vrot.slane %v643, 4
        %v646 = vshll.u32 %v542, 16
        %v648 = vrot.slane %v646, 5
        %v649 = vor.u32 %v645, %v648
        %v650 = vrot.slane %v649, 4
        %v652 = vshll.u32 %v566, 16
        %v654 = vrot.slane %v652, 5
        %v655 = vsel %vm571, %v650, %v654
        %v657 = vshrl.u32 %v543, 16
        %v659 = vrot.slane %v657, 4
        %v660 = vshll.u32 %v543, 16
        %v662 = vrot.slane %v660, 5
        %v663 = vor.u32 %v659, %v662
        %v664 = vrot.slane %v663, 4
        %v666 = vshll.u32 %v567, 16
        %v668 = vrot.slane %v666, 5
        %v669 = vsel %vm571, %v664, %v668
        %v671 = vshrl.u32 %v544, 16
        %v673 = vrot.slane %v671, 4
        %v674 = vshll.u32 %v544, 16
        %v676 = vrot.slane %v674, 5
        %v677 = vor.u32 %v673, %v676
        %v678 = vrot.slane %v677, 4
        %v680 = vshll.u32 %v568, 16
        %v682 = vrot.slane %v680, 5
        %v683 = vsel %vm571, %v678, %v682
        %s684 = scalar_lea.vmem [#allocation6], 64
        %v685 = vld [vmem:[%s684] sm:$0xf]
        %v686 = vld [vmem:[%s684 + $0x4] sm:$0xf]
        %v687 = vld [vmem:[%s684 + $0x8] sm:$0xf]
        %v688 = vld [vmem:[%s684 + $0xc] sm:$0xf]
        %v689 = vld [vmem:[%s684 + $0x10] sm:$0xf]
        %v690 = vld [vmem:[%s684 + $0x14] sm:$0xf]
        %v691 = vld [vmem:[%s684 + $0x18] sm:$0xf]
        %v692 = vld [vmem:[%s684 + $0x1c] sm:$0xf]
        %v693 = vld [vmem:[%s684 + $0x20] sm:$0xf]
        %v694 = vld [vmem:[%s684 + $0x24] sm:$0xf]
        %v695 = vld [vmem:[%s684 + $0x28] sm:$0xf]
        %v696 = vld [vmem:[%s684 + $0x2c] sm:$0xf]
        %v697 = vld [vmem:[%s684 + $0x30] sm:$0xf]
        %v698 = vld [vmem:[%s684 + $0x34] sm:$0xf]
        %v699 = vld [vmem:[%s684 + $0x38] sm:$0xf]
        %v700 = vld [vmem:[%s684 + $0x3c] sm:$0xf]
        %v701 = vunpack.c.l.b16 %v585
        %v702 = vunpack.c.l.b16 %v599
        %v703 = vunpack.c.l.b16 %v613
        %v704 = vunpack.c.l.b16 %v627
        %v705 = vunpack.c.l.b16 %v641
        %v706 = vunpack.c.l.b16 %v655
        %v707 = vunpack.c.l.b16 %v669
        %v708 = vunpack.c.l.b16 %v683
        %v709 = vpack.c.b16 %v702, %v701
        %v710 = vpack.c.b16 %v704, %v703
        %v711 = vpack.c.b16 %v706, %v705
        %v712 = vpack.c.b16 %v708, %v707
        %v733 = vunpack.c.l.b16 %v685
        %v734 = vunpack.c.l.b16 %v686
        %v735 = vunpack.c.l.b16 %v687
        %v736 = vunpack.c.l.b16 %v688
        %v737 = vunpack.c.l.b16 %v689
        %v738 = vunpack.c.l.b16 %v690
        %v739 = vunpack.c.l.b16 %v691
        %v740 = vunpack.c.l.b16 %v692
        %v741 = vunpack.c.l.b16 %v693
        %v742 = vunpack.c.l.b16 %v694
        %v743 = vunpack.c.l.b16 %v695
        %v744 = vunpack.c.l.b16 %v696
        %v745 = vunpack.c.l.b16 %v697
        %v746 = vunpack.c.l.b16 %v698
        %v747 = vunpack.c.l.b16 %v699
        %v748 = vunpack.c.l.b16 %v700
        %v749 = vpack.c.b16 %v734, %v733
        %v750 = vpack.c.b16 %v736, %v735
        %v751 = vpack.c.b16 %v738, %v737
        %v752 = vpack.c.b16 %v740, %v739
        %v753 = vpack.c.b16 %v742, %v741
        %v754 = vpack.c.b16 %v744, %v743
        %v755 = vpack.c.b16 %v746, %v745
        %v756 = vpack.c.b16 %v748, %v747
        %765 = vmatprep.subr.bf16.mxu0 0
        %766 = vmatpush1.bf16.msra.mxu0 %v756
        %767 = vmatprep.subr.bf16.mxu0 0
        %768 = vmatpush1.bf16.msra.mxu0 %v755
        %769 = vmatprep.subr.bf16.mxu0 0
        %770 = vmatpush1.bf16.msra.mxu0 %v754
        %771 = vmatprep.subr.bf16.mxu0 0
        %772 = vmatpush1.bf16.msra.mxu0 %v753
        %773 = vmatprep.subr.bf16.mxu0 0
        %774 = vmatpush1.bf16.msra.mxu0 %v752
        %775 = vmatprep.subr.bf16.mxu0 0
        %776 = vmatpush1.bf16.msra.mxu0 %v751
        %777 = vmatprep.subr.bf16.mxu0 0
        %778 = vmatpush1.bf16.msra.mxu0 %v750
        %779 = vmatprep.subr.bf16.mxu0 0
        %780 = vmatpush1.bf16.msra.mxu0 %v749
        %781 = vmatprep.subr.bf16.mxu0 0
        %782 = vmatpush2.bf16.msra.mxu0 0
        %783 = vmatprep.subr.bf16.mxu0 0
        %784 = vmatpush2.bf16.msra.mxu0 0
        %785 = vmatprep.subr.bf16.mxu0 0
        %786 = vmatpush2.bf16.msra.mxu0 0
        %787 = vmatprep.subr.bf16.mxu0 0
        %788 = vmatpush2.bf16.msra.mxu0 0
        %789 = vmatprep.subr.bf16.mxu0 0
        %790 = vmatpush2.bf16.msra.mxu0 0
        %791 = vmatprep.subr.bf16.mxu0 0
        %792 = vmatpush2.bf16.msra.mxu0 0
        %793 = vmatprep.subr.bf16.mxu0 0
        %794 = vmatpush2.bf16.msra.mxu0 0
        %795 = vmatprep.subr.bf16.mxu0 0
        %796 = vmatpush2.bf16.msra.mxu0 0
        %797 = vmatprep.mubr.bf16.mxu0 0
        %798 = vmatmul.mubr.bf16.gmra.mxu0 %v709
        %v799 = vpop.f32.mrf.mxu0
        %v800 = vadd.f32 0.0, %v799
        %v801 = vpop.f32.mrf.mxu0
        %v802 = vpop.f32.mrf.mxu0
        %v803 = vadd.f32 0.0, %v802
        %v804 = vpop.f32.mrf.mxu0
        %805 = vmatprep.mubr.bf16.mxu0 0
        %806 = vmatmul.mubr.bf16.gmra.mxu0 %v710
        %v807 = vpop.f32.mrf.mxu0
        %v808 = vadd.f32 0.0, %v807
        %v809 = vpop.f32.mrf.mxu0
        %v810 = vpop.f32.mrf.mxu0
        %v811 = vadd.f32 0.0, %v810
        %v812 = vpop.f32.mrf.mxu0
        %813 = vmatprep.mubr.bf16.mxu0 0
        %814 = vmatmul.mubr.bf16.gmra.mxu0 %v711
        %v815 = vpop.f32.mrf.mxu0
        %v816 = vadd.f32 0.0, %v815
        %v817 = vpop.f32.mrf.mxu0
        %v818 = vpop.f32.mrf.mxu0
        %v819 = vadd.f32 0.0, %v818
        %v820 = vpop.f32.mrf.mxu0
        %821 = vmatprep.mubr.bf16.mxu0 0
        %822 = vmatmul.mubr.bf16.gmra.mxu0 %v712
        %v823 = vpop.f32.mrf.mxu0
        %v824 = vadd.f32 0.0, %v823
        %v825 = vpop.f32.mrf.mxu0
        %v826 = vpop.f32.mrf.mxu0
        %v827 = vadd.f32 0.0, %v826
        %v828 = vpop.f32.mrf.mxu0
        %829 = vdwg.mxu0
        %v838 = vunpack.c.l.b16 %v537
        %v839 = vunpack.c.l.b16 %v538
        %v840 = vunpack.c.l.b16 %v539
        %v841 = vunpack.c.l.b16 %v540
        %v842 = vunpack.c.l.b16 %v541
        %v843 = vunpack.c.l.b16 %v542
        %v844 = vunpack.c.l.b16 %v543
        %v845 = vunpack.c.l.b16 %v544
        %v846 = vpack.c.b16 %v839, %v838
        %v847 = vpack.c.b16 %v841, %v840
        %v848 = vpack.c.b16 %v843, %v842
        %v849 = vpack.c.b16 %v845, %v844
        %v870 = vunpack.c.l.b16 %v545
        %v871 = vunpack.c.l.b16 %v546
        %v872 = vunpack.c.l.b16 %v547
        %v873 = vunpack.c.l.b16 %v548
        %v874 = vunpack.c.l.b16 %v549
        %v875 = vunpack.c.l.b16 %v550
        %v876 = vunpack.c.l.b16 %v551
        %v877 = vunpack.c.l.b16 %v552
        %v878 = vunpack.c.l.b16 %v553
        %v879 = vunpack.c.l.b16 %v554
        %v880 = vunpack.c.l.b16 %v555
        %v881 = vunpack.c.l.b16 %v556
        %v882 = vunpack.c.l.b16 %v557
        %v883 = vunpack.c.l.b16 %v558
        %v884 = vunpack.c.l.b16 %v559
        %v885 = vunpack.c.l.b16 %v560
        %v886 = vpack.c.b16 %v871, %v870
        %v887 = vpack.c.b16 %v873, %v872
        %v888 = vpack.c.b16 %v875, %v874
        %v889 = vpack.c.b16 %v877, %v876
        %v890 = vpack.c.b16 %v879, %v878
        %v891 = vpack.c.b16 %v881, %v880
        %v892 = vpack.c.b16 %v883, %v882
        %v893 = vpack.c.b16 %v885, %v884
        %902 = vmatprep.subr.bf16.mxu0 0
        %903 = vmatpush1.bf16.msra.mxu0 %v893
        %904 = vmatprep.subr.bf16.mxu0 0
        %905 = vmatpush1.bf16.msra.mxu0 %v892
        %906 = vmatprep.subr.bf16.mxu0 0
        %907 = vmatpush1.bf16.msra.mxu0 %v891
        %908 = vmatprep.subr.bf16.mxu0 0
        %909 = vmatpush1.bf16.msra.mxu0 %v890
        %910 = vmatprep.subr.bf16.mxu0 0
        %911 = vmatpush1.bf16.msra.mxu0 %v889
        %912 = vmatprep.subr.bf16.mxu0 0
        %913 = vmatpush1.bf16.msra.mxu0 %v888
        %914 = vmatprep.subr.bf16.mxu0 0
        %915 = vmatpush1.bf16.msra.mxu0 %v887
        %916 = vmatprep.subr.bf16.mxu0 0
        %917 = vmatpush1.bf16.msra.mxu0 %v886
        %918 = vmatprep.subr.bf16.mxu0 0
        %919 = vmatpush2.bf16.msra.mxu0 0
        %920 = vmatprep.subr.bf16.mxu0 0
        %921 = vmatpush2.bf16.msra.mxu0 0
        %922 = vmatprep.subr.bf16.mxu0 0
        %923 = vmatpush2.bf16.msra.mxu0 0
        %924 = vmatprep.subr.bf16.mxu0 0
        %925 = vmatpush2.bf16.msra.mxu0 0
        %926 = vmatprep.subr.bf16.mxu0 0
        %927 = vmatpush2.bf16.msra.mxu0 0
        %928 = vmatprep.subr.bf16.mxu0 0
        %929 = vmatpush2.bf16.msra.mxu0 0
        %930 = vmatprep.subr.bf16.mxu0 0
        %931 = vmatpush2.bf16.msra.mxu0 0
        %932 = vmatprep.subr.bf16.mxu0 0
        %933 = vmatpush2.bf16.msra.mxu0 0
        %934 = vmatprep.mubr.bf16.mxu0 0
        %935 = vmatmul.mubr.bf16.gmra.mxu0 %v846
        %v936 = vpop.f32.mrf.mxu0
        %v937 = vadd.f32 %v800, %v936
        %v938 = vpop.f32.mrf.mxu0
        %v939 = vpop.f32.mrf.mxu0
        %v940 = vadd.f32 %v803, %v939
        %v941 = vpop.f32.mrf.mxu0
        %942 = vmatprep.mubr.bf16.mxu0 0
        %943 = vmatmul.mubr.bf16.gmra.mxu0 %v847
        %v944 = vpop.f32.mrf.mxu0
        %v945 = vadd.f32 %v808, %v944
        %v946 = vpop.f32.mrf.mxu0
        %v947 = vpop.f32.mrf.mxu0
        %v948 = vadd.f32 %v811, %v947
        %v949 = vpop.f32.mrf.mxu0
        %950 = vmatprep.mubr.bf16.mxu0 0
        %951 = vmatmul.mubr.bf16.gmra.mxu0 %v848
        %v952 = vpop.f32.mrf.mxu0
        %v953 = vadd.f32 %v816, %v952
        %v954 = vpop.f32.mrf.mxu0
        %v955 = vpop.f32.mrf.mxu0
        %v956 = vadd.f32 %v819, %v955
        %v957 = vpop.f32.mrf.mxu0
        %958 = vmatprep.mubr.bf16.mxu0 0
        %959 = vmatmul.mubr.bf16.gmra.mxu0 %v849
        %v960 = vpop.f32.mrf.mxu0
        %v961 = vadd.f32 %v824, %v960
        %v962 = vpop.f32.mrf.mxu0
        %v963 = vpop.f32.mrf.mxu0
        %v964 = vadd.f32 %v827, %v963
        %v965 = vpop.f32.mrf.mxu0
        %966 = vdwg.mxu0
        %v967 = vld [vmem:[#allocation2] sm:$0xe]
        %v968 = vld [vmem:[#allocation2 + $0x8] sm:$0xe]
        %v969 = vld [vmem:[#allocation2 + $0x10] sm:$0xe]
        %v970 = vld [vmem:[#allocation2 + $0x18] sm:$0xe]
        %v971 = vld [vmem:[#allocation2 + $0x20] sm:$0xe]
        %v972 = vld [vmem:[#allocation2 + $0x28] sm:$0xe]
        %v973 = vld [vmem:[#allocation2 + $0x30] sm:$0xe]
        %v974 = vld [vmem:[#allocation2 + $0x38] sm:$0xe]
        %vm991 = vcmask 1042432
        %vm992 = vcmask 1046532
        %vm993 = vmor %vm991, %vm992
        %v994 = vrot.slane %v967, 5
        %v995 = vrot.slane %v994, 4
        %v996 = vrot.slane %v561, 5
        %v997 = vsel %vm993, %v995, %v996
        %v998 = vrot.slane %v968, 5
        %v999 = vrot.slane %v998, 4
        %v1000 = vrot.slane %v562, 5
        %v1001 = vsel %vm993, %v999, %v1000
        %v1002 = vrot.slane %v969, 5
        %v1003 = vrot.slane %v1002, 4
        %v1004 = vrot.slane %v563, 5
        %v1005 = vsel %vm993, %v1003, %v1004
        %v1006 = vrot.slane %v970, 5
        %v1007 = vrot.slane %v1006, 4
        %v1008 = vrot.slane %v564, 5
        %v1009 = vsel %vm993, %v1007, %v1008
        %v1010 = vrot.slane %v971, 5
        %v1011 = vrot.slane %v1010, 4
        %v1012 = vrot.slane %v565, 5
        %v1013 = vsel %vm993, %v1011, %v1012
        %v1014 = vrot.slane %v972, 5
        %v1015 = vrot.slane %v1014, 4
        %v1016 = vrot.slane %v566, 5
        %v1017 = vsel %vm993, %v1015, %v1016
        %v1018 = vrot.slane %v973, 5
        %v1019 = vrot.slane %v1018, 4
        %v1020 = vrot.slane %v567, 5
        %v1021 = vsel %vm993, %v1019, %v1020
        %v1022 = vrot.slane %v974, 5
        %v1023 = vrot.slane %v1022, 4
        %v1024 = vrot.slane %v568, 5
        %v1025 = vsel %vm993, %v1023, %v1024
        %s1026 = scalar_lea.vmem [#allocation6], 128
        %v1027 = vld [vmem:[%s1026] sm:$0xf]
        %v1028 = vld [vmem:[%s1026 + $0x4] sm:$0xf]
        %v1029 = vld [vmem:[%s1026 + $0x8] sm:$0xf]
        %v1030 = vld [vmem:[%s1026 + $0xc] sm:$0xf]
        %v1031 = vld [vmem:[%s1026 + $0x10] sm:$0xf]
        %v1032 = vld [vmem:[%s1026 + $0x14] sm:$0xf]
        %v1033 = vld [vmem:[%s1026 + $0x18] sm:$0xf]
        %v1034 = vld [vmem:[%s1026 + $0x1c] sm:$0xf]
        %v1035 = vld [vmem:[%s1026 + $0x20] sm:$0xf]
        %v1036 = vld [vmem:[%s1026 + $0x24] sm:$0xf]
        %v1037 = vld [vmem:[%s1026 + $0x28] sm:$0xf]
        %v1038 = vld [vmem:[%s1026 + $0x2c] sm:$0xf]
        %v1039 = vld [vmem:[%s1026 + $0x30] sm:$0xf]
        %v1040 = vld [vmem:[%s1026 + $0x34] sm:$0xf]
        %v1041 = vld [vmem:[%s1026 + $0x38] sm:$0xf]
        %v1042 = vld [vmem:[%s1026 + $0x3c] sm:$0xf]
        %v1043 = vunpack.c.l.b16 %v997
        %v1044 = vunpack.c.l.b16 %v1001
        %v1045 = vunpack.c.l.b16 %v1005
        %v1046 = vunpack.c.l.b16 %v1009
        %v1047 = vunpack.c.l.b16 %v1013
        %v1048 = vunpack.c.l.b16 %v1017
        %v1049 = vunpack.c.l.b16 %v1021
        %v1050 = vunpack.c.l.b16 %v1025
        %v1051 = vpack.c.b16 %v1044, %v1043
        %v1052 = vpack.c.b16 %v1046, %v1045
        %v1053 = vpack.c.b16 %v1048, %v1047
        %v1054 = vpack.c.b16 %v1050, %v1049
        %v1075 = vunpack.c.l.b16 %v1027
        %v1076 = vunpack.c.l.b16 %v1028
        %v1077 = vunpack.c.l.b16 %v1029
        %v1078 = vunpack.c.l.b16 %v1030
        %v1079 = vunpack.c.l.b16 %v1031
        %v1080 = vunpack.c.l.b16 %v1032
        %v1081 = vunpack.c.l.b16 %v1033
        %v1082 = vunpack.c.l.b16 %v1034
        %v1083 = vunpack.c.l.b16 %v1035
        %v1084 = vunpack.c.l.b16 %v1036
        %v1085 = vunpack.c.l.b16 %v1037
        %v1086 = vunpack.c.l.b16 %v1038
        %v1087 = vunpack.c.l.b16 %v1039
        %v1088 = vunpack.c.l.b16 %v1040
        %v1089 = vunpack.c.l.b16 %v1041
        %v1090 = vunpack.c.l.b16 %v1042
        %v1091 = vpack.c.b16 %v1076, %v1075
        %v1092 = vpack.c.b16 %v1078, %v1077
        %v1093 = vpack.c.b16 %v1080, %v1079
        %v1094 = vpack.c.b16 %v1082, %v1081
        %v1095 = vpack.c.b16 %v1084, %v1083
        %v1096 = vpack.c.b16 %v1086, %v1085
        %v1097 = vpack.c.b16 %v1088, %v1087
        %v1098 = vpack.c.b16 %v1090, %v1089
        %1107 = vmatprep.subr.bf16.mxu0 0
        %1108 = vmatpush1.bf16.msra.mxu0 %v1098
        %1109 = vmatprep.subr.bf16.mxu0 0
        %1110 = vmatpush1.bf16.msra.mxu0 %v1097
        %1111 = vmatprep.subr.bf16.mxu0 0
        %1112 = vmatpush1.bf16.msra.mxu0 %v1096
        %1113 = vmatprep.subr.bf16.mxu0 0
        %1114 = vmatpush1.bf16.msra.mxu0 %v1095
        %1115 = vmatprep.subr.bf16.mxu0 0
        %1116 = vmatpush1.bf16.msra.mxu0 %v1094
        %1117 = vmatprep.subr.bf16.mxu0 0
        %1118 = vmatpush1.bf16.msra.mxu0 %v1093
        %1119 = vmatprep.subr.bf16.mxu0 0
        %1120 = vmatpush1.bf16.msra.mxu0 %v1092
        %1121 = vmatprep.subr.bf16.mxu0 0
        %1122 = vmatpush1.bf16.msra.mxu0 %v1091
        %1123 = vmatprep.subr.bf16.mxu0 0
        %1124 = vmatpush2.bf16.msra.mxu0 0
        %1125 = vmatprep.subr.bf16.mxu0 0
        %1126 = vmatpush2.bf16.msra.mxu0 0
        %1127 = vmatprep.subr.bf16.mxu0 0
        %1128 = vmatpush2.bf16.msra.mxu0 0
        %1129 = vmatprep.subr.bf16.mxu0 0
        %1130 = vmatpush2.bf16.msra.mxu0 0
        %1131 = vmatprep.subr.bf16.mxu0 0
        %1132 = vmatpush2.bf16.msra.mxu0 0
        %1133 = vmatprep.subr.bf16.mxu0 0
        %1134 = vmatpush2.bf16.msra.mxu0 0
        %1135 = vmatprep.subr.bf16.mxu0 0
        %1136 = vmatpush2.bf16.msra.mxu0 0
        %1137 = vmatprep.subr.bf16.mxu0 0
        %1138 = vmatpush2.bf16.msra.mxu0 0
        %1139 = vmatprep.mubr.bf16.mxu0 0
        %1140 = vmatmul.mubr.bf16.gmra.mxu0 %v1051
        %v1141 = vpop.f32.mrf.mxu0
        %v1142 = vadd.f32 0.0, %v1141
        %v1143 = vpop.f32.mrf.mxu0
        %v1144 = vpop.f32.mrf.mxu0
        %v1145 = vadd.f32 0.0, %v1144
        %v1146 = vpop.f32.mrf.mxu0
        %1147 = vmatprep.mubr.bf16.mxu0 0
        %1148 = vmatmul.mubr.bf16.gmra.mxu0 %v1052
        %v1149 = vpop.f32.mrf.mxu0
        %v1150 = vadd.f32 0.0, %v1149
        %v1151 = vpop.f32.mrf.mxu0
        %v1152 = vpop.f32.mrf.mxu0
        %v1153 = vadd.f32 0.0, %v1152
        %v1154 = vpop.f32.mrf.mxu0
        %1155 = vmatprep.mubr.bf16.mxu0 0
        %1156 = vmatmul.mubr.bf16.gmra.mxu0 %v1053
        %v1157 = vpop.f32.mrf.mxu0
        %v1158 = vadd.f32 0.0, %v1157
        %v1159 = vpop.f32.mrf.mxu0
        %v1160 = vpop.f32.mrf.mxu0
        %v1161 = vadd.f32 0.0, %v1160
        %v1162 = vpop.f32.mrf.mxu0
        %1163 = vmatprep.mubr.bf16.mxu0 0
        %1164 = vmatmul.mubr.bf16.gmra.mxu0 %v1054
        %v1165 = vpop.f32.mrf.mxu0
        %v1166 = vadd.f32 0.0, %v1165
        %v1167 = vpop.f32.mrf.mxu0
        %v1168 = vpop.f32.mrf.mxu0
        %v1169 = vadd.f32 0.0, %v1168
        %v1170 = vpop.f32.mrf.mxu0
        %1171 = vdwg.mxu0
        %v1172 = vadd.f32 %v937, %v1142
        %v1173 = vadd.f32 %v940, %v1145
        %v1174 = vadd.f32 %v945, %v1150
        %v1175 = vadd.f32 %v948, %v1153
        %v1176 = vadd.f32 %v953, %v1158
        %v1177 = vadd.f32 %v956, %v1161
        %v1178 = vadd.f32 %v961, %v1166
        %v1179 = vadd.f32 %v964, %v1169
        %v1180 = vld [vmem:[%s482] sm:$0xf]
        %v1181 = vld [vmem:[%s482 + $0x8] sm:$0xf]
        %v1182 = vld [vmem:[%s482 + $0x10] sm:$0xf]
        %v1183 = vld [vmem:[%s482 + $0x18] sm:$0xf]
        %v1184 = vld [vmem:[%s482 + $0x20] sm:$0xf]
        %v1185 = vld [vmem:[%s482 + $0x28] sm:$0xf]
        %v1186 = vld [vmem:[%s482 + $0x30] sm:$0xf]
        %v1187 = vld [vmem:[%s482 + $0x38] sm:$0xf]
        %s1188 = scalar_lea.vmem [#allocation6], 192
        %v1189 = vld [vmem:[%s1188] sm:$0xf]
        %v1190 = vld [vmem:[%s1188 + $0x4] sm:$0xf]
        %v1191 = vld [vmem:[%s1188 + $0x8] sm:$0xf]
        %v1192 = vld [vmem:[%s1188 + $0xc] sm:$0xf]
        %v1193 = vld [vmem:[%s1188 + $0x10] sm:$0xf]
        %v1194 = vld [vmem:[%s1188 + $0x14] sm:$0xf]
        %v1195 = vld [vmem:[%s1188 + $0x18] sm:$0xf]
        %v1196 = vld [vmem:[%s1188 + $0x1c] sm:$0xf]
        %v1197 = vld [vmem:[%s1188 + $0x20] sm:$0xf]
        %v1198 = vld [vmem:[%s1188 + $0x24] sm:$0xf]
        %v1199 = vld [vmem:[%s1188 + $0x28] sm:$0xf]
        %v1200 = vld [vmem:[%s1188 + $0x2c] sm:$0xf]
        %v1201 = vld [vmem:[%s1188 + $0x30] sm:$0xf]
        %v1202 = vld [vmem:[%s1188 + $0x34] sm:$0xf]
        %v1203 = vld [vmem:[%s1188 + $0x38] sm:$0xf]
        %v1204 = vld [vmem:[%s1188 + $0x3c] sm:$0xf]
        %v1213 = vunpack.c.l.b16 %v1180
        %v1214 = vunpack.c.l.b16 %v1181
        %v1215 = vunpack.c.l.b16 %v1182
        %v1216 = vunpack.c.l.b16 %v1183
        %v1217 = vunpack.c.l.b16 %v1184
        %v1218 = vunpack.c.l.b16 %v1185
        %v1219 = vunpack.c.l.b16 %v1186
        %v1220 = vunpack.c.l.b16 %v1187
        %v1221 = vpack.c.b16 %v1214, %v1213
        %v1222 = vpack.c.b16 %v1216, %v1215
        %v1223 = vpack.c.b16 %v1218, %v1217
        %v1224 = vpack.c.b16 %v1220, %v1219
        %v1245 = vunpack.c.l.b16 %v1189
        %v1246 = vunpack.c.l.b16 %v1190
        %v1247 = vunpack.c.l.b16 %v1191
        %v1248 = vunpack.c.l.b16 %v1192
        %v1249 = vunpack.c.l.b16 %v1193
        %v1250 = vunpack.c.l.b16 %v1194
        %v1251 = vunpack.c.l.b16 %v1195
        %v1252 = vunpack.c.l.b16 %v1196
        %v1253 = vunpack.c.l.b16 %v1197
        %v1254 = vunpack.c.l.b16 %v1198
        %v1255 = vunpack.c.l.b16 %v1199
        %v1256 = vunpack.c.l.b16 %v1200
        %v1257 = vunpack.c.l.b16 %v1201
        %v1258 = vunpack.c.l.b16 %v1202
        %v1259 = vunpack.c.l.b16 %v1203
        %v1260 = vunpack.c.l.b16 %v1204
        %v1261 = vpack.c.b16 %v1246, %v1245
        %v1262 = vpack.c.b16 %v1248, %v1247
        %v1263 = vpack.c.b16 %v1250, %v1249
        %v1264 = vpack.c.b16 %v1252, %v1251
        %v1265 = vpack.c.b16 %v1254, %v1253
        %v1266 = vpack.c.b16 %v1256, %v1255
        %v1267 = vpack.c.b16 %v1258, %v1257
        %v1268 = vpack.c.b16 %v1260, %v1259
        %1277 = vmatprep.subr.bf16.mxu0 0
        %1278 = vmatpush1.bf16.msra.mxu0 %v1268
        %1279 = vmatprep.subr.bf16.mxu0 0
        %1280 = vmatpush1.bf16.msra.mxu0 %v1267
        %1281 = vmatprep.subr.bf16.mxu0 0
        %1282 = vmatpush1.bf16.msra.mxu0 %v1266
        %1283 = vmatprep.subr.bf16.mxu0 0
        %1284 = vmatpush1.bf16.msra.mxu0 %v1265
        %1285 = vmatprep.subr.bf16.mxu0 0
        %1286 = vmatpush1.bf16.msra.mxu0 %v1264
        %1287 = vmatprep.subr.bf16.mxu0 0
        %1288 = vmatpush1.bf16.msra.mxu0 %v1263
        %1289 = vmatprep.subr.bf16.mxu0 0
        %1290 = vmatpush1.bf16.msra.mxu0 %v1262
        %1291 = vmatprep.subr.bf16.mxu0 0
        %1292 = vmatpush1.bf16.msra.mxu0 %v1261
        %1293 = vmatprep.subr.bf16.mxu0 0
        %1294 = vmatpush2.bf16.msra.mxu0 0
        %1295 = vmatprep.subr.bf16.mxu0 0
        %1296 = vmatpush2.bf16.msra.mxu0 0
        %1297 = vmatprep.subr.bf16.mxu0 0
        %1298 = vmatpush2.bf16.msra.mxu0 0
        %1299 = vmatprep.subr.bf16.mxu0 0
        %1300 = vmatpush2.bf16.msra.mxu0 0
        %1301 = vmatprep.subr.bf16.mxu0 0
        %1302 = vmatpush2.bf16.msra.mxu0 0
        %1303 = vmatprep.subr.bf16.mxu0 0
        %1304 = vmatpush2.bf16.msra.mxu0 0
        %1305 = vmatprep.subr.bf16.mxu0 0
        %1306 = vmatpush2.bf16.msra.mxu0 0
        %1307 = vmatprep.subr.bf16.mxu0 0
        %1308 = vmatpush2.bf16.msra.mxu0 0
        %1309 = vmatprep.mubr.bf16.mxu0 0
        %1310 = vmatmul.mubr.bf16.gmra.mxu0 %v1221
        %v1311 = vpop.f32.mrf.mxu0
        %v1312 = vadd.f32 0.0, %v1311
        %v1313 = vpop.f32.mrf.mxu0
        %v1314 = vpop.f32.mrf.mxu0
        %v1315 = vadd.f32 0.0, %v1314
        %v1316 = vpop.f32.mrf.mxu0
        %1317 = vmatprep.mubr.bf16.mxu0 0
        %1318 = vmatmul.mubr.bf16.gmra.mxu0 %v1222
        %v1319 = vpop.f32.mrf.mxu0
        %v1320 = vadd.f32 0.0, %v1319
        %v1321 = vpop.f32.mrf.mxu0
        %v1322 = vpop.f32.mrf.mxu0
        %v1323 = vadd.f32 0.0, %v1322
        %v1324 = vpop.f32.mrf.mxu0
        %1325 = vmatprep.mubr.bf16.mxu0 0
        %1326 = vmatmul.mubr.bf16.gmra.mxu0 %v1223
        %v1327 = vpop.f32.mrf.mxu0
        %v1328 = vadd.f32 0.0, %v1327
        %v1329 = vpop.f32.mrf.mxu0
        %v1330 = vpop.f32.mrf.mxu0
        %v1331 = vadd.f32 0.0, %v1330
        %v1332 = vpop.f32.mrf.mxu0
        %1333 = vmatprep.mubr.bf16.mxu0 0
        %1334 = vmatmul.mubr.bf16.gmra.mxu0 %v1224
        %v1335 = vpop.f32.mrf.mxu0
        %v1336 = vadd.f32 0.0, %v1335
        %v1337 = vpop.f32.mrf.mxu0
        %v1338 = vpop.f32.mrf.mxu0
        %v1339 = vadd.f32 0.0, %v1338
        %v1340 = vpop.f32.mrf.mxu0
        %1341 = vdwg.mxu0
        %v1342 = vadd.f32 %v1172, %v1312
        %v1343 = vadd.f32 %v1173, %v1315
        %v1344 = vadd.f32 %v1174, %v1320
        %v1345 = vadd.f32 %v1175, %v1323
        %v1346 = vadd.f32 %v1176, %v1328
        %v1347 = vadd.f32 %v1177, %v1331
        %v1348 = vadd.f32 %v1178, %v1336
        %v1349 = vadd.f32 %v1179, %v1339
        %v1350 = vld [vmem:[%s482] sm:$0xf]
        %v1351 = vld [vmem:[%s482 + $0x4] sm:$0x1]
        %v1352 = vld [vmem:[%s482 + $0x8] sm:$0xf]
        %v1353 = vld [vmem:[%s482 + $0xc] sm:$0x1]
        %v1354 = vld [vmem:[%s482 + $0x10] sm:$0xf]
        %v1355 = vld [vmem:[%s482 + $0x14] sm:$0x1]
        %v1356 = vld [vmem:[%s482 + $0x18] sm:$0xf]
        %v1357 = vld [vmem:[%s482 + $0x1c] sm:$0x1]
        %v1358 = vld [vmem:[%s482 + $0x20] sm:$0xf]
        %v1359 = vld [vmem:[%s482 + $0x24] sm:$0x1]
        %v1360 = vld [vmem:[%s482 + $0x28] sm:$0xf]
        %v1361 = vld [vmem:[%s482 + $0x2c] sm:$0x1]
        %v1362 = vld [vmem:[%s482 + $0x30] sm:$0xf]
        %v1363 = vld [vmem:[%s482 + $0x34] sm:$0x1]
        %v1364 = vld [vmem:[%s482 + $0x38] sm:$0xf]
        %v1365 = vld [vmem:[%s482 + $0x3c] sm:$0x1]
        %v1367 = vshrl.u32 %v1350, 16
        %v1369 = vrot.slane %v1367, 4
        %v1370 = vshll.u32 %v1350, 16
        %v1372 = vrot.slane %v1370, 5
        %v1373 = vor.u32 %v1369, %v1372
        %v1374 = vrot.slane %v1373, 4
        %v1376 = vshll.u32 %v1351, 16
        %v1378 = vrot.slane %v1376, 5
        %v1379 = vsel %vm571, %v1374, %v1378
        %v1381 = vshrl.u32 %v1352, 16
        %v1383 = vrot.slane %v1381, 4
        %v1384 = vshll.u32 %v1352, 16
        %v1386 = vrot.slane %v1384, 5
        %v1387 = vor.u32 %v1383, %v1386
        %v1388 = vrot.slane %v1387, 4
        %v1390 = vshll.u32 %v1353, 16
        %v1392 = vrot.slane %v1390, 5
        %v1393 = vsel %vm571, %v1388, %v1392
        %v1395 = vshrl.u32 %v1354, 16
        %v1397 = vrot.slane %v1395, 4
        %v1398 = vshll.u32 %v1354, 16
        %v1400 = vrot.slane %v1398, 5
        %v1401 = vor.u32 %v1397, %v1400
        %v1402 = vrot.slane %v1401, 4
        %v1404 = vshll.u32 %v1355, 16
        %v1406 = vrot.slane %v1404, 5
        %v1407 = vsel %vm571, %v1402, %v1406
        %v1409 = vshrl.u32 %v1356, 16
        %v1411 = vrot.slane %v1409, 4
        %v1412 = vshll.u32 %v1356, 16
        %v1414 = vrot.slane %v1412, 5
        %v1415 = vor.u32 %v1411, %v1414
        %v1416 = vrot.slane %v1415, 4
        %v1418 = vshll.u32 %v1357, 16
        %v1420 = vrot.slane %v1418, 5
        %v1421 = vsel %vm571, %v1416, %v1420
        %v1423 = vshrl.u32 %v1358, 16
        %v1425 = vrot.slane %v1423, 4
        %v1426 = vshll.u32 %v1358, 16
        %v1428 = vrot.slane %v1426, 5
        %v1429 = vor.u32 %v1425, %v1428
        %v1430 = vrot.slane %v1429, 4
        %v1432 = vshll.u32 %v1359, 16
        %v1434 = vrot.slane %v1432, 5
        %v1435 = vsel %vm571, %v1430, %v1434
        %v1437 = vshrl.u32 %v1360, 16
        %v1439 = vrot.slane %v1437, 4
        %v1440 = vshll.u32 %v1360, 16
        %v1442 = vrot.slane %v1440, 5
        %v1443 = vor.u32 %v1439, %v1442
        %v1444 = vrot.slane %v1443, 4
        %v1446 = vshll.u32 %v1361, 16
        %v1448 = vrot.slane %v1446, 5
        %v1449 = vsel %vm571, %v1444, %v1448
        %v1451 = vshrl.u32 %v1362, 16
        %v1453 = vrot.slane %v1451, 4
        %v1454 = vshll.u32 %v1362, 16
        %v1456 = vrot.slane %v1454, 5
        %v1457 = vor.u32 %v1453, %v1456
        %v1458 = vrot.slane %v1457, 4
        %v1460 = vshll.u32 %v1363, 16
        %v1462 = vrot.slane %v1460, 5
        %v1463 = vsel %vm571, %v1458, %v1462
        %v1465 = vshrl.u32 %v1364, 16
        %v1467 = vrot.slane %v1465, 4
        %v1468 = vshll.u32 %v1364, 16
        %v1470 = vrot.slane %v1468, 5
        %v1471 = vor.u32 %v1467, %v1470
        %v1472 = vrot.slane %v1471, 4
        %v1474 = vshll.u32 %v1365, 16
        %v1476 = vrot.slane %v1474, 5
        %v1477 = vsel %vm571, %v1472, %v1476
        %s1478 = scalar_lea.vmem [#allocation6], 256
        %v1479 = vld [vmem:[%s1478] sm:$0xf]
        %v1480 = vld [vmem:[%s1478 + $0x4] sm:$0xf]
        %v1481 = vld [vmem:[%s1478 + $0x8] sm:$0xf]
        %v1482 = vld [vmem:[%s1478 + $0xc] sm:$0xf]
        %v1483 = vld [vmem:[%s1478 + $0x10] sm:$0xf]
        %v1484 = vld [vmem:[%s1478 + $0x14] sm:$0xf]
        %v1485 = vld [vmem:[%s1478 + $0x18] sm:$0xf]
        %v1486 = vld [vmem:[%s1478 + $0x1c] sm:$0xf]
        %v1487 = vld [vmem:[%s1478 + $0x20] sm:$0xf]
        %v1488 = vld [vmem:[%s1478 + $0x24] sm:$0xf]
        %v1489 = vld [vmem:[%s1478 + $0x28] sm:$0xf]
        %v1490 = vld [vmem:[%s1478 + $0x2c] sm:$0xf]
        %v1491 = vld [vmem:[%s1478 + $0x30] sm:$0xf]
        %v1492 = vld [vmem:[%s1478 + $0x34] sm:$0xf]
        %v1493 = vld [vmem:[%s1478 + $0x38] sm:$0xf]
        %v1494 = vld [vmem:[%s1478 + $0x3c] sm:$0xf]
        %v1495 = vunpack.c.l.b16 %v1379
        %v1496 = vunpack.c.l.b16 %v1393
        %v1497 = vunpack.c.l.b16 %v1407
        %v1498 = vunpack.c.l.b16 %v1421
        %v1499 = vunpack.c.l.b16 %v1435
        %v1500 = vunpack.c.l.b16 %v1449
        %v1501 = vunpack.c.l.b16 %v1463
        %v1502 = vunpack.c.l.b16 %v1477
        %v1503 = vpack.c.b16 %v1496, %v1495
        %v1504 = vpack.c.b16 %v1498, %v1497
        %v1505 = vpack.c.b16 %v1500, %v1499
        %v1506 = vpack.c.b16 %v1502, %v1501
        %v1527 = vunpack.c.l.b16 %v1479
        %v1528 = vunpack.c.l.b16 %v1480
        %v1529 = vunpack.c.l.b16 %v1481
        %v1530 = vunpack.c.l.b16 %v1482
        %v1531 = vunpack.c.l.b16 %v1483
        %v1532 = vunpack.c.l.b16 %v1484
        %v1533 = vunpack.c.l.b16 %v1485
        %v1534 = vunpack.c.l.b16 %v1486
        %v1535 = vunpack.c.l.b16 %v1487
        %v1536 = vunpack.c.l.b16 %v1488
        %v1537 = vunpack.c.l.b16 %v1489
        %v1538 = vunpack.c.l.b16 %v1490
        %v1539 = vunpack.c.l.b16 %v1491
        %v1540 = vunpack.c.l.b16 %v1492
        %v1541 = vunpack.c.l.b16 %v1493
        %v1542 = vunpack.c.l.b16 %v1494
        %v1543 = vpack.c.b16 %v1528, %v1527
        %v1544 = vpack.c.b16 %v1530, %v1529
        %v1545 = vpack.c.b16 %v1532, %v1531
        %v1546 = vpack.c.b16 %v1534, %v1533
        %v1547 = vpack.c.b16 %v1536, %v1535
        %v1548 = vpack.c.b16 %v1538, %v1537
        %v1549 = vpack.c.b16 %v1540, %v1539
        %v1550 = vpack.c.b16 %v1542, %v1541
        %1559 = vmatprep.subr.bf16.mxu0 0
        %1560 = vmatpush1.bf16.msra.mxu0 %v1550
        %1561 = vmatprep.subr.bf16.mxu0 0
        %1562 = vmatpush1.bf16.msra.mxu0 %v1549
        %1563 = vmatprep.subr.bf16.mxu0 0
        %1564 = vmatpush1.bf16.msra.mxu0 %v1548
        %1565 = vmatprep.subr.bf16.mxu0 0
        %1566 = vmatpush1.bf16.msra.mxu0 %v1547
        %1567 = vmatprep.subr.bf16.mxu0 0
        %1568 = vmatpush1.bf16.msra.mxu0 %v1546
        %1569 = vmatprep.subr.bf16.mxu0 0
        %1570 = vmatpush1.bf16.msra.mxu0 %v1545
        %1571 = vmatprep.subr.bf16.mxu0 0
        %1572 = vmatpush1.bf16.msra.mxu0 %v1544
        %1573 = vmatprep.subr.bf16.mxu0 0
        %1574 = vmatpush1.bf16.msra.mxu0 %v1543
        %1575 = vmatprep.subr.bf16.mxu0 0
        %1576 = vmatpush2.bf16.msra.mxu0 0
        %1577 = vmatprep.subr.bf16.mxu0 0
        %1578 = vmatpush2.bf16.msra.mxu0 0
        %1579 = vmatprep.subr.bf16.mxu0 0
        %1580 = vmatpush2.bf16.msra.mxu0 0
        %1581 = vmatprep.subr.bf16.mxu0 0
        %1582 = vmatpush2.bf16.msra.mxu0 0
        %1583 = vmatprep.subr.bf16.mxu0 0
        %1584 = vmatpush2.bf16.msra.mxu0 0
        %1585 = vmatprep.subr.bf16.mxu0 0
        %1586 = vmatpush2.bf16.msra.mxu0 0
        %1587 = vmatprep.subr.bf16.mxu0 0
        %1588 = vmatpush2.bf16.msra.mxu0 0
        %1589 = vmatprep.subr.bf16.mxu0 0
        %1590 = vmatpush2.bf16.msra.mxu0 0
        %1591 = vmatprep.mubr.bf16.mxu0 0
        %1592 = vmatmul.mubr.bf16.gmra.mxu0 %v1503
        %v1593 = vpop.f32.mrf.mxu0
        %v1594 = vadd.f32 0.0, %v1593
        %v1595 = vpop.f32.mrf.mxu0
        %v1596 = vpop.f32.mrf.mxu0
        %v1597 = vadd.f32 0.0, %v1596
        %v1598 = vpop.f32.mrf.mxu0
        %1599 = vmatprep.mubr.bf16.mxu0 0
        %1600 = vmatmul.mubr.bf16.gmra.mxu0 %v1504
        %v1601 = vpop.f32.mrf.mxu0
        %v1602 = vadd.f32 0.0, %v1601
        %v1603 = vpop.f32.mrf.mxu0
        %v1604 = vpop.f32.mrf.mxu0
        %v1605 = vadd.f32 0.0, %v1604
        %v1606 = vpop.f32.mrf.mxu0
        %1607 = vmatprep.mubr.bf16.mxu0 0
        %1608 = vmatmul.mubr.bf16.gmra.mxu0 %v1505
        %v1609 = vpop.f32.mrf.mxu0
        %v1610 = vadd.f32 0.0, %v1609
        %v1611 = vpop.f32.mrf.mxu0
        %v1612 = vpop.f32.mrf.mxu0
        %v1613 = vadd.f32 0.0, %v1612
        %v1614 = vpop.f32.mrf.mxu0
        %1615 = vmatprep.mubr.bf16.mxu0 0
        %1616 = vmatmul.mubr.bf16.gmra.mxu0 %v1506
        %v1617 = vpop.f32.mrf.mxu0
        %v1618 = vadd.f32 0.0, %v1617
        %v1619 = vpop.f32.mrf.mxu0
        %v1620 = vpop.f32.mrf.mxu0
        %v1621 = vadd.f32 0.0, %v1620
        %v1622 = vpop.f32.mrf.mxu0
        %1623 = vdwg.mxu0
        %v1624 = vadd.f32 %v1342, %v1594
        %v1625 = vadd.f32 %v1343, %v1597
        %v1626 = vadd.f32 %v1344, %v1602
        %v1627 = vadd.f32 %v1345, %v1605
        %v1628 = vadd.f32 %v1346, %v1610
        %v1629 = vadd.f32 %v1347, %v1613
        %v1630 = vadd.f32 %v1348, %v1618
        %v1631 = vadd.f32 %v1349, %v1621
        %v1632 = vld [vmem:[%s482] sm:$0xe]
        %v1633 = vld [vmem:[%s482 + $0x8] sm:$0xe]
        %v1634 = vld [vmem:[%s482 + $0x10] sm:$0xe]
        %v1635 = vld [vmem:[%s482 + $0x18] sm:$0xe]
        %v1636 = vld [vmem:[%s482 + $0x20] sm:$0xe]
        %v1637 = vld [vmem:[%s482 + $0x28] sm:$0xe]
        %v1638 = vld [vmem:[%s482 + $0x30] sm:$0xe]
        %v1639 = vld [vmem:[%s482 + $0x38] sm:$0xe]
        %v1656 = vrot.slane %v1632, 5
        %v1657 = vrot.slane %v1656, 4
        %v1658 = vrot.slane %v1351, 5
        %v1659 = vsel %vm993, %v1657, %v1658
        %v1660 = vrot.slane %v1633, 5
        %v1661 = vrot.slane %v1660, 4
        %v1662 = vrot.slane %v1353, 5
        %v1663 = vsel %vm993, %v1661, %v1662
        %v1664 = vrot.slane %v1634, 5
        %v1665 = vrot.slane %v1664, 4
        %v1666 = vrot.slane %v1355, 5
        %v1667 = vsel %vm993, %v1665, %v1666
        %v1668 = vrot.slane %v1635, 5
        %v1669 = vrot.slane %v1668, 4
        %v1670 = vrot.slane %v1357, 5
        %v1671 = vsel %vm993, %v1669, %v1670
        %v1672 = vrot.slane %v1636, 5
        %v1673 = vrot.slane %v1672, 4
        %v1674 = vrot.slane %v1359, 5
        %v1675 = vsel %vm993, %v1673, %v1674
        %v1676 = vrot.slane %v1637, 5
        %v1677 = vrot.slane %v1676, 4
        %v1678 = vrot.slane %v1361, 5
        %v1679 = vsel %vm993, %v1677, %v1678
        %v1680 = vrot.slane %v1638, 5
        %v1681 = vrot.slane %v1680, 4
        %v1682 = vrot.slane %v1363, 5
        %v1683 = vsel %vm993, %v1681, %v1682
        %v1684 = vrot.slane %v1639, 5
        %v1685 = vrot.slane %v1684, 4
        %v1686 = vrot.slane %v1365, 5
        %v1687 = vsel %vm993, %v1685, %v1686
        %s1688 = scalar_lea.vmem [#allocation6], 320
        %v1689 = vld [vmem:[%s1688] sm:$0xf]
        %v1690 = vld [vmem:[%s1688 + $0x4] sm:$0xf]
        %v1691 = vld [vmem:[%s1688 + $0x8] sm:$0xf]
        %v1692 = vld [vmem:[%s1688 + $0xc] sm:$0xf]
        %v1693 = vld [vmem:[%s1688 + $0x10] sm:$0xf]
        %v1694 = vld [vmem:[%s1688 + $0x14] sm:$0xf]
        %v1695 = vld [vmem:[%s1688 + $0x18] sm:$0xf]
        %v1696 = vld [vmem:[%s1688 + $0x1c] sm:$0xf]
        %v1697 = vld [vmem:[%s1688 + $0x20] sm:$0xf]
        %v1698 = vld [vmem:[%s1688 + $0x24] sm:$0xf]
        %v1699 = vld [vmem:[%s1688 + $0x28] sm:$0xf]
        %v1700 = vld [vmem:[%s1688 + $0x2c] sm:$0xf]
        %v1701 = vld [vmem:[%s1688 + $0x30] sm:$0xf]
        %v1702 = vld [vmem:[%s1688 + $0x34] sm:$0xf]
        %v1703 = vld [vmem:[%s1688 + $0x38] sm:$0xf]
        %v1704 = vld [vmem:[%s1688 + $0x3c] sm:$0xf]
        %v1705 = vunpack.c.l.b16 %v1659
        %v1706 = vunpack.c.l.b16 %v1663
        %v1707 = vunpack.c.l.b16 %v1667
        %v1708 = vunpack.c.l.b16 %v1671
        %v1709 = vunpack.c.l.b16 %v1675
        %v1710 = vunpack.c.l.b16 %v1679
        %v1711 = vunpack.c.l.b16 %v1683
        %v1712 = vunpack.c.l.b16 %v1687
        %v1713 = vpack.c.b16 %v1706, %v1705
        %v1714 = vpack.c.b16 %v1708, %v1707
        %v1715 = vpack.c.b16 %v1710, %v1709
        %v1716 = vpack.c.b16 %v1712, %v1711
        %v1737 = vunpack.c.l.b16 %v1689
        %v1738 = vunpack.c.l.b16 %v1690
        %v1739 = vunpack.c.l.b16 %v1691
        %v1740 = vunpack.c.l.b16 %v1692
        %v1741 = vunpack.c.l.b16 %v1693
        %v1742 = vunpack.c.l.b16 %v1694
        %v1743 = vunpack.c.l.b16 %v1695
        %v1744 = vunpack.c.l.b16 %v1696
        %v1745 = vunpack.c.l.b16 %v1697
        %v1746 = vunpack.c.l.b16 %v1698
        %v1747 = vunpack.c.l.b16 %v1699
        %v1748 = vunpack.c.l.b16 %v1700
        %v1749 = vunpack.c.l.b16 %v1701
        %v1750 = vunpack.c.l.b16 %v1702
        %v1751 = vunpack.c.l.b16 %v1703
        %v1752 = vunpack.c.l.b16 %v1704
        %v1753 = vpack.c.b16 %v1738, %v1737
        %v1754 = vpack.c.b16 %v1740, %v1739
        %v1755 = vpack.c.b16 %v1742, %v1741
        %v1756 = vpack.c.b16 %v1744, %v1743
        %v1757 = vpack.c.b16 %v1746, %v1745
        %v1758 = vpack.c.b16 %v1748, %v1747
        %v1759 = vpack.c.b16 %v1750, %v1749
        %v1760 = vpack.c.b16 %v1752, %v1751
        %1769 = vmatprep.subr.bf16.mxu0 0
        %1770 = vmatpush1.bf16.msra.mxu0 %v1760
        %1771 = vmatprep.subr.bf16.mxu0 0
        %1772 = vmatpush1.bf16.msra.mxu0 %v1759
        %1773 = vmatprep.subr.bf16.mxu0 0
        %1774 = vmatpush1.bf16.msra.mxu0 %v1758
        %1775 = vmatprep.subr.bf16.mxu0 0
        %1776 = vmatpush1.bf16.msra.mxu0 %v1757
        %1777 = vmatprep.subr.bf16.mxu0 0
        %1778 = vmatpush1.bf16.msra.mxu0 %v1756
        %1779 = vmatprep.subr.bf16.mxu0 0
        %1780 = vmatpush1.bf16.msra.mxu0 %v1755
        %1781 = vmatprep.subr.bf16.mxu0 0
        %1782 = vmatpush1.bf16.msra.mxu0 %v1754
        %1783 = vmatprep.subr.bf16.mxu0 0
        %1784 = vmatpush1.bf16.msra.mxu0 %v1753
        %1785 = vmatprep.subr.bf16.mxu0 0
        %1786 = vmatpush2.bf16.msra.mxu0 0
        %1787 = vmatprep.subr.bf16.mxu0 0
        %1788 = vmatpush2.bf16.msra.mxu0 0
        %1789 = vmatprep.subr.bf16.mxu0 0
        %1790 = vmatpush2.bf16.msra.mxu0 0
        %1791 = vmatprep.subr.bf16.mxu0 0
        %1792 = vmatpush2.bf16.msra.mxu0 0
        %1793 = vmatprep.subr.bf16.mxu0 0
        %1794 = vmatpush2.bf16.msra.mxu0 0
        %1795 = vmatprep.subr.bf16.mxu0 0
        %1796 = vmatpush2.bf16.msra.mxu0 0
        %1797 = vmatprep.subr.bf16.mxu0 0
        %1798 = vmatpush2.bf16.msra.mxu0 0
        %1799 = vmatprep.subr.bf16.mxu0 0
        %1800 = vmatpush2.bf16.msra.mxu0 0
        %1801 = vmatprep.mubr.bf16.mxu0 0
        %1802 = vmatmul.mubr.bf16.gmra.mxu0 %v1713
        %v1803 = vpop.f32.mrf.mxu0
        %v1804 = vadd.f32 0.0, %v1803
        %v1805 = vpop.f32.mrf.mxu0
        %v1806 = vpop.f32.mrf.mxu0
        %v1807 = vadd.f32 0.0, %v1806
        %v1808 = vpop.f32.mrf.mxu0
        %1809 = vmatprep.mubr.bf16.mxu0 0
        %1810 = vmatmul.mubr.bf16.gmra.mxu0 %v1714
        %v1811 = vpop.f32.mrf.mxu0
        %v1812 = vadd.f32 0.0, %v1811
        %v1813 = vpop.f32.mrf.mxu0
        %v1814 = vpop.f32.mrf.mxu0
        %v1815 = vadd.f32 0.0, %v1814
        %v1816 = vpop.f32.mrf.mxu0
        %1817 = vmatprep.mubr.bf16.mxu0 0
        %1818 = vmatmul.mubr.bf16.gmra.mxu0 %v1715
        %v1819 = vpop.f32.mrf.mxu0
        %v1820 = vadd.f32 0.0, %v1819
        %v1821 = vpop.f32.mrf.mxu0
        %v1822 = vpop.f32.mrf.mxu0
        %v1823 = vadd.f32 0.0, %v1822
        %v1824 = vpop.f32.mrf.mxu0
        %1825 = vmatprep.mubr.bf16.mxu0 0
        %1826 = vmatmul.mubr.bf16.gmra.mxu0 %v1716
        %v1827 = vpop.f32.mrf.mxu0
        %v1828 = vadd.f32 0.0, %v1827
        %v1829 = vpop.f32.mrf.mxu0
        %v1830 = vpop.f32.mrf.mxu0
        %v1831 = vadd.f32 0.0, %v1830
        %v1832 = vpop.f32.mrf.mxu0
        %1833 = vdwg.mxu0
        %v1834 = vadd.f32 %v1624, %v1804
        %v1835 = vadd.f32 %v1625, %v1807
        %v1836 = vadd.f32 %v1626, %v1812
        %v1837 = vadd.f32 %v1627, %v1815
        %v1838 = vadd.f32 %v1628, %v1820
        %v1839 = vadd.f32 %v1629, %v1823
        %v1840 = vadd.f32 %v1630, %v1828
        %v1841 = vadd.f32 %v1631, %v1831
        %s1842 = scalar_lea.vmem [#allocation2], 16
        %v1843 = vld [vmem:[%s1842] sm:$0xf]
        %v1844 = vld [vmem:[%s1842 + $0x8] sm:$0xf]
        %v1845 = vld [vmem:[%s1842 + $0x10] sm:$0xf]
        %v1846 = vld [vmem:[%s1842 + $0x18] sm:$0xf]
        %v1847 = vld [vmem:[%s1842 + $0x20] sm:$0xf]
        %v1848 = vld [vmem:[%s1842 + $0x28] sm:$0xf]
        %v1849 = vld [vmem:[%s1842 + $0x30] sm:$0xf]
        %v1850 = vld [vmem:[%s1842 + $0x38] sm:$0xf]
        %s1851 = scalar_lea.vmem [#allocation6], 384
        %v1852 = vld [vmem:[%s1851] sm:$0xf]
        %v1853 = vld [vmem:[%s1851 + $0x4] sm:$0xf]
        %v1854 = vld [vmem:[%s1851 + $0x8] sm:$0xf]
        %v1855 = vld [vmem:[%s1851 + $0xc] sm:$0xf]
        %v1856 = vld [vmem:[%s1851 + $0x10] sm:$0xf]
        %v1857 = vld [vmem:[%s1851 + $0x14] sm:$0xf]
        %v1858 = vld [vmem:[%s1851 + $0x18] sm:$0xf]
        %v1859 = vld [vmem:[%s1851 + $0x1c] sm:$0xf]
        %v1860 = vld [vmem:[%s1851 + $0x20] sm:$0xf]
        %v1861 = vld [vmem:[%s1851 + $0x24] sm:$0xf]
        %v1862 = vld [vmem:[%s1851 + $0x28] sm:$0xf]
        %v1863 = vld [vmem:[%s1851 + $0x2c] sm:$0xf]
        %v1864 = vld [vmem:[%s1851 + $0x30] sm:$0xf]
        %v1865 = vld [vmem:[%s1851 + $0x34] sm:$0xf]
        %v1866 = vld [vmem:[%s1851 + $0x38] sm:$0xf]
        %v1867 = vld [vmem:[%s1851 + $0x3c] sm:$0xf]
        %v1876 = vunpack.c.l.b16 %v1843
        %v1877 = vunpack.c.l.b16 %v1844
        %v1878 = vunpack.c.l.b16 %v1845
        %v1879 = vunpack.c.l.b16 %v1846
        %v1880 = vunpack.c.l.b16 %v1847
        %v1881 = vunpack.c.l.b16 %v1848
        %v1882 = vunpack.c.l.b16 %v1849
        %v1883 = vunpack.c.l.b16 %v1850
        %v1884 = vpack.c.b16 %v1877, %v1876
        %v1885 = vpack.c.b16 %v1879, %v1878
        %v1886 = vpack.c.b16 %v1881, %v1880
        %v1887 = vpack.c.b16 %v1883, %v1882
        %v1908 = vunpack.c.l.b16 %v1852
        %v1909 = vunpack.c.l.b16 %v1853
        %v1910 = vunpack.c.l.b16 %v1854
        %v1911 = vunpack.c.l.b16 %v1855
        %v1912 = vunpack.c.l.b16 %v1856
        %v1913 = vunpack.c.l.b16 %v1857
        %v1914 = vunpack.c.l.b16 %v1858
        %v1915 = vunpack.c.l.b16 %v1859
        %v1916 = vunpack.c.l.b16 %v1860
        %v1917 = vunpack.c.l.b16 %v1861
        %v1918 = vunpack.c.l.b16 %v1862
        %v1919 = vunpack.c.l.b16 %v1863
        %v1920 = vunpack.c.l.b16 %v1864
        %v1921 = vunpack.c.l.b16 %v1865
        %v1922 = vunpack.c.l.b16 %v1866
        %v1923 = vunpack.c.l.b16 %v1867
        %v1924 = vpack.c.b16 %v1909, %v1908
        %v1925 = vpack.c.b16 %v1911, %v1910
        %v1926 = vpack.c.b16 %v1913, %v1912
        %v1927 = vpack.c.b16 %v1915, %v1914
        %v1928 = vpack.c.b16 %v1917, %v1916
        %v1929 = vpack.c.b16 %v1919, %v1918
        %v1930 = vpack.c.b16 %v1921, %v1920
        %v1931 = vpack.c.b16 %v1923, %v1922
        %1940 = vmatprep.subr.bf16.mxu0 0
        %1941 = vmatpush1.bf16.msra.mxu0 %v1931
        %1942 = vmatprep.subr.bf16.mxu0 0
        %1943 = vmatpush1.bf16.msra.mxu0 %v1930
        %1944 = vmatprep.subr.bf16.mxu0 0
        %1945 = vmatpush1.bf16.msra.mxu0 %v1929
        %1946 = vmatprep.subr.bf16.mxu0 0
        %1947 = vmatpush1.bf16.msra.mxu0 %v1928
        %1948 = vmatprep.subr.bf16.mxu0 0
        %1949 = vmatpush1.bf16.msra.mxu0 %v1927
        %1950 = vmatprep.subr.bf16.mxu0 0
        %1951 = vmatpush1.bf16.msra.mxu0 %v1926
        %1952 = vmatprep.subr.bf16.mxu0 0
        %1953 = vmatpush1.bf16.msra.mxu0 %v1925
        %1954 = vmatprep.subr.bf16.mxu0 0
        %1955 = vmatpush1.bf16.msra.mxu0 %v1924
        %1956 = vmatprep.subr.bf16.mxu0 0
        %1957 = vmatpush2.bf16.msra.mxu0 0
        %1958 = vmatprep.subr.bf16.mxu0 0
        %1959 = vmatpush2.bf16.msra.mxu0 0
        %1960 = vmatprep.subr.bf16.mxu0 0
        %1961 = vmatpush2.bf16.msra.mxu0 0
        %1962 = vmatprep.subr.bf16.mxu0 0
        %1963 = vmatpush2.bf16.msra.mxu0 0
        %1964 = vmatprep.subr.bf16.mxu0 0
        %1965 = vmatpush2.bf16.msra.mxu0 0
        %1966 = vmatprep.subr.bf16.mxu0 0
        %1967 = vmatpush2.bf16.msra.mxu0 0
        %1968 = vmatprep.subr.bf16.mxu0 0
        %1969 = vmatpush2.bf16.msra.mxu0 0
        %1970 = vmatprep.subr.bf16.mxu0 0
        %1971 = vmatpush2.bf16.msra.mxu0 0
        %1972 = vmatprep.mubr.bf16.mxu0 0
        %1973 = vmatmul.mubr.bf16.gmra.mxu0 %v1884
        %v1974 = vpop.f32.mrf.mxu0
        %v1975 = vadd.f32 0.0, %v1974
        %v1976 = vpop.f32.mrf.mxu0
        %v1977 = vpop.f32.mrf.mxu0
        %v1978 = vadd.f32 0.0, %v1977
        %v1979 = vpop.f32.mrf.mxu0
        %1980 = vmatprep.mubr.bf16.mxu0 0
        %1981 = vmatmul.mubr.bf16.gmra.mxu0 %v1885
        %v1982 = vpop.f32.mrf.mxu0
        %v1983 = vadd.f32 0.0, %v1982
        %v1984 = vpop.f32.mrf.mxu0
        %v1985 = vpop.f32.mrf.mxu0
        %v1986 = vadd.f32 0.0, %v1985
        %v1987 = vpop.f32.mrf.mxu0
        %1988 = vmatprep.mubr.bf16.mxu0 0
        %1989 = vmatmul.mubr.bf16.gmra.mxu0 %v1886
        %v1990 = vpop.f32.mrf.mxu0
        %v1991 = vadd.f32 0.0, %v1990
        %v1992 = vpop.f32.mrf.mxu0
        %v1993 = vpop.f32.mrf.mxu0
        %v1994 = vadd.f32 0.0, %v1993
        %v1995 = vpop.f32.mrf.mxu0
        %1996 = vmatprep.mubr.bf16.mxu0 0
        %1997 = vmatmul.mubr.bf16.gmra.mxu0 %v1887
        %v1998 = vpop.f32.mrf.mxu0
        %v1999 = vadd.f32 0.0, %v1998
        %v2000 = vpop.f32.mrf.mxu0
        %v2001 = vpop.f32.mrf.mxu0
        %v2002 = vadd.f32 0.0, %v2001
        %v2003 = vpop.f32.mrf.mxu0
        %2004 = vdwg.mxu0
        %v2005 = vadd.f32 %v1834, %v1975
        %v2006 = vadd.f32 %v1835, %v1978
        %v2007 = vadd.f32 %v1836, %v1983
        %v2008 = vadd.f32 %v1837, %v1986
        %v2009 = vadd.f32 %v1838, %v1991
        %v2010 = vadd.f32 %v1839, %v1994
        %v2011 = vadd.f32 %v1840, %v1999
        %v2012 = vadd.f32 %v1841, %v2002
        %v2013 = vld [vmem:[%s1842] sm:$0xf]
        %v2014 = vld [vmem:[%s1842 + $0x4] sm:$0x1]
        %v2015 = vld [vmem:[%s1842 + $0x8] sm:$0xf]
        %v2016 = vld [vmem:[%s1842 + $0xc] sm:$0x1]
        %v2017 = vld [vmem:[%s1842 + $0x10] sm:$0xf]
        %v2018 = vld [vmem:[%s1842 + $0x14] sm:$0x1]
        %v2019 = vld [vmem:[%s1842 + $0x18] sm:$0xf]
        %v2020 = vld [vmem:[%s1842 + $0x1c] sm:$0x1]
        %v2021 = vld [vmem:[%s1842 + $0x20] sm:$0xf]
        %v2022 = vld [vmem:[%s1842 + $0x24] sm:$0x1]
        %v2023 = vld [vmem:[%s1842 + $0x28] sm:$0xf]
        %v2024 = vld [vmem:[%s1842 + $0x2c] sm:$0x1]
        %v2025 = vld [vmem:[%s1842 + $0x30] sm:$0xf]
        %v2026 = vld [vmem:[%s1842 + $0x34] sm:$0x1]
        %v2027 = vld [vmem:[%s1842 + $0x38] sm:$0xf]
        %v2028 = vld [vmem:[%s1842 + $0x3c] sm:$0x1]
        %v2030 = vshrl.u32 %v2013, 16
        %v2032 = vrot.slane %v2030, 4
        %v2033 = vshll.u32 %v2013, 16
        %v2035 = vrot.slane %v2033, 5
        %v2036 = vor.u32 %v2032, %v2035
        %v2037 = vrot.slane %v2036, 4
        %v2039 = vshll.u32 %v2014, 16
        %v2041 = vrot.slane %v2039, 5
        %v2042 = vsel %vm571, %v2037, %v2041
        %v2044 = vshrl.u32 %v2015, 16
        %v2046 = vrot.slane %v2044, 4
        %v2047 = vshll.u32 %v2015, 16
        %v2049 = vrot.slane %v2047, 5
        %v2050 = vor.u32 %v2046, %v2049
        %v2051 = vrot.slane %v2050, 4
        %v2053 = vshll.u32 %v2016, 16
        %v2055 = vrot.slane %v2053, 5
        %v2056 = vsel %vm571, %v2051, %v2055
        %v2058 = vshrl.u32 %v2017, 16
        %v2060 = vrot.slane %v2058, 4
        %v2061 = vshll.u32 %v2017, 16
        %v2063 = vrot.slane %v2061, 5
        %v2064 = vor.u32 %v2060, %v2063
        %v2065 = vrot.slane %v2064, 4
        %v2067 = vshll.u32 %v2018, 16
        %v2069 = vrot.slane %v2067, 5
        %v2070 = vsel %vm571, %v2065, %v2069
        %v2072 = vshrl.u32 %v2019, 16
        %v2074 = vrot.slane %v2072, 4
        %v2075 = vshll.u32 %v2019, 16
        %v2077 = vrot.slane %v2075, 5
        %v2078 = vor.u32 %v2074, %v2077
        %v2079 = vrot.slane %v2078, 4
        %v2081 = vshll.u32 %v2020, 16
        %v2083 = vrot.slane %v2081, 5
        %v2084 = vsel %vm571, %v2079, %v2083
        %v2086 = vshrl.u32 %v2021, 16
        %v2088 = vrot.slane %v2086, 4
        %v2089 = vshll.u32 %v2021, 16
        %v2091 = vrot.slane %v2089, 5
        %v2092 = vor.u32 %v2088, %v2091
        %v2093 = vrot.slane %v2092, 4
        %v2095 = vshll.u32 %v2022, 16
        %v2097 = vrot.slane %v2095, 5
        %v2098 = vsel %vm571, %v2093, %v2097
        %v2100 = vshrl.u32 %v2023, 16
        %v2102 = vrot.slane %v2100, 4
        %v2103 = vshll.u32 %v2023, 16
        %v2105 = vrot.slane %v2103, 5
        %v2106 = vor.u32 %v2102, %v2105
        %v2107 = vrot.slane %v2106, 4
        %v2109 = vshll.u32 %v2024, 16
        %v2111 = vrot.slane %v2109, 5
        %v2112 = vsel %vm571, %v2107, %v2111
        %v2114 = vshrl.u32 %v2025, 16
        %v2116 = vrot.slane %v2114, 4
        %v2117 = vshll.u32 %v2025, 16
        %v2119 = vrot.slane %v2117, 5
        %v2120 = vor.u32 %v2116, %v2119
        %v2121 = vrot.slane %v2120, 4
        %v2123 = vshll.u32 %v2026, 16
        %v2125 = vrot.slane %v2123, 5
        %v2126 = vsel %vm571, %v2121, %v2125
        %v2128 = vshrl.u32 %v2027, 16
        %v2130 = vrot.slane %v2128, 4
        %v2131 = vshll.u32 %v2027, 16
        %v2133 = vrot.slane %v2131, 5
        %v2134 = vor.u32 %v2130, %v2133
        %v2135 = vrot.slane %v2134, 4
        %v2137 = vshll.u32 %v2028, 16
        %v2139 = vrot.slane %v2137, 5
        %v2140 = vsel %vm571, %v2135, %v2139
        %s2141 = scalar_lea.vmem [#allocation6], 448
        %v2142 = vld [vmem:[%s2141] sm:$0xf]
        %v2143 = vld [vmem:[%s2141 + $0x4] sm:$0xf]
        %v2144 = vld [vmem:[%s2141 + $0x8] sm:$0xf]
        %v2145 = vld [vmem:[%s2141 + $0xc] sm:$0xf]
        %v2146 = vld [vmem:[%s2141 + $0x10] sm:$0xf]
        %v2147 = vld [vmem:[%s2141 + $0x14] sm:$0xf]
        %v2148 = vld [vmem:[%s2141 + $0x18] sm:$0xf]
        %v2149 = vld [vmem:[%s2141 + $0x1c] sm:$0xf]
        %v2150 = vld [vmem:[%s2141 + $0x20] sm:$0xf]
        %v2151 = vld [vmem:[%s2141 + $0x24] sm:$0xf]
        %v2152 = vld [vmem:[%s2141 + $0x28] sm:$0xf]
        %v2153 = vld [vmem:[%s2141 + $0x2c] sm:$0xf]
        %v2154 = vld [vmem:[%s2141 + $0x30] sm:$0xf]
        %v2155 = vld [vmem:[%s2141 + $0x34] sm:$0xf]
        %v2156 = vld [vmem:[%s2141 + $0x38] sm:$0xf]
        %v2157 = vld [vmem:[%s2141 + $0x3c] sm:$0xf]
        %v2158 = vunpack.c.l.b16 %v2042
        %v2159 = vunpack.c.l.b16 %v2056
        %v2160 = vunpack.c.l.b16 %v2070
        %v2161 = vunpack.c.l.b16 %v2084
        %v2162 = vunpack.c.l.b16 %v2098
        %v2163 = vunpack.c.l.b16 %v2112
        %v2164 = vunpack.c.l.b16 %v2126
        %v2165 = vunpack.c.l.b16 %v2140
        %v2166 = vpack.c.b16 %v2159, %v2158
        %v2167 = vpack.c.b16 %v2161, %v2160
        %v2168 = vpack.c.b16 %v2163, %v2162
        %v2169 = vpack.c.b16 %v2165, %v2164
        %v2190 = vunpack.c.l.b16 %v2142
        %v2191 = vunpack.c.l.b16 %v2143
        %v2192 = vunpack.c.l.b16 %v2144
        %v2193 = vunpack.c.l.b16 %v2145
        %v2194 = vunpack.c.l.b16 %v2146
        %v2195 = vunpack.c.l.b16 %v2147
        %v2196 = vunpack.c.l.b16 %v2148
        %v2197 = vunpack.c.l.b16 %v2149
        %v2198 = vunpack.c.l.b16 %v2150
        %v2199 = vunpack.c.l.b16 %v2151
        %v2200 = vunpack.c.l.b16 %v2152
        %v2201 = vunpack.c.l.b16 %v2153
        %v2202 = vunpack.c.l.b16 %v2154
        %v2203 = vunpack.c.l.b16 %v2155
        %v2204 = vunpack.c.l.b16 %v2156
        %v2205 = vunpack.c.l.b16 %v2157
        %v2206 = vpack.c.b16 %v2191, %v2190
        %v2207 = vpack.c.b16 %v2193, %v2192
        %v2208 = vpack.c.b16 %v2195, %v2194
        %v2209 = vpack.c.b16 %v2197, %v2196
        %v2210 = vpack.c.b16 %v2199, %v2198
        %v2211 = vpack.c.b16 %v2201, %v2200
        %v2212 = vpack.c.b16 %v2203, %v2202
        %v2213 = vpack.c.b16 %v2205, %v2204
        %2222 = vmatprep.subr.bf16.mxu0 0
        %2223 = vmatpush1.bf16.msra.mxu0 %v2213
        %2224 = vmatprep.subr.bf16.mxu0 0
        %2225 = vmatpush1.bf16.msra.mxu0 %v2212
        %2226 = vmatprep.subr.bf16.mxu0 0
        %2227 = vmatpush1.bf16.msra.mxu0 %v2211
        %2228 = vmatprep.subr.bf16.mxu0 0
        %2229 = vmatpush1.bf16.msra.mxu0 %v2210
        %2230 = vmatprep.subr.bf16.mxu0 0
        %2231 = vmatpush1.bf16.msra.mxu0 %v2209
        %2232 = vmatprep.subr.bf16.mxu0 0
        %2233 = vmatpush1.bf16.msra.mxu0 %v2208
        %2234 = vmatprep.subr.bf16.mxu0 0
        %2235 = vmatpush1.bf16.msra.mxu0 %v2207
        %2236 = vmatprep.subr.bf16.mxu0 0
        %2237 = vmatpush1.bf16.msra.mxu0 %v2206
        %2238 = vmatprep.subr.bf16.mxu0 0
        %2239 = vmatpush2.bf16.msra.mxu0 0
        %2240 = vmatprep.subr.bf16.mxu0 0
        %2241 = vmatpush2.bf16.msra.mxu0 0
        %2242 = vmatprep.subr.bf16.mxu0 0
        %2243 = vmatpush2.bf16.msra.mxu0 0
        %2244 = vmatprep.subr.bf16.mxu0 0
        %2245 = vmatpush2.bf16.msra.mxu0 0
        %2246 = vmatprep.subr.bf16.mxu0 0
        %2247 = vmatpush2.bf16.msra.mxu0 0
        %2248 = vmatprep.subr.bf16.mxu0 0
        %2249 = vmatpush2.bf16.msra.mxu0 0
        %2250 = vmatprep.subr.bf16.mxu0 0
        %2251 = vmatpush2.bf16.msra.mxu0 0
        %2252 = vmatprep.subr.bf16.mxu0 0
        %2253 = vmatpush2.bf16.msra.mxu0 0
        %2254 = vmatprep.mubr.bf16.mxu0 0
        %2255 = vmatmul.mubr.bf16.gmra.mxu0 %v2166
        %v2256 = vpop.f32.mrf.mxu0
        %v2257 = vadd.f32 0.0, %v2256
        %v2258 = vpop.f32.mrf.mxu0
        %v2259 = vpop.f32.mrf.mxu0
        %v2260 = vadd.f32 0.0, %v2259
        %v2261 = vpop.f32.mrf.mxu0
        %2262 = vmatprep.mubr.bf16.mxu0 0
        %2263 = vmatmul.mubr.bf16.gmra.mxu0 %v2167
        %v2264 = vpop.f32.mrf.mxu0
        %v2265 = vadd.f32 0.0, %v2264
        %v2266 = vpop.f32.mrf.mxu0
        %v2267 = vpop.f32.mrf.mxu0
        %v2268 = vadd.f32 0.0, %v2267
        %v2269 = vpop.f32.mrf.mxu0
        %2270 = vmatprep.mubr.bf16.mxu0 0
        %2271 = vmatmul.mubr.bf16.gmra.mxu0 %v2168
        %v2272 = vpop.f32.mrf.mxu0
        %v2273 = vadd.f32 0.0, %v2272
        %v2274 = vpop.f32.mrf.mxu0
        %v2275 = vpop.f32.mrf.mxu0
        %v2276 = vadd.f32 0.0, %v2275
        %v2277 = vpop.f32.mrf.mxu0
        %2278 = vmatprep.mubr.bf16.mxu0 0
        %2279 = vmatmul.mubr.bf16.gmra.mxu0 %v2169
        %v2280 = vpop.f32.mrf.mxu0
        %v2281 = vadd.f32 0.0, %v2280
        %v2282 = vpop.f32.mrf.mxu0
        %v2283 = vpop.f32.mrf.mxu0
        %v2284 = vadd.f32 0.0, %v2283
        %v2285 = vpop.f32.mrf.mxu0
        %2286 = vdwg.mxu0
        %v2287 = vadd.f32 %v2005, %v2257
        %v2288 = vadd.f32 %v2006, %v2260
        %v2289 = vadd.f32 %v2007, %v2265
        %v2290 = vadd.f32 %v2008, %v2268
        %v2291 = vadd.f32 %v2009, %v2273
        %v2292 = vadd.f32 %v2010, %v2276
        %v2293 = vadd.f32 %v2011, %v2281
        %v2294 = vadd.f32 %v2012, %v2284
        %v2295 = vld [vmem:[%s1842] sm:$0xe]
        %v2296 = vld [vmem:[%s1842 + $0x8] sm:$0xe]
        %v2297 = vld [vmem:[%s1842 + $0x10] sm:$0xe]
        %v2298 = vld [vmem:[%s1842 + $0x18] sm:$0xe]
        %v2299 = vld [vmem:[%s1842 + $0x20] sm:$0xe]
        %v2300 = vld [vmem:[%s1842 + $0x28] sm:$0xe]
        %v2301 = vld [vmem:[%s1842 + $0x30] sm:$0xe]
        %v2302 = vld [vmem:[%s1842 + $0x38] sm:$0xe]
        %v2319 = vrot.slane %v2295, 5
        %v2320 = vrot.slane %v2319, 4
        %v2321 = vrot.slane %v2014, 5
        %v2322 = vsel %vm993, %v2320, %v2321
        %v2323 = vrot.slane %v2296, 5
        %v2324 = vrot.slane %v2323, 4
        %v2325 = vrot.slane %v2016, 5
        %v2326 = vsel %vm993, %v2324, %v2325
        %v2327 = vrot.slane %v2297, 5
        %v2328 = vrot.slane %v2327, 4
        %v2329 = vrot.slane %v2018, 5
        %v2330 = vsel %vm993, %v2328, %v2329
        %v2331 = vrot.slane %v2298, 5
        %v2332 = vrot.slane %v2331, 4
        %v2333 = vrot.slane %v2020, 5
        %v2334 = vsel %vm993, %v2332, %v2333
        %v2335 = vrot.slane %v2299, 5
        %v2336 = vrot.slane %v2335, 4
        %v2337 = vrot.slane %v2022, 5
        %v2338 = vsel %vm993, %v2336, %v2337
        %v2339 = vrot.slane %v2300, 5
        %v2340 = vrot.slane %v2339, 4
        %v2341 = vrot.slane %v2024, 5
        %v2342 = vsel %vm993, %v2340, %v2341
        %v2343 = vrot.slane %v2301, 5
        %v2344 = vrot.slane %v2343, 4
        %v2345 = vrot.slane %v2026, 5
        %v2346 = vsel %vm993, %v2344, %v2345
        %v2347 = vrot.slane %v2302, 5
        %v2348 = vrot.slane %v2347, 4
        %v2349 = vrot.slane %v2028, 5
        %v2350 = vsel %vm993, %v2348, %v2349
        %s2351 = scalar_lea.vmem [#allocation6], 512
        %v2352 = vld [vmem:[%s2351] sm:$0xf]
        %v2353 = vld [vmem:[%s2351 + $0x4] sm:$0xf]
        %v2354 = vld [vmem:[%s2351 + $0x8] sm:$0xf]
        %v2355 = vld [vmem:[%s2351 + $0xc] sm:$0xf]
        %v2356 = vld [vmem:[%s2351 + $0x10] sm:$0xf]
        %v2357 = vld [vmem:[%s2351 + $0x14] sm:$0xf]
        %v2358 = vld [vmem:[%s2351 + $0x18] sm:$0xf]
        %v2359 = vld [vmem:[%s2351 + $0x1c] sm:$0xf]
        %v2360 = vld [vmem:[%s2351 + $0x20] sm:$0xf]
        %v2361 = vld [vmem:[%s2351 + $0x24] sm:$0xf]
        %v2362 = vld [vmem:[%s2351 + $0x28] sm:$0xf]
        %v2363 = vld [vmem:[%s2351 + $0x2c] sm:$0xf]
        %v2364 = vld [vmem:[%s2351 + $0x30] sm:$0xf]
        %v2365 = vld [vmem:[%s2351 + $0x34] sm:$0xf]
        %v2366 = vld [vmem:[%s2351 + $0x38] sm:$0xf]
        %v2367 = vld [vmem:[%s2351 + $0x3c] sm:$0xf]
        %v2368 = vunpack.c.l.b16 %v2322
        %v2369 = vunpack.c.l.b16 %v2326
        %v2370 = vunpack.c.l.b16 %v2330
        %v2371 = vunpack.c.l.b16 %v2334
        %v2372 = vunpack.c.l.b16 %v2338
        %v2373 = vunpack.c.l.b16 %v2342
        %v2374 = vunpack.c.l.b16 %v2346
        %v2375 = vunpack.c.l.b16 %v2350
        %v2376 = vpack.c.b16 %v2369, %v2368
        %v2377 = vpack.c.b16 %v2371, %v2370
        %v2378 = vpack.c.b16 %v2373, %v2372
        %v2379 = vpack.c.b16 %v2375, %v2374
        %v2400 = vunpack.c.l.b16 %v2352
        %v2401 = vunpack.c.l.b16 %v2353
        %v2402 = vunpack.c.l.b16 %v2354
        %v2403 = vunpack.c.l.b16 %v2355
        %v2404 = vunpack.c.l.b16 %v2356
        %v2405 = vunpack.c.l.b16 %v2357
        %v2406 = vunpack.c.l.b16 %v2358
        %v2407 = vunpack.c.l.b16 %v2359
        %v2408 = vunpack.c.l.b16 %v2360
        %v2409 = vunpack.c.l.b16 %v2361
        %v2410 = vunpack.c.l.b16 %v2362
        %v2411 = vunpack.c.l.b16 %v2363
        %v2412 = vunpack.c.l.b16 %v2364
        %v2413 = vunpack.c.l.b16 %v2365
        %v2414 = vunpack.c.l.b16 %v2366
        %v2415 = vunpack.c.l.b16 %v2367
        %v2416 = vpack.c.b16 %v2401, %v2400
        %v2417 = vpack.c.b16 %v2403, %v2402
        %v2418 = vpack.c.b16 %v2405, %v2404
        %v2419 = vpack.c.b16 %v2407, %v2406
        %v2420 = vpack.c.b16 %v2409, %v2408
        %v2421 = vpack.c.b16 %v2411, %v2410
        %v2422 = vpack.c.b16 %v2413, %v2412
        %v2423 = vpack.c.b16 %v2415, %v2414
        %2432 = vmatprep.subr.bf16.mxu0 0
        %2433 = vmatpush1.bf16.msra.mxu0 %v2423
        %2434 = vmatprep.subr.bf16.mxu0 0
        %2435 = vmatpush1.bf16.msra.mxu0 %v2422
        %2436 = vmatprep.subr.bf16.mxu0 0
        %2437 = vmatpush1.bf16.msra.mxu0 %v2421
        %2438 = vmatprep.subr.bf16.mxu0 0
        %2439 = vmatpush1.bf16.msra.mxu0 %v2420
        %2440 = vmatprep.subr.bf16.mxu0 0
        %2441 = vmatpush1.bf16.msra.mxu0 %v2419
        %2442 = vmatprep.subr.bf16.mxu0 0
        %2443 = vmatpush1.bf16.msra.mxu0 %v2418
        %2444 = vmatprep.subr.bf16.mxu0 0
        %2445 = vmatpush1.bf16.msra.mxu0 %v2417
        %2446 = vmatprep.subr.bf16.mxu0 0
        %2447 = vmatpush1.bf16.msra.mxu0 %v2416
        %2448 = vmatprep.subr.bf16.mxu0 0
        %2449 = vmatpush2.bf16.msra.mxu0 0
        %2450 = vmatprep.subr.bf16.mxu0 0
        %2451 = vmatpush2.bf16.msra.mxu0 0
        %2452 = vmatprep.subr.bf16.mxu0 0
        %2453 = vmatpush2.bf16.msra.mxu0 0
        %2454 = vmatprep.subr.bf16.mxu0 0
        %2455 = vmatpush2.bf16.msra.mxu0 0
        %2456 = vmatprep.subr.bf16.mxu0 0
        %2457 = vmatpush2.bf16.msra.mxu0 0
        %2458 = vmatprep.subr.bf16.mxu0 0
        %2459 = vmatpush2.bf16.msra.mxu0 0
        %2460 = vmatprep.subr.bf16.mxu0 0
        %2461 = vmatpush2.bf16.msra.mxu0 0
        %2462 = vmatprep.subr.bf16.mxu0 0
        %2463 = vmatpush2.bf16.msra.mxu0 0
        %2464 = vmatprep.mubr.bf16.mxu0 0
        %2465 = vmatmul.mubr.bf16.gmra.mxu0 %v2376
        %v2466 = vpop.f32.mrf.mxu0
        %v2467 = vadd.f32 0.0, %v2466
        %v2468 = vpop.f32.mrf.mxu0
        %v2469 = vpop.f32.mrf.mxu0
        %v2470 = vadd.f32 0.0, %v2469
        %v2471 = vpop.f32.mrf.mxu0
        %2472 = vmatprep.mubr.bf16.mxu0 0
        %2473 = vmatmul.mubr.bf16.gmra.mxu0 %v2377
        %v2474 = vpop.f32.mrf.mxu0
        %v2475 = vadd.f32 0.0, %v2474
        %v2476 = vpop.f32.mrf.mxu0
        %v2477 = vpop.f32.mrf.mxu0
        %v2478 = vadd.f32 0.0, %v2477
        %v2479 = vpop.f32.mrf.mxu0
        %2480 = vmatprep.mubr.bf16.mxu0 0
        %2481 = vmatmul.mubr.bf16.gmra.mxu0 %v2378
        %v2482 = vpop.f32.mrf.mxu0
        %v2483 = vadd.f32 0.0, %v2482
        %v2484 = vpop.f32.mrf.mxu0
        %v2485 = vpop.f32.mrf.mxu0
        %v2486 = vadd.f32 0.0, %v2485
        %v2487 = vpop.f32.mrf.mxu0
        %2488 = vmatprep.mubr.bf16.mxu0 0
        %2489 = vmatmul.mubr.bf16.gmra.mxu0 %v2379
        %v2490 = vpop.f32.mrf.mxu0
        %v2491 = vadd.f32 0.0, %v2490
        %v2492 = vpop.f32.mrf.mxu0
        %v2493 = vpop.f32.mrf.mxu0
        %v2494 = vadd.f32 0.0, %v2493
        %v2495 = vpop.f32.mrf.mxu0
        %2496 = vdwg.mxu0
        %v2497 = vadd.f32 %v2287, %v2467
        %v2498 = vadd.f32 %v2288, %v2470
        %v2499 = vadd.f32 %v2289, %v2475
        %v2500 = vadd.f32 %v2290, %v2478
        %v2501 = vadd.f32 %v2291, %v2483
        %v2502 = vadd.f32 %v2292, %v2486
        %v2503 = vadd.f32 %v2293, %v2491
        %v2504 = vadd.f32 %v2294, %v2494
        %v2505 = vld [vmem:[%s4] sm:$0x1]
        %v2507 = vlaneseq
        %v2508 = vshrl.u32 %v2507, 7
        %v2509 = vsub.s32 0, %v2508
        %v2510 = vrot.slane %v2505, %v2509
        %v2512 = vadd.f32 %v2497, %v2510
        %v2513 = vadd.f32 %v2498, %v2510
        %v2514 = vadd.f32 %v2499, %v2510
        %v2515 = vadd.f32 %v2500, %v2510
        %v2516 = vadd.f32 %v2501, %v2510
        %v2517 = vadd.f32 %v2502, %v2510
        %v2518 = vadd.f32 %v2503, %v2510
        %v2519 = vadd.f32 %v2504, %v2510
        %v2520 = vxor.u32 %v2512, 2147483648
        %v2521 = vxor.u32 %v2513, 2147483648
        %v2522 = vxor.u32 %v2514, 2147483648
        %v2523 = vxor.u32 %v2515, 2147483648
        %v2524 = vxor.u32 %v2516, 2147483648
        %v2525 = vxor.u32 %v2517, 2147483648
        %v2526 = vxor.u32 %v2518, 2147483648
        %v2527 = vxor.u32 %v2519, 2147483648
        %v2528 = vmul.f32 %v2520, 1.442695
        %v2529 = vpow.pop %v2528
        %v2530 = vmul.f32 %v2521, 1.442695
        %v2531 = vpow.pop %v2530
        %v2532 = vmul.f32 %v2522, 1.442695
        %v2533 = vpow.pop %v2532
        %v2534 = vmul.f32 %v2523, 1.442695
        %v2535 = vpow.pop %v2534
        %v2536 = vmul.f32 %v2524, 1.442695
        %v2537 = vpow.pop %v2536
        %v2538 = vmul.f32 %v2525, 1.442695
        %v2539 = vpow.pop %v2538
        %v2540 = vmul.f32 %v2526, 1.442695
        %v2541 = vpow.pop %v2540
        %v2542 = vmul.f32 %v2527, 1.442695
        %v2543 = vpow.pop %v2542
        %v2544 = vadd.f32 %v2529, 1.0
        %v2545 = vadd.f32 %v2531, 1.0
        %v2546 = vadd.f32 %v2533, 1.0
        %v2547 = vadd.f32 %v2535, 1.0
        %v2548 = vadd.f32 %v2537, 1.0
        %v2549 = vadd.f32 %v2539, 1.0
        %v2550 = vadd.f32 %v2541, 1.0
        %v2551 = vadd.f32 %v2543, 1.0
        %v2552 = vrcp.pop %v2544
        %v2553 = vmul.f32 1.0, %v2552
        %v2554 = vrcp.pop %v2545
        %v2555 = vmul.f32 1.0, %v2554
        %v2556 = vrcp.pop %v2546
        %v2557 = vmul.f32 1.0, %v2556
        %v2558 = vrcp.pop %v2547
        %v2559 = vmul.f32 1.0, %v2558
        %v2560 = vrcp.pop %v2548
        %v2561 = vmul.f32 1.0, %v2560
        %v2562 = vrcp.pop %v2549
        %v2563 = vmul.f32 1.0, %v2562
        %v2564 = vrcp.pop %v2550
        %v2565 = vmul.f32 1.0, %v2564
        %v2566 = vrcp.pop %v2551
        %v2567 = vmul.f32 1.0, %v2566
        %v2568 = vmul.f32 %v2512, %v2553
        %v2569 = vmul.f32 %v2513, %v2555
        %v2570 = vmul.f32 %v2514, %v2557
        %v2571 = vmul.f32 %v2515, %v2559
        %v2572 = vmul.f32 %v2516, %v2561
        %v2573 = vmul.f32 %v2517, %v2563
        %v2574 = vmul.f32 %v2518, %v2565
        %v2575 = vmul.f32 %v2519, %v2567
        %v2576 = vpack.c.bf16 %v2568, %v2568
        %v2577 = vpack.c.bf16 %v2569, %v2569
        %v2578 = vpack.c.bf16 %v2570, %v2570
        %v2579 = vpack.c.bf16 %v2571, %v2571
        %v2580 = vpack.c.bf16 %v2572, %v2572
        %v2581 = vpack.c.bf16 %v2573, %v2573
        %v2582 = vpack.c.bf16 %v2574, %v2574
        %v2583 = vpack.c.bf16 %v2575, %v2575
        %v2592 = vunpack.c.l.b16 %v2576
        %v2593 = vunpack.c.l.b16 %v2577
        %v2594 = vunpack.c.l.b16 %v2578
        %v2595 = vunpack.c.l.b16 %v2579
        %v2596 = vunpack.c.l.b16 %v2580
        %v2597 = vunpack.c.l.b16 %v2581
        %v2598 = vunpack.c.l.b16 %v2582
        %v2599 = vunpack.c.l.b16 %v2583
        %v2600 = vpack.c.b16 %v2592, %v2592
        %v2601 = vpack.c.b16 %v2593, %v2593
        %v2602 = vpack.c.b16 %v2594, %v2594
        %v2603 = vpack.c.b16 %v2595, %v2595
        %v2604 = vpack.c.b16 %v2596, %v2596
        %v2605 = vpack.c.b16 %v2597, %v2597
        %v2606 = vpack.c.b16 %v2598, %v2598
        %v2607 = vpack.c.b16 %v2599, %v2599
        %v2609 = vshrl.u32 %v2600, 16
        %v2611 = vrot.slane %v2609, 7
        %v2612 = vshll.u32 %v2600, 16
        %v2614 = vor.u32 %v2611, %v2612
        %v2615 = vrot.slane %v2611, 4
        %v2617 = vshrl.u32 %v2601, 16
        %v2619 = vrot.slane %v2617, 7
        %v2620 = vshll.u32 %v2601, 16
        %v2622 = vor.u32 %v2619, %v2620
        %v2623 = vrot.slane %v2619, 4
        %v2625 = vshrl.u32 %v2602, 16
        %v2627 = vrot.slane %v2625, 7
        %v2628 = vshll.u32 %v2602, 16
        %v2630 = vor.u32 %v2627, %v2628
        %v2631 = vrot.slane %v2627, 4
        %v2633 = vshrl.u32 %v2603, 16
        %v2635 = vrot.slane %v2633, 7
        %v2636 = vshll.u32 %v2603, 16
        %v2638 = vor.u32 %v2635, %v2636
        %v2639 = vrot.slane %v2635, 4
        %v2641 = vshrl.u32 %v2604, 16
        %v2643 = vrot.slane %v2641, 7
        %v2644 = vshll.u32 %v2604, 16
        %v2646 = vor.u32 %v2643, %v2644
        %v2647 = vrot.slane %v2643, 4
        %v2649 = vshrl.u32 %v2605, 16
        %v2651 = vrot.slane %v2649, 7
        %v2652 = vshll.u32 %v2605, 16
        %v2654 = vor.u32 %v2651, %v2652
        %v2655 = vrot.slane %v2651, 4
        %v2657 = vshrl.u32 %v2606, 16
        %v2659 = vrot.slane %v2657, 7
        %v2660 = vshll.u32 %v2606, 16
        %v2662 = vor.u32 %v2659, %v2660
        %v2663 = vrot.slane %v2659, 4
        %v2665 = vshrl.u32 %v2607, 16
        %v2667 = vrot.slane %v2665, 7
        %v2668 = vshll.u32 %v2607, 16
        %v2670 = vor.u32 %v2667, %v2668
        %v2671 = vrot.slane %v2667, 4
        %vm2688 = vcmask 1043456
        %vm2689 = vmand %vm2688, %vm484
        %v2690 = vsel %vm2689, %v2614, %v1350
        %2691 = vst [vmem:[%s482] sm:$0xf] %v2690
        %vm2692 = vcmask 1040384
        %vm2693 = vmand %vm2692, %vm490
        %v2694 = vld [vmem:[%s482 + $0x4] sm:$0x1]
        %v2695 = vsel %vm2693, %v2615, %v2694
        %2696 = vst [vmem:[%s482 + $0x4] sm:$0x1] %v2695
        %v2697 = vld [vmem:[%s482 + $0x8] sm:$0xf]
        %v2698 = vsel %vm2689, %v2622, %v2697
        %2699 = vst [vmem:[%s482 + $0x8] sm:$0xf] %v2698
        %v2700 = vld [vmem:[%s482 + $0xc] sm:$0x1]
        %v2701 = vsel %vm2693, %v2623, %v2700
        %2702 = vst [vmem:[%s482 + $0xc] sm:$0x1] %v2701
        %v2703 = vld [vmem:[%s482 + $0x10] sm:$0xf]
        %v2704 = vsel %vm2689, %v2630, %v2703
        %2705 = vst [vmem:[%s482 + $0x10] sm:$0xf] %v2704
        %v2706 = vld [vmem:[%s482 + $0x14] sm:$0x1]
        %v2707 = vsel %vm2693, %v2631, %v2706
        %2708 = vst [vmem:[%s482 + $0x14] sm:$0x1] %v2707
        %v2709 = vld [vmem:[%s482 + $0x18] sm:$0xf]
        %v2710 = vsel %vm2689, %v2638, %v2709
        %2711 = vst [vmem:[%s482 + $0x18] sm:$0xf] %v2710
        %v2712 = vld [vmem:[%s482 + $0x1c] sm:$0x1]
        %v2713 = vsel %vm2693, %v2639, %v2712
        %2714 = vst [vmem:[%s482 + $0x1c] sm:$0x1] %v2713
        %v2715 = vld [vmem:[%s482 + $0x20] sm:$0xf]
        %v2716 = vsel %vm2689, %v2646, %v2715
        %2717 = vst [vmem:[%s482 + $0x20] sm:$0xf] %v2716
        %v2718 = vld [vmem:[%s482 + $0x24] sm:$0x1]
        %v2719 = vsel %vm2693, %v2647, %v2718
        %2720 = vst [vmem:[%s482 + $0x24] sm:$0x1] %v2719
        %v2721 = vld [vmem:[%s482 + $0x28] sm:$0xf]
        %v2722 = vsel %vm2689, %v2654, %v2721
        %2723 = vst [vmem:[%s482 + $0x28] sm:$0xf] %v2722
        %v2724 = vld [vmem:[%s482 + $0x2c] sm:$0x1]
        %v2725 = vsel %vm2693, %v2655, %v2724
        %2726 = vst [vmem:[%s482 + $0x2c] sm:$0x1] %v2725
        %v2727 = vld [vmem:[%s482 + $0x30] sm:$0xf]
        %v2728 = vsel %vm2689, %v2662, %v2727
        %2729 = vst [vmem:[%s482 + $0x30] sm:$0xf] %v2728
        %v2730 = vld [vmem:[%s482 + $0x34] sm:$0x1]
        %v2731 = vsel %vm2693, %v2663, %v2730
        %2732 = vst [vmem:[%s482 + $0x34] sm:$0x1] %v2731
        %v2733 = vld [vmem:[%s482 + $0x38] sm:$0xf]
        %v2734 = vsel %vm2689, %v2670, %v2733
        %2735 = vst [vmem:[%s482 + $0x38] sm:$0xf] %v2734
        %v2736 = vld [vmem:[%s482 + $0x3c] sm:$0x1]
        %v2737 = vsel %vm2693, %v2671, %v2736
        %2738 = vst [vmem:[%s482 + $0x3c] sm:$0x1] %v2737
        %v2739 = vld [vmem:[#allocation2] sm:$0xf]
        %v2740 = vld [vmem:[#allocation2 + $0x8] sm:$0xf]
        %v2741 = vld [vmem:[#allocation2 + $0x10] sm:$0xf]
        %v2742 = vld [vmem:[#allocation2 + $0x18] sm:$0xf]
        %v2743 = vld [vmem:[#allocation2 + $0x20] sm:$0xf]
        %v2744 = vld [vmem:[#allocation2 + $0x28] sm:$0xf]
        %v2745 = vld [vmem:[#allocation2 + $0x30] sm:$0xf]
        %v2746 = vld [vmem:[#allocation2 + $0x38] sm:$0xf]
        %v2747 = vld [vmem:[#allocation8] sm:$0xf]
        %v2748 = vld [vmem:[#allocation8 + $0x4] sm:$0xf]
        %v2749 = vld [vmem:[#allocation8 + $0x8] sm:$0xf]
        %v2750 = vld [vmem:[#allocation8 + $0xc] sm:$0xf]
        %v2751 = vld [vmem:[#allocation8 + $0x10] sm:$0xf]
        %v2752 = vld [vmem:[#allocation8 + $0x14] sm:$0xf]
        %v2753 = vld [vmem:[#allocation8 + $0x18] sm:$0xf]
        %v2754 = vld [vmem:[#allocation8 + $0x1c] sm:$0xf]
        %v2755 = vld [vmem:[#allocation8 + $0x20] sm:$0xf]
        %v2756 = vld [vmem:[#allocation8 + $0x24] sm:$0xf]
        %v2757 = vld [vmem:[#allocation8 + $0x28] sm:$0xf]
        %v2758 = vld [vmem:[#allocation8 + $0x2c] sm:$0xf]
        %v2759 = vld [vmem:[#allocation8 + $0x30] sm:$0xf]
        %v2760 = vld [vmem:[#allocation8 + $0x34] sm:$0xf]
        %v2761 = vld [vmem:[#allocation8 + $0x38] sm:$0xf]
        %v2762 = vld [vmem:[#allocation8 + $0x3c] sm:$0xf]
        %v2763 = vld [vmem:[#allocation2 + $0x4] sm:$0x1]
        %v2764 = vld [vmem:[#allocation2 + $0xc] sm:$0x1]
        %v2765 = vld [vmem:[#allocation2 + $0x14] sm:$0x1]
        %v2766 = vld [vmem:[#allocation2 + $0x1c] sm:$0x1]
        %v2767 = vld [vmem:[#allocation2 + $0x24] sm:$0x1]
        %v2768 = vld [vmem:[#allocation2 + $0x2c] sm:$0x1]
        %v2769 = vld [vmem:[#allocation2 + $0x34] sm:$0x1]
        %v2770 = vld [vmem:[#allocation2 + $0x3c] sm:$0x1]
        %v2772 = vshrl.u32 %v2739, 16
        %v2774 = vrot.slane %v2772, 4
        %v2775 = vshll.u32 %v2739, 16
        %v2777 = vrot.slane %v2775, 5
        %v2778 = vor.u32 %v2774, %v2777
        %v2779 = vrot.slane %v2778, 4
        %v2781 = vshll.u32 %v2763, 16
        %v2783 = vrot.slane %v2781, 5
        %v2784 = vsel %vm571, %v2779, %v2783
        %v2786 = vshrl.u32 %v2740, 16
        %v2788 = vrot.slane %v2786, 4
        %v2789 = vshll.u32 %v2740, 16
        %v2791 = vrot.slane %v2789, 5
        %v2792 = vor.u32 %v2788, %v2791
        %v2793 = vrot.slane %v2792, 4
        %v2795 = vshll.u32 %v2764, 16
        %v2797 = vrot.slane %v2795, 5
        %v2798 = vsel %vm571, %v2793, %v2797
        %v2800 = vshrl.u32 %v2741, 16
        %v2802 = vrot.slane %v2800, 4
        %v2803 = vshll.u32 %v2741, 16
        %v2805 = vrot.slane %v2803, 5
        %v2806 = vor.u32 %v2802, %v2805
        %v2807 = vrot.slane %v2806, 4
        %v2809 = vshll.u32 %v2765, 16
        %v2811 = vrot.slane %v2809, 5
        %v2812 = vsel %vm571, %v2807, %v2811
        %v2814 = vshrl.u32 %v2742, 16
        %v2816 = vrot.slane %v2814, 4
        %v2817 = vshll.u32 %v2742, 16
        %v2819 = vrot.slane %v2817, 5
        %v2820 = vor.u32 %v2816, %v2819
        %v2821 = vrot.slane %v2820, 4
        %v2823 = vshll.u32 %v2766, 16
        %v2825 = vrot.slane %v2823, 5
        %v2826 = vsel %vm571, %v2821, %v2825
        %v2828 = vshrl.u32 %v2743, 16
        %v2830 = vrot.slane %v2828, 4
        %v2831 = vshll.u32 %v2743, 16
        %v2833 = vrot.slane %v2831, 5
        %v2834 = vor.u32 %v2830, %v2833
        %v2835 = vrot.slane %v2834, 4
        %v2837 = vshll.u32 %v2767, 16
        %v2839 = vrot.slane %v2837, 5
        %v2840 = vsel %vm571, %v2835, %v2839
        %v2842 = vshrl.u32 %v2744, 16
        %v2844 = vrot.slane %v2842, 4
        %v2845 = vshll.u32 %v2744, 16
        %v2847 = vrot.slane %v2845, 5
        %v2848 = vor.u32 %v2844, %v2847
        %v2849 = vrot.slane %v2848, 4
        %v2851 = vshll.u32 %v2768, 16
        %v2853 = vrot.slane %v2851, 5
        %v2854 = vsel %vm571, %v2849, %v2853
        %v2856 = vshrl.u32 %v2745, 16
        %v2858 = vrot.slane %v2856, 4
        %v2859 = vshll.u32 %v2745, 16
        %v2861 = vrot.slane %v2859, 5
        %v2862 = vor.u32 %v2858, %v2861
        %v2863 = vrot.slane %v2862, 4
        %v2865 = vshll.u32 %v2769, 16
        %v2867 = vrot.slane %v2865, 5
        %v2868 = vsel %vm571, %v2863, %v2867
        %v2870 = vshrl.u32 %v2746, 16
        %v2872 = vrot.slane %v2870, 4
        %v2873 = vshll.u32 %v2746, 16
        %v2875 = vrot.slane %v2873, 5
        %v2876 = vor.u32 %v2872, %v2875
        %v2877 = vrot.slane %v2876, 4
        %v2879 = vshll.u32 %v2770, 16
        %v2881 = vrot.slane %v2879, 5
        %v2882 = vsel %vm571, %v2877, %v2881
        %s2883 = scalar_lea.vmem [#allocation8], 64
        %v2884 = vld [vmem:[%s2883] sm:$0xf]
        %v2885 = vld [vmem:[%s2883 + $0x4] sm:$0xf]
        %v2886 = vld [vmem:[%s2883 + $0x8] sm:$0xf]
        %v2887 = vld [vmem:[%s2883 + $0xc] sm:$0xf]
        %v2888 = vld [vmem:[%s2883 + $0x10] sm:$0xf]
        %v2889 = vld [vmem:[%s2883 + $0x14] sm:$0xf]
        %v2890 = vld [vmem:[%s2883 + $0x18] sm:$0xf]
        %v2891 = vld [vmem:[%s2883 + $0x1c] sm:$0xf]
        %v2892 = vld [vmem:[%s2883 + $0x20] sm:$0xf]
        %v2893 = vld [vmem:[%s2883 + $0x24] sm:$0xf]
        %v2894 = vld [vmem:[%s2883 + $0x28] sm:$0xf]
        %v2895 = vld [vmem:[%s2883 + $0x2c] sm:$0xf]
        %v2896 = vld [vmem:[%s2883 + $0x30] sm:$0xf]
        %v2897 = vld [vmem:[%s2883 + $0x34] sm:$0xf]
        %v2898 = vld [vmem:[%s2883 + $0x38] sm:$0xf]
        %v2899 = vld [vmem:[%s2883 + $0x3c] sm:$0xf]
        %v2900 = vunpack.c.l.b16 %v2784
        %v2901 = vunpack.c.l.b16 %v2798
        %v2902 = vunpack.c.l.b16 %v2812
        %v2903 = vunpack.c.l.b16 %v2826
        %v2904 = vunpack.c.l.b16 %v2840
        %v2905 = vunpack.c.l.b16 %v2854
        %v2906 = vunpack.c.l.b16 %v2868
        %v2907 = vunpack.c.l.b16 %v2882
        %v2908 = vpack.c.b16 %v2901, %v2900
        %v2909 = vpack.c.b16 %v2903, %v2902
        %v2910 = vpack.c.b16 %v2905, %v2904
        %v2911 = vpack.c.b16 %v2907, %v2906
        %v2932 = vunpack.c.l.b16 %v2884
        %v2933 = vunpack.c.l.b16 %v2885
        %v2934 = vunpack.c.l.b16 %v2886
        %v2935 = vunpack.c.l.b16 %v2887
        %v2936 = vunpack.c.l.b16 %v2888
        %v2937 = vunpack.c.l.b16 %v2889
        %v2938 = vunpack.c.l.b16 %v2890
        %v2939 = vunpack.c.l.b16 %v2891
        %v2940 = vunpack.c.l.b16 %v2892
        %v2941 = vunpack.c.l.b16 %v2893
        %v2942 = vunpack.c.l.b16 %v2894
        %v2943 = vunpack.c.l.b16 %v2895
        %v2944 = vunpack.c.l.b16 %v2896
        %v2945 = vunpack.c.l.b16 %v2897
        %v2946 = vunpack.c.l.b16 %v2898
        %v2947 = vunpack.c.l.b16 %v2899
        %v2948 = vpack.c.b16 %v2933, %v2932
        %v2949 = vpack.c.b16 %v2935, %v2934
        %v2950 = vpack.c.b16 %v2937, %v2936
        %v2951 = vpack.c.b16 %v2939, %v2938
        %v2952 = vpack.c.b16 %v2941, %v2940
        %v2953 = vpack.c.b16 %v2943, %v2942
        %v2954 = vpack.c.b16 %v2945, %v2944
        %v2955 = vpack.c.b16 %v2947, %v2946
        %2964 = vmatprep.subr.bf16.mxu0 0
        %2965 = vmatpush1.bf16.msra.mxu0 %v2955
        %2966 = vmatprep.subr.bf16.mxu0 0
        %2967 = vmatpush1.bf16.msra.mxu0 %v2954
        %2968 = vmatprep.subr.bf16.mxu0 0
        %2969 = vmatpush1.bf16.msra.mxu0 %v2953
        %2970 = vmatprep.subr.bf16.mxu0 0
        %2971 = vmatpush1.bf16.msra.mxu0 %v2952
        %2972 = vmatprep.subr.bf16.mxu0 0
        %2973 = vmatpush1.bf16.msra.mxu0 %v2951
        %2974 = vmatprep.subr.bf16.mxu0 0
        %2975 = vmatpush1.bf16.msra.mxu0 %v2950
        %2976 = vmatprep.subr.bf16.mxu0 0
        %2977 = vmatpush1.bf16.msra.mxu0 %v2949
        %2978 = vmatprep.subr.bf16.mxu0 0
        %2979 = vmatpush1.bf16.msra.mxu0 %v2948
        %2980 = vmatprep.subr.bf16.mxu0 0
        %2981 = vmatpush2.bf16.msra.mxu0 0
        %2982 = vmatprep.subr.bf16.mxu0 0
        %2983 = vmatpush2.bf16.msra.mxu0 0
        %2984 = vmatprep.subr.bf16.mxu0 0
        %2985 = vmatpush2.bf16.msra.mxu0 0
        %2986 = vmatprep.subr.bf16.mxu0 0
        %2987 = vmatpush2.bf16.msra.mxu0 0
        %2988 = vmatprep.subr.bf16.mxu0 0
        %2989 = vmatpush2.bf16.msra.mxu0 0
        %2990 = vmatprep.subr.bf16.mxu0 0
        %2991 = vmatpush2.bf16.msra.mxu0 0
        %2992 = vmatprep.subr.bf16.mxu0 0
        %2993 = vmatpush2.bf16.msra.mxu0 0
        %2994 = vmatprep.subr.bf16.mxu0 0
        %2995 = vmatpush2.bf16.msra.mxu0 0
        %2996 = vmatprep.mubr.bf16.mxu0 0
        %2997 = vmatmul.mubr.bf16.gmra.mxu0 %v2908
        %v2998 = vpop.f32.mrf.mxu0
        %v2999 = vadd.f32 0.0, %v2998
        %v3000 = vpop.f32.mrf.mxu0
        %v3001 = vpop.f32.mrf.mxu0
        %v3002 = vadd.f32 0.0, %v3001
        %v3003 = vpop.f32.mrf.mxu0
        %3004 = vmatprep.mubr.bf16.mxu0 0
        %3005 = vmatmul.mubr.bf16.gmra.mxu0 %v2909
        %v3006 = vpop.f32.mrf.mxu0
        %v3007 = vadd.f32 0.0, %v3006
        %v3008 = vpop.f32.mrf.mxu0
        %v3009 = vpop.f32.mrf.mxu0
        %v3010 = vadd.f32 0.0, %v3009
        %v3011 = vpop.f32.mrf.mxu0
        %3012 = vmatprep.mubr.bf16.mxu0 0
        %3013 = vmatmul.mubr.bf16.gmra.mxu0 %v2910
        %v3014 = vpop.f32.mrf.mxu0
        %v3015 = vadd.f32 0.0, %v3014
        %v3016 = vpop.f32.mrf.mxu0
        %v3017 = vpop.f32.mrf.mxu0
        %v3018 = vadd.f32 0.0, %v3017
        %v3019 = vpop.f32.mrf.mxu0
        %3020 = vmatprep.mubr.bf16.mxu0 0
        %3021 = vmatmul.mubr.bf16.gmra.mxu0 %v2911
        %v3022 = vpop.f32.mrf.mxu0
        %v3023 = vadd.f32 0.0, %v3022
        %v3024 = vpop.f32.mrf.mxu0
        %v3025 = vpop.f32.mrf.mxu0
        %v3026 = vadd.f32 0.0, %v3025
        %v3027 = vpop.f32.mrf.mxu0
        %3028 = vdwg.mxu0
        %v3037 = vunpack.c.l.b16 %v2739
        %v3038 = vunpack.c.l.b16 %v2740
        %v3039 = vunpack.c.l.b16 %v2741
        %v3040 = vunpack.c.l.b16 %v2742
        %v3041 = vunpack.c.l.b16 %v2743
        %v3042 = vunpack.c.l.b16 %v2744
        %v3043 = vunpack.c.l.b16 %v2745
        %v3044 = vunpack.c.l.b16 %v2746
        %v3045 = vpack.c.b16 %v3038, %v3037
        %v3046 = vpack.c.b16 %v3040, %v3039
        %v3047 = vpack.c.b16 %v3042, %v3041
        %v3048 = vpack.c.b16 %v3044, %v3043
        %v3069 = vunpack.c.l.b16 %v2747
        %v3070 = vunpack.c.l.b16 %v2748
        %v3071 = vunpack.c.l.b16 %v2749
        %v3072 = vunpack.c.l.b16 %v2750
        %v3073 = vunpack.c.l.b16 %v2751
        %v3074 = vunpack.c.l.b16 %v2752
        %v3075 = vunpack.c.l.b16 %v2753
        %v3076 = vunpack.c.l.b16 %v2754
        %v3077 = vunpack.c.l.b16 %v2755
        %v3078 = vunpack.c.l.b16 %v2756
        %v3079 = vunpack.c.l.b16 %v2757
        %v3080 = vunpack.c.l.b16 %v2758
        %v3081 = vunpack.c.l.b16 %v2759
        %v3082 = vunpack.c.l.b16 %v2760
        %v3083 = vunpack.c.l.b16 %v2761
        %v3084 = vunpack.c.l.b16 %v2762
        %v3085 = vpack.c.b16 %v3070, %v3069
        %v3086 = vpack.c.b16 %v3072, %v3071
        %v3087 = vpack.c.b16 %v3074, %v3073
        %v3088 = vpack.c.b16 %v3076, %v3075
        %v3089 = vpack.c.b16 %v3078, %v3077
        %v3090 = vpack.c.b16 %v3080, %v3079
        %v3091 = vpack.c.b16 %v3082, %v3081
        %v3092 = vpack.c.b16 %v3084, %v3083
        %3101 = vmatprep.subr.bf16.mxu0 0
        %3102 = vmatpush1.bf16.msra.mxu0 %v3092
        %3103 = vmatprep.subr.bf16.mxu0 0
        %3104 = vmatpush1.bf16.msra.mxu0 %v3091
        %3105 = vmatprep.subr.bf16.mxu0 0
        %3106 = vmatpush1.bf16.msra.mxu0 %v3090
        %3107 = vmatprep.subr.bf16.mxu0 0
        %3108 = vmatpush1.bf16.msra.mxu0 %v3089
        %3109 = vmatprep.subr.bf16.mxu0 0
        %3110 = vmatpush1.bf16.msra.mxu0 %v3088
        %3111 = vmatprep.subr.bf16.mxu0 0
        %3112 = vmatpush1.bf16.msra.mxu0 %v3087
        %3113 = vmatprep.subr.bf16.mxu0 0
        %3114 = vmatpush1.bf16.msra.mxu0 %v3086
        %3115 = vmatprep.subr.bf16.mxu0 0
        %3116 = vmatpush1.bf16.msra.mxu0 %v3085
        %3117 = vmatprep.subr.bf16.mxu0 0
        %3118 = vmatpush2.bf16.msra.mxu0 0
        %3119 = vmatprep.subr.bf16.mxu0 0
        %3120 = vmatpush2.bf16.msra.mxu0 0
        %3121 = vmatprep.subr.bf16.mxu0 0
        %3122 = vmatpush2.bf16.msra.mxu0 0
        %3123 = vmatprep.subr.bf16.mxu0 0
        %3124 = vmatpush2.bf16.msra.mxu0 0
        %3125 = vmatprep.subr.bf16.mxu0 0
        %3126 = vmatpush2.bf16.msra.mxu0 0
        %3127 = vmatprep.subr.bf16.mxu0 0
        %3128 = vmatpush2.bf16.msra.mxu0 0
        %3129 = vmatprep.subr.bf16.mxu0 0
        %3130 = vmatpush2.bf16.msra.mxu0 0
        %3131 = vmatprep.subr.bf16.mxu0 0
        %3132 = vmatpush2.bf16.msra.mxu0 0
        %3133 = vmatprep.mubr.bf16.mxu0 0
        %3134 = vmatmul.mubr.bf16.gmra.mxu0 %v3045
        %v3135 = vpop.f32.mrf.mxu0
        %v3136 = vadd.f32 %v2999, %v3135
        %v3137 = vpop.f32.mrf.mxu0
        %v3138 = vpop.f32.mrf.mxu0
        %v3139 = vadd.f32 %v3002, %v3138
        %v3140 = vpop.f32.mrf.mxu0
        %3141 = vmatprep.mubr.bf16.mxu0 0
        %3142 = vmatmul.mubr.bf16.gmra.mxu0 %v3046
        %v3143 = vpop.f32.mrf.mxu0
        %v3144 = vadd.f32 %v3007, %v3143
        %v3145 = vpop.f32.mrf.mxu0
        %v3146 = vpop.f32.mrf.mxu0
        %v3147 = vadd.f32 %v3010, %v3146
        %v3148 = vpop.f32.mrf.mxu0
        %3149 = vmatprep.mubr.bf16.mxu0 0
        %3150 = vmatmul.mubr.bf16.gmra.mxu0 %v3047
        %v3151 = vpop.f32.mrf.mxu0
        %v3152 = vadd.f32 %v3015, %v3151
        %v3153 = vpop.f32.mrf.mxu0
        %v3154 = vpop.f32.mrf.mxu0
        %v3155 = vadd.f32 %v3018, %v3154
        %v3156 = vpop.f32.mrf.mxu0
        %3157 = vmatprep.mubr.bf16.mxu0 0
        %3158 = vmatmul.mubr.bf16.gmra.mxu0 %v3048
        %v3159 = vpop.f32.mrf.mxu0
        %v3160 = vadd.f32 %v3023, %v3159
        %v3161 = vpop.f32.mrf.mxu0
        %v3162 = vpop.f32.mrf.mxu0
        %v3163 = vadd.f32 %v3026, %v3162
        %v3164 = vpop.f32.mrf.mxu0
        %3165 = vdwg.mxu0
        %v3166 = vld [vmem:[#allocation2] sm:$0xe]
        %v3167 = vld [vmem:[#allocation2 + $0x8] sm:$0xe]
        %v3168 = vld [vmem:[#allocation2 + $0x10] sm:$0xe]
        %v3169 = vld [vmem:[#allocation2 + $0x18] sm:$0xe]
        %v3170 = vld [vmem:[#allocation2 + $0x20] sm:$0xe]
        %v3171 = vld [vmem:[#allocation2 + $0x28] sm:$0xe]
        %v3172 = vld [vmem:[#allocation2 + $0x30] sm:$0xe]
        %v3173 = vld [vmem:[#allocation2 + $0x38] sm:$0xe]
        %v3190 = vrot.slane %v3166, 5
        %v3191 = vrot.slane %v3190, 4
        %v3192 = vrot.slane %v2763, 5
        %v3193 = vsel %vm993, %v3191, %v3192
        %v3194 = vrot.slane %v3167, 5
        %v3195 = vrot.slane %v3194, 4
        %v3196 = vrot.slane %v2764, 5
        %v3197 = vsel %vm993, %v3195, %v3196
        %v3198 = vrot.slane %v3168, 5
        %v3199 = vrot.slane %v3198, 4
        %v3200 = vrot.slane %v2765, 5
        %v3201 = vsel %vm993, %v3199, %v3200
        %v3202 = vrot.slane %v3169, 5
        %v3203 = vrot.slane %v3202, 4
        %v3204 = vrot.slane %v2766, 5
        %v3205 = vsel %vm993, %v3203, %v3204
        %v3206 = vrot.slane %v3170, 5
        %v3207 = vrot.slane %v3206, 4
        %v3208 = vrot.slane %v2767, 5
        %v3209 = vsel %vm993, %v3207, %v3208
        %v3210 = vrot.slane %v3171, 5
        %v3211 = vrot.slane %v3210, 4
        %v3212 = vrot.slane %v2768, 5
        %v3213 = vsel %vm993, %v3211, %v3212
        %v3214 = vrot.slane %v3172, 5
        %v3215 = vrot.slane %v3214, 4
        %v3216 = vrot.slane %v2769, 5
        %v3217 = vsel %vm993, %v3215, %v3216
        %v3218 = vrot.slane %v3173, 5
        %v3219 = vrot.slane %v3218, 4
        %v3220 = vrot.slane %v2770, 5
        %v3221 = vsel %vm993, %v3219, %v3220
        %s3222 = scalar_lea.vmem [#allocation8], 128
        %v3223 = vld [vmem:[%s3222] sm:$0xf]
        %v3224 = vld [vmem:[%s3222 + $0x4] sm:$0xf]
        %v3225 = vld [vmem:[%s3222 + $0x8] sm:$0xf]
        %v3226 = vld [vmem:[%s3222 + $0xc] sm:$0xf]
        %v3227 = vld [vmem:[%s3222 + $0x10] sm:$0xf]
        %v3228 = vld [vmem:[%s3222 + $0x14] sm:$0xf]
        %v3229 = vld [vmem:[%s3222 + $0x18] sm:$0xf]
        %v3230 = vld [vmem:[%s3222 + $0x1c] sm:$0xf]
        %v3231 = vld [vmem:[%s3222 + $0x20] sm:$0xf]
        %v3232 = vld [vmem:[%s3222 + $0x24] sm:$0xf]
        %v3233 = vld [vmem:[%s3222 + $0x28] sm:$0xf]
        %v3234 = vld [vmem:[%s3222 + $0x2c] sm:$0xf]
        %v3235 = vld [vmem:[%s3222 + $0x30] sm:$0xf]
        %v3236 = vld [vmem:[%s3222 + $0x34] sm:$0xf]
        %v3237 = vld [vmem:[%s3222 + $0x38] sm:$0xf]
        %v3238 = vld [vmem:[%s3222 + $0x3c] sm:$0xf]
        %v3239 = vunpack.c.l.b16 %v3193
        %v3240 = vunpack.c.l.b16 %v3197
        %v3241 = vunpack.c.l.b16 %v3201
        %v3242 = vunpack.c.l.b16 %v3205
        %v3243 = vunpack.c.l.b16 %v3209
        %v3244 = vunpack.c.l.b16 %v3213
        %v3245 = vunpack.c.l.b16 %v3217
        %v3246 = vunpack.c.l.b16 %v3221
        %v3247 = vpack.c.b16 %v3240, %v3239
        %v3248 = vpack.c.b16 %v3242, %v3241
        %v3249 = vpack.c.b16 %v3244, %v3243
        %v3250 = vpack.c.b16 %v3246, %v3245
        %v3271 = vunpack.c.l.b16 %v3223
        %v3272 = vunpack.c.l.b16 %v3224
        %v3273 = vunpack.c.l.b16 %v3225
        %v3274 = vunpack.c.l.b16 %v3226
        %v3275 = vunpack.c.l.b16 %v3227
        %v3276 = vunpack.c.l.b16 %v3228
        %v3277 = vunpack.c.l.b16 %v3229
        %v3278 = vunpack.c.l.b16 %v3230
        %v3279 = vunpack.c.l.b16 %v3231
        %v3280 = vunpack.c.l.b16 %v3232
        %v3281 = vunpack.c.l.b16 %v3233
        %v3282 = vunpack.c.l.b16 %v3234
        %v3283 = vunpack.c.l.b16 %v3235
        %v3284 = vunpack.c.l.b16 %v3236
        %v3285 = vunpack.c.l.b16 %v3237
        %v3286 = vunpack.c.l.b16 %v3238
        %v3287 = vpack.c.b16 %v3272, %v3271
        %v3288 = vpack.c.b16 %v3274, %v3273
        %v3289 = vpack.c.b16 %v3276, %v3275
        %v3290 = vpack.c.b16 %v3278, %v3277
        %v3291 = vpack.c.b16 %v3280, %v3279
        %v3292 = vpack.c.b16 %v3282, %v3281
        %v3293 = vpack.c.b16 %v3284, %v3283
        %v3294 = vpack.c.b16 %v3286, %v3285
        %3303 = vmatprep.subr.bf16.mxu0 0
        %3304 = vmatpush1.bf16.msra.mxu0 %v3294
        %3305 = vmatprep.subr.bf16.mxu0 0
        %3306 = vmatpush1.bf16.msra.mxu0 %v3293
        %3307 = vmatprep.subr.bf16.mxu0 0
        %3308 = vmatpush1.bf16.msra.mxu0 %v3292
        %3309 = vmatprep.subr.bf16.mxu0 0
        %3310 = vmatpush1.bf16.msra.mxu0 %v3291
        %3311 = vmatprep.subr.bf16.mxu0 0
        %3312 = vmatpush1.bf16.msra.mxu0 %v3290
        %3313 = vmatprep.subr.bf16.mxu0 0
        %3314 = vmatpush1.bf16.msra.mxu0 %v3289
        %3315 = vmatprep.subr.bf16.mxu0 0
        %3316 = vmatpush1.bf16.msra.mxu0 %v3288
        %3317 = vmatprep.subr.bf16.mxu0 0
        %3318 = vmatpush1.bf16.msra.mxu0 %v3287
        %3319 = vmatprep.subr.bf16.mxu0 0
        %3320 = vmatpush2.bf16.msra.mxu0 0
        %3321 = vmatprep.subr.bf16.mxu0 0
        %3322 = vmatpush2.bf16.msra.mxu0 0
        %3323 = vmatprep.subr.bf16.mxu0 0
        %3324 = vmatpush2.bf16.msra.mxu0 0
        %3325 = vmatprep.subr.bf16.mxu0 0
        %3326 = vmatpush2.bf16.msra.mxu0 0
        %3327 = vmatprep.subr.bf16.mxu0 0
        %3328 = vmatpush2.bf16.msra.mxu0 0
        %3329 = vmatprep.subr.bf16.mxu0 0
        %3330 = vmatpush2.bf16.msra.mxu0 0
        %3331 = vmatprep.subr.bf16.mxu0 0
        %3332 = vmatpush2.bf16.msra.mxu0 0
        %3333 = vmatprep.subr.bf16.mxu0 0
        %3334 = vmatpush2.bf16.msra.mxu0 0
        %3335 = vmatprep.mubr.bf16.mxu0 0
        %3336 = vmatmul.mubr.bf16.gmra.mxu0 %v3247
        %v3337 = vpop.f32.mrf.mxu0
        %v3338 = vadd.f32 0.0, %v3337
        %v3339 = vpop.f32.mrf.mxu0
        %v3340 = vpop.f32.mrf.mxu0
        %v3341 = vadd.f32 0.0, %v3340
        %v3342 = vpop.f32.mrf.mxu0
        %3343 = vmatprep.mubr.bf16.mxu0 0
        %3344 = vmatmul.mubr.bf16.gmra.mxu0 %v3248
        %v3345 = vpop.f32.mrf.mxu0
        %v3346 = vadd.f32 0.0, %v3345
        %v3347 = vpop.f32.mrf.mxu0
        %v3348 = vpop.f32.mrf.mxu0
        %v3349 = vadd.f32 0.0, %v3348
        %v3350 = vpop.f32.mrf.mxu0
        %3351 = vmatprep.mubr.bf16.mxu0 0
        %3352 = vmatmul.mubr.bf16.gmra.mxu0 %v3249
        %v3353 = vpop.f32.mrf.mxu0
        %v3354 = vadd.f32 0.0, %v3353
        %v3355 = vpop.f32.mrf.mxu0
        %v3356 = vpop.f32.mrf.mxu0
        %v3357 = vadd.f32 0.0, %v3356
        %v3358 = vpop.f32.mrf.mxu0
        %3359 = vmatprep.mubr.bf16.mxu0 0
        %3360 = vmatmul.mubr.bf16.gmra.mxu0 %v3250
        %v3361 = vpop.f32.mrf.mxu0
        %v3362 = vadd.f32 0.0, %v3361
        %v3363 = vpop.f32.mrf.mxu0
        %v3364 = vpop.f32.mrf.mxu0
        %v3365 = vadd.f32 0.0, %v3364
        %v3366 = vpop.f32.mrf.mxu0
        %3367 = vdwg.mxu0
        %v3368 = vadd.f32 %v3136, %v3338
        %v3369 = vadd.f32 %v3139, %v3341
        %v3370 = vadd.f32 %v3144, %v3346
        %v3371 = vadd.f32 %v3147, %v3349
        %v3372 = vadd.f32 %v3152, %v3354
        %v3373 = vadd.f32 %v3155, %v3357
        %v3374 = vadd.f32 %v3160, %v3362
        %v3375 = vadd.f32 %v3163, %v3365
        %v3376 = vld [vmem:[%s482] sm:$0xf]
        %v3377 = vld [vmem:[%s482 + $0x8] sm:$0xf]
        %v3378 = vld [vmem:[%s482 + $0x10] sm:$0xf]
        %v3379 = vld [vmem:[%s482 + $0x18] sm:$0xf]
        %v3380 = vld [vmem:[%s482 + $0x20] sm:$0xf]
        %v3381 = vld [vmem:[%s482 + $0x28] sm:$0xf]
        %v3382 = vld [vmem:[%s482 + $0x30] sm:$0xf]
        %v3383 = vld [vmem:[%s482 + $0x38] sm:$0xf]
        %s3384 = scalar_lea.vmem [#allocation8], 192
        %v3385 = vld [vmem:[%s3384] sm:$0xf]
        %v3386 = vld [vmem:[%s3384 + $0x4] sm:$0xf]
        %v3387 = vld [vmem:[%s3384 + $0x8] sm:$0xf]
        %v3388 = vld [vmem:[%s3384 + $0xc] sm:$0xf]
        %v3389 = vld [vmem:[%s3384 + $0x10] sm:$0xf]
        %v3390 = vld [vmem:[%s3384 + $0x14] sm:$0xf]
        %v3391 = vld [vmem:[%s3384 + $0x18] sm:$0xf]
        %v3392 = vld [vmem:[%s3384 + $0x1c] sm:$0xf]
        %v3393 = vld [vmem:[%s3384 + $0x20] sm:$0xf]
        %v3394 = vld [vmem:[%s3384 + $0x24] sm:$0xf]
        %v3395 = vld [vmem:[%s3384 + $0x28] sm:$0xf]
        %v3396 = vld [vmem:[%s3384 + $0x2c] sm:$0xf]
        %v3397 = vld [vmem:[%s3384 + $0x30] sm:$0xf]
        %v3398 = vld [vmem:[%s3384 + $0x34] sm:$0xf]
        %v3399 = vld [vmem:[%s3384 + $0x38] sm:$0xf]
        %v3400 = vld [vmem:[%s3384 + $0x3c] sm:$0xf]
        %v3409 = vunpack.c.l.b16 %v3376
        %v3410 = vunpack.c.l.b16 %v3377
        %v3411 = vunpack.c.l.b16 %v3378
        %v3412 = vunpack.c.l.b16 %v3379
        %v3413 = vunpack.c.l.b16 %v3380
        %v3414 = vunpack.c.l.b16 %v3381
        %v3415 = vunpack.c.l.b16 %v3382
        %v3416 = vunpack.c.l.b16 %v3383
        %v3417 = vpack.c.b16 %v3410, %v3409
        %v3418 = vpack.c.b16 %v3412, %v3411
        %v3419 = vpack.c.b16 %v3414, %v3413
        %v3420 = vpack.c.b16 %v3416, %v3415
        %v3441 = vunpack.c.l.b16 %v3385
        %v3442 = vunpack.c.l.b16 %v3386
        %v3443 = vunpack.c.l.b16 %v3387
        %v3444 = vunpack.c.l.b16 %v3388
        %v3445 = vunpack.c.l.b16 %v3389
        %v3446 = vunpack.c.l.b16 %v3390
        %v3447 = vunpack.c.l.b16 %v3391
        %v3448 = vunpack.c.l.b16 %v3392
        %v3449 = vunpack.c.l.b16 %v3393
        %v3450 = vunpack.c.l.b16 %v3394
        %v3451 = vunpack.c.l.b16 %v3395
        %v3452 = vunpack.c.l.b16 %v3396
        %v3453 = vunpack.c.l.b16 %v3397
        %v3454 = vunpack.c.l.b16 %v3398
        %v3455 = vunpack.c.l.b16 %v3399
        %v3456 = vunpack.c.l.b16 %v3400
        %v3457 = vpack.c.b16 %v3442, %v3441
        %v3458 = vpack.c.b16 %v3444, %v3443
        %v3459 = vpack.c.b16 %v3446, %v3445
        %v3460 = vpack.c.b16 %v3448, %v3447
        %v3461 = vpack.c.b16 %v3450, %v3449
        %v3462 = vpack.c.b16 %v3452, %v3451
        %v3463 = vpack.c.b16 %v3454, %v3453
        %v3464 = vpack.c.b16 %v3456, %v3455
        %3473 = vmatprep.subr.bf16.mxu0 0
        %3474 = vmatpush1.bf16.msra.mxu0 %v3464
        %3475 = vmatprep.subr.bf16.mxu0 0
        %3476 = vmatpush1.bf16.msra.mxu0 %v3463
        %3477 = vmatprep.subr.bf16.mxu0 0
        %3478 = vmatpush1.bf16.msra.mxu0 %v3462
        %3479 = vmatprep.subr.bf16.mxu0 0
        %3480 = vmatpush1.bf16.msra.mxu0 %v3461
        %3481 = vmatprep.subr.bf16.mxu0 0
        %3482 = vmatpush1.bf16.msra.mxu0 %v3460
        %3483 = vmatprep.subr.bf16.mxu0 0
        %3484 = vmatpush1.bf16.msra.mxu0 %v3459
        %3485 = vmatprep.subr.bf16.mxu0 0
        %3486 = vmatpush1.bf16.msra.mxu0 %v3458
        %3487 = vmatprep.subr.bf16.mxu0 0
        %3488 = vmatpush1.bf16.msra.mxu0 %v3457
        %3489 = vmatprep.subr.bf16.mxu0 0
        %3490 = vmatpush2.bf16.msra.mxu0 0
        %3491 = vmatprep.subr.bf16.mxu0 0
        %3492 = vmatpush2.bf16.msra.mxu0 0
        %3493 = vmatprep.subr.bf16.mxu0 0
        %3494 = vmatpush2.bf16.msra.mxu0 0
        %3495 = vmatprep.subr.bf16.mxu0 0
        %3496 = vmatpush2.bf16.msra.mxu0 0
        %3497 = vmatprep.subr.bf16.mxu0 0
        %3498 = vmatpush2.bf16.msra.mxu0 0
        %3499 = vmatprep.subr.bf16.mxu0 0
        %3500 = vmatpush2.bf16.msra.mxu0 0
        %3501 = vmatprep.subr.bf16.mxu0 0
        %3502 = vmatpush2.bf16.msra.mxu0 0
        %3503 = vmatprep.subr.bf16.mxu0 0
        %3504 = vmatpush2.bf16.msra.mxu0 0
        %3505 = vmatprep.mubr.bf16.mxu0 0
        %3506 = vmatmul.mubr.bf16.gmra.mxu0 %v3417
        %v3507 = vpop.f32.mrf.mxu0
        %v3508 = vadd.f32 0.0, %v3507
        %v3509 = vpop.f32.mrf.mxu0
        %v3510 = vpop.f32.mrf.mxu0
        %v3511 = vadd.f32 0.0, %v3510
        %v3512 = vpop.f32.mrf.mxu0
        %3513 = vmatprep.mubr.bf16.mxu0 0
        %3514 = vmatmul.mubr.bf16.gmra.mxu0 %v3418
        %v3515 = vpop.f32.mrf.mxu0
        %v3516 = vadd.f32 0.0, %v3515
        %v3517 = vpop.f32.mrf.mxu0
        %v3518 = vpop.f32.mrf.mxu0
        %v3519 = vadd.f32 0.0, %v3518
        %v3520 = vpop.f32.mrf.mxu0
        %3521 = vmatprep.mubr.bf16.mxu0 0
        %3522 = vmatmul.mubr.bf16.gmra.mxu0 %v3419
        %v3523 = vpop.f32.mrf.mxu0
        %v3524 = vadd.f32 0.0, %v3523
        %v3525 = vpop.f32.mrf.mxu0
        %v3526 = vpop.f32.mrf.mxu0
        %v3527 = vadd.f32 0.0, %v3526
        %v3528 = vpop.f32.mrf.mxu0
        %3529 = vmatprep.mubr.bf16.mxu0 0
        %3530 = vmatmul.mubr.bf16.gmra.mxu0 %v3420
        %v3531 = vpop.f32.mrf.mxu0
        %v3532 = vadd.f32 0.0, %v3531
        %v3533 = vpop.f32.mrf.mxu0
        %v3534 = vpop.f32.mrf.mxu0
        %v3535 = vadd.f32 0.0, %v3534
        %v3536 = vpop.f32.mrf.mxu0
        %3537 = vdwg.mxu0
        %v3538 = vadd.f32 %v3368, %v3508
        %v3539 = vadd.f32 %v3369, %v3511
        %v3540 = vadd.f32 %v3370, %v3516
        %v3541 = vadd.f32 %v3371, %v3519
        %v3542 = vadd.f32 %v3372, %v3524
        %v3543 = vadd.f32 %v3373, %v3527
        %v3544 = vadd.f32 %v3374, %v3532
        %v3545 = vadd.f32 %v3375, %v3535
        %v3546 = vld [vmem:[%s482] sm:$0xf]
        %v3547 = vld [vmem:[%s482 + $0x4] sm:$0x1]
        %v3548 = vld [vmem:[%s482 + $0x8] sm:$0xf]
        %v3549 = vld [vmem:[%s482 + $0xc] sm:$0x1]
        %v3550 = vld [vmem:[%s482 + $0x10] sm:$0xf]
        %v3551 = vld [vmem:[%s482 + $0x14] sm:$0x1]
        %v3552 = vld [vmem:[%s482 + $0x18] sm:$0xf]
        %v3553 = vld [vmem:[%s482 + $0x1c] sm:$0x1]
        %v3554 = vld [vmem:[%s482 + $0x20] sm:$0xf]
        %v3555 = vld [vmem:[%s482 + $0x24] sm:$0x1]
        %v3556 = vld [vmem:[%s482 + $0x28] sm:$0xf]
        %v3557 = vld [vmem:[%s482 + $0x2c] sm:$0x1]
        %v3558 = vld [vmem:[%s482 + $0x30] sm:$0xf]
        %v3559 = vld [vmem:[%s482 + $0x34] sm:$0x1]
        %v3560 = vld [vmem:[%s482 + $0x38] sm:$0xf]
        %v3561 = vld [vmem:[%s482 + $0x3c] sm:$0x1]
        %v3563 = vshrl.u32 %v3546, 16
        %v3565 = vrot.slane %v3563, 4
        %v3566 = vshll.u32 %v3546, 16
        %v3568 = vrot.slane %v3566, 5
        %v3569 = vor.u32 %v3565, %v3568
        %v3570 = vrot.slane %v3569, 4
        %v3572 = vshll.u32 %v3547, 16
        %v3574 = vrot.slane %v3572, 5
        %v3575 = vsel %vm571, %v3570, %v3574
        %v3577 = vshrl.u32 %v3548, 16
        %v3579 = vrot.slane %v3577, 4
        %v3580 = vshll.u32 %v3548, 16
        %v3582 = vrot.slane %v3580, 5
        %v3583 = vor.u32 %v3579, %v3582
        %v3584 = vrot.slane %v3583, 4
        %v3586 = vshll.u32 %v3549, 16
        %v3588 = vrot.slane %v3586, 5
        %v3589 = vsel %vm571, %v3584, %v3588
        %v3591 = vshrl.u32 %v3550, 16
        %v3593 = vrot.slane %v3591, 4
        %v3594 = vshll.u32 %v3550, 16
        %v3596 = vrot.slane %v3594, 5
        %v3597 = vor.u32 %v3593, %v3596
        %v3598 = vrot.slane %v3597, 4
        %v3600 = vshll.u32 %v3551, 16
        %v3602 = vrot.slane %v3600, 5
        %v3603 = vsel %vm571, %v3598, %v3602
        %v3605 = vshrl.u32 %v3552, 16
        %v3607 = vrot.slane %v3605, 4
        %v3608 = vshll.u32 %v3552, 16
        %v3610 = vrot.slane %v3608, 5
        %v3611 = vor.u32 %v3607, %v3610
        %v3612 = vrot.slane %v3611, 4
        %v3614 = vshll.u32 %v3553, 16
        %v3616 = vrot.slane %v3614, 5
        %v3617 = vsel %vm571, %v3612, %v3616
        %v3619 = vshrl.u32 %v3554, 16
        %v3621 = vrot.slane %v3619, 4
        %v3622 = vshll.u32 %v3554, 16
        %v3624 = vrot.slane %v3622, 5
        %v3625 = vor.u32 %v3621, %v3624
        %v3626 = vrot.slane %v3625, 4
        %v3628 = vshll.u32 %v3555, 16
        %v3630 = vrot.slane %v3628, 5
        %v3631 = vsel %vm571, %v3626, %v3630
        %v3633 = vshrl.u32 %v3556, 16
        %v3635 = vrot.slane %v3633, 4
        %v3636 = vshll.u32 %v3556, 16
        %v3638 = vrot.slane %v3636, 5
        %v3639 = vor.u32 %v3635, %v3638
        %v3640 = vrot.slane %v3639, 4
        %v3642 = vshll.u32 %v3557, 16
        %v3644 = vrot.slane %v3642, 5
        %v3645 = vsel %vm571, %v3640, %v3644
        %v3647 = vshrl.u32 %v3558, 16
        %v3649 = vrot.slane %v3647, 4
        %v3650 = vshll.u32 %v3558, 16
        %v3652 = vrot.slane %v3650, 5
        %v3653 = vor.u32 %v3649, %v3652
        %v3654 = vrot.slane %v3653, 4
        %v3656 = vshll.u32 %v3559, 16
        %v3658 = vrot.slane %v3656, 5
        %v3659 = vsel %vm571, %v3654, %v3658
        %v3661 = vshrl.u32 %v3560, 16
        %v3663 = vrot.slane %v3661, 4
        %v3664 = vshll.u32 %v3560, 16
        %v3666 = vrot.slane %v3664, 5
        %v3667 = vor.u32 %v3663, %v3666
        %v3668 = vrot.slane %v3667, 4
        %v3670 = vshll.u32 %v3561, 16
        %v3672 = vrot.slane %v3670, 5
        %v3673 = vsel %vm571, %v3668, %v3672
        %s3674 = scalar_lea.vmem [#allocation8], 256
        %v3675 = vld [vmem:[%s3674] sm:$0xf]
        %v3676 = vld [vmem:[%s3674 + $0x4] sm:$0xf]
        %v3677 = vld [vmem:[%s3674 + $0x8] sm:$0xf]
        %v3678 = vld [vmem:[%s3674 + $0xc] sm:$0xf]
        %v3679 = vld [vmem:[%s3674 + $0x10] sm:$0xf]
        %v3680 = vld [vmem:[%s3674 + $0x14] sm:$0xf]
        %v3681 = vld [vmem:[%s3674 + $0x18] sm:$0xf]
        %v3682 = vld [vmem:[%s3674 + $0x1c] sm:$0xf]
        %v3683 = vld [vmem:[%s3674 + $0x20] sm:$0xf]
        %v3684 = vld [vmem:[%s3674 + $0x24] sm:$0xf]
        %v3685 = vld [vmem:[%s3674 + $0x28] sm:$0xf]
        %v3686 = vld [vmem:[%s3674 + $0x2c] sm:$0xf]
        %v3687 = vld [vmem:[%s3674 + $0x30] sm:$0xf]
        %v3688 = vld [vmem:[%s3674 + $0x34] sm:$0xf]
        %v3689 = vld [vmem:[%s3674 + $0x38] sm:$0xf]
        %v3690 = vld [vmem:[%s3674 + $0x3c] sm:$0xf]
        %v3691 = vunpack.c.l.b16 %v3575
        %v3692 = vunpack.c.l.b16 %v3589
        %v3693 = vunpack.c.l.b16 %v3603
        %v3694 = vunpack.c.l.b16 %v3617
        %v3695 = vunpack.c.l.b16 %v3631
        %v3696 = vunpack.c.l.b16 %v3645
        %v3697 = vunpack.c.l.b16 %v3659
        %v3698 = vunpack.c.l.b16 %v3673
        %v3699 = vpack.c.b16 %v3692, %v3691
        %v3700 = vpack.c.b16 %v3694, %v3693
        %v3701 = vpack.c.b16 %v3696, %v3695
        %v3702 = vpack.c.b16 %v3698, %v3697
        %v3723 = vunpack.c.l.b16 %v3675
        %v3724 = vunpack.c.l.b16 %v3676
        %v3725 = vunpack.c.l.b16 %v3677
        %v3726 = vunpack.c.l.b16 %v3678
        %v3727 = vunpack.c.l.b16 %v3679
        %v3728 = vunpack.c.l.b16 %v3680
        %v3729 = vunpack.c.l.b16 %v3681
        %v3730 = vunpack.c.l.b16 %v3682
        %v3731 = vunpack.c.l.b16 %v3683
        %v3732 = vunpack.c.l.b16 %v3684
        %v3733 = vunpack.c.l.b16 %v3685
        %v3734 = vunpack.c.l.b16 %v3686
        %v3735 = vunpack.c.l.b16 %v3687
        %v3736 = vunpack.c.l.b16 %v3688
        %v3737 = vunpack.c.l.b16 %v3689
        %v3738 = vunpack.c.l.b16 %v3690
        %v3739 = vpack.c.b16 %v3724, %v3723
        %v3740 = vpack.c.b16 %v3726, %v3725
        %v3741 = vpack.c.b16 %v3728, %v3727
        %v3742 = vpack.c.b16 %v3730, %v3729
        %v3743 = vpack.c.b16 %v3732, %v3731
        %v3744 = vpack.c.b16 %v3734, %v3733
        %v3745 = vpack.c.b16 %v3736, %v3735
        %v3746 = vpack.c.b16 %v3738, %v3737
        %3755 = vmatprep.subr.bf16.mxu0 0
        %3756 = vmatpush1.bf16.msra.mxu0 %v3746
        %3757 = vmatprep.subr.bf16.mxu0 0
        %3758 = vmatpush1.bf16.msra.mxu0 %v3745
        %3759 = vmatprep.subr.bf16.mxu0 0
        %3760 = vmatpush1.bf16.msra.mxu0 %v3744
        %3761 = vmatprep.subr.bf16.mxu0 0
        %3762 = vmatpush1.bf16.msra.mxu0 %v3743
        %3763 = vmatprep.subr.bf16.mxu0 0
        %3764 = vmatpush1.bf16.msra.mxu0 %v3742
        %3765 = vmatprep.subr.bf16.mxu0 0
        %3766 = vmatpush1.bf16.msra.mxu0 %v3741
        %3767 = vmatprep.subr.bf16.mxu0 0
        %3768 = vmatpush1.bf16.msra.mxu0 %v3740
        %3769 = vmatprep.subr.bf16.mxu0 0
        %3770 = vmatpush1.bf16.msra.mxu0 %v3739
        %3771 = vmatprep.subr.bf16.mxu0 0
        %3772 = vmatpush2.bf16.msra.mxu0 0
        %3773 = vmatprep.subr.bf16.mxu0 0
        %3774 = vmatpush2.bf16.msra.mxu0 0
        %3775 = vmatprep.subr.bf16.mxu0 0
        %3776 = vmatpush2.bf16.msra.mxu0 0
        %3777 = vmatprep.subr.bf16.mxu0 0
        %3778 = vmatpush2.bf16.msra.mxu0 0
        %3779 = vmatprep.subr.bf16.mxu0 0
        %3780 = vmatpush2.bf16.msra.mxu0 0
        %3781 = vmatprep.subr.bf16.mxu0 0
        %3782 = vmatpush2.bf16.msra.mxu0 0
        %3783 = vmatprep.subr.bf16.mxu0 0
        %3784 = vmatpush2.bf16.msra.mxu0 0
        %3785 = vmatprep.subr.bf16.mxu0 0
        %3786 = vmatpush2.bf16.msra.mxu0 0
        %3787 = vmatprep.mubr.bf16.mxu0 0
        %3788 = vmatmul.mubr.bf16.gmra.mxu0 %v3699
        %v3789 = vpop.f32.mrf.mxu0
        %v3790 = vadd.f32 0.0, %v3789
        %v3791 = vpop.f32.mrf.mxu0
        %v3792 = vpop.f32.mrf.mxu0
        %v3793 = vadd.f32 0.0, %v3792
        %v3794 = vpop.f32.mrf.mxu0
        %3795 = vmatprep.mubr.bf16.mxu0 0
        %3796 = vmatmul.mubr.bf16.gmra.mxu0 %v3700
        %v3797 = vpop.f32.mrf.mxu0
        %v3798 = vadd.f32 0.0, %v3797
        %v3799 = vpop.f32.mrf.mxu0
        %v3800 = vpop.f32.mrf.mxu0
        %v3801 = vadd.f32 0.0, %v3800
        %v3802 = vpop.f32.mrf.mxu0
        %3803 = vmatprep.mubr.bf16.mxu0 0
        %3804 = vmatmul.mubr.bf16.gmra.mxu0 %v3701
        %v3805 = vpop.f32.mrf.mxu0
        %v3806 = vadd.f32 0.0, %v3805
        %v3807 = vpop.f32.mrf.mxu0
        %v3808 = vpop.f32.mrf.mxu0
        %v3809 = vadd.f32 0.0, %v3808
        %v3810 = vpop.f32.mrf.mxu0
        %3811 = vmatprep.mubr.bf16.mxu0 0
        %3812 = vmatmul.mubr.bf16.gmra.mxu0 %v3702
        %v3813 = vpop.f32.mrf.mxu0
        %v3814 = vadd.f32 0.0, %v3813
        %v3815 = vpop.f32.mrf.mxu0
        %v3816 = vpop.f32.mrf.mxu0
        %v3817 = vadd.f32 0.0, %v3816
        %v3818 = vpop.f32.mrf.mxu0
        %3819 = vdwg.mxu0
        %v3820 = vadd.f32 %v3538, %v3790
        %v3821 = vadd.f32 %v3539, %v3793
        %v3822 = vadd.f32 %v3540, %v3798
        %v3823 = vadd.f32 %v3541, %v3801
        %v3824 = vadd.f32 %v3542, %v3806
        %v3825 = vadd.f32 %v3543, %v3809
        %v3826 = vadd.f32 %v3544, %v3814
        %v3827 = vadd.f32 %v3545, %v3817
        %v3828 = vld [vmem:[%s482] sm:$0xe]
        %v3829 = vld [vmem:[%s482 + $0x8] sm:$0xe]
        %v3830 = vld [vmem:[%s482 + $0x10] sm:$0xe]
        %v3831 = vld [vmem:[%s482 + $0x18] sm:$0xe]
        %v3832 = vld [vmem:[%s482 + $0x20] sm:$0xe]
        %v3833 = vld [vmem:[%s482 + $0x28] sm:$0xe]
        %v3834 = vld [vmem:[%s482 + $0x30] sm:$0xe]
        %v3835 = vld [vmem:[%s482 + $0x38] sm:$0xe]
        %v3852 = vrot.slane %v3828, 5
        %v3853 = vrot.slane %v3852, 4
        %v3854 = vrot.slane %v3547, 5
        %v3855 = vsel %vm993, %v3853, %v3854
        %v3856 = vrot.slane %v3829, 5
        %v3857 = vrot.slane %v3856, 4
        %v3858 = vrot.slane %v3549, 5
        %v3859 = vsel %vm993, %v3857, %v3858
        %v3860 = vrot.slane %v3830, 5
        %v3861 = vrot.slane %v3860, 4
        %v3862 = vrot.slane %v3551, 5
        %v3863 = vsel %vm993, %v3861, %v3862
        %v3864 = vrot.slane %v3831, 5
        %v3865 = vrot.slane %v3864, 4
        %v3866 = vrot.slane %v3553, 5
        %v3867 = vsel %vm993, %v3865, %v3866
        %v3868 = vrot.slane %v3832, 5
        %v3869 = vrot.slane %v3868, 4
        %v3870 = vrot.slane %v3555, 5
        %v3871 = vsel %vm993, %v3869, %v3870
        %v3872 = vrot.slane %v3833, 5
        %v3873 = vrot.slane %v3872, 4
        %v3874 = vrot.slane %v3557, 5
        %v3875 = vsel %vm993, %v3873, %v3874
        %v3876 = vrot.slane %v3834, 5
        %v3877 = vrot.slane %v3876, 4
        %v3878 = vrot.slane %v3559, 5
        %v3879 = vsel %vm993, %v3877, %v3878
        %v3880 = vrot.slane %v3835, 5
        %v3881 = vrot.slane %v3880, 4
        %v3882 = vrot.slane %v3561, 5
        %v3883 = vsel %vm993, %v3881, %v3882
        %s3884 = scalar_lea.vmem [#allocation8], 320
        %v3885 = vld [vmem:[%s3884] sm:$0xf]
        %v3886 = vld [vmem:[%s3884 + $0x4] sm:$0xf]
        %v3887 = vld [vmem:[%s3884 + $0x8] sm:$0xf]
        %v3888 = vld [vmem:[%s3884 + $0xc] sm:$0xf]
        %v3889 = vld [vmem:[%s3884 + $0x10] sm:$0xf]
        %v3890 = vld [vmem:[%s3884 + $0x14] sm:$0xf]
        %v3891 = vld [vmem:[%s3884 + $0x18] sm:$0xf]
        %v3892 = vld [vmem:[%s3884 + $0x1c] sm:$0xf]
        %v3893 = vld [vmem:[%s3884 + $0x20] sm:$0xf]
        %v3894 = vld [vmem:[%s3884 + $0x24] sm:$0xf]
        %v3895 = vld [vmem:[%s3884 + $0x28] sm:$0xf]
        %v3896 = vld [vmem:[%s3884 + $0x2c] sm:$0xf]
        %v3897 = vld [vmem:[%s3884 + $0x30] sm:$0xf]
        %v3898 = vld [vmem:[%s3884 + $0x34] sm:$0xf]
        %v3899 = vld [vmem:[%s3884 + $0x38] sm:$0xf]
        %v3900 = vld [vmem:[%s3884 + $0x3c] sm:$0xf]
        %v3901 = vunpack.c.l.b16 %v3855
        %v3902 = vunpack.c.l.b16 %v3859
        %v3903 = vunpack.c.l.b16 %v3863
        %v3904 = vunpack.c.l.b16 %v3867
        %v3905 = vunpack.c.l.b16 %v3871
        %v3906 = vunpack.c.l.b16 %v3875
        %v3907 = vunpack.c.l.b16 %v3879
        %v3908 = vunpack.c.l.b16 %v3883
        %v3909 = vpack.c.b16 %v3902, %v3901
        %v3910 = vpack.c.b16 %v3904, %v3903
        %v3911 = vpack.c.b16 %v3906, %v3905
        %v3912 = vpack.c.b16 %v3908, %v3907
        %v3933 = vunpack.c.l.b16 %v3885
        %v3934 = vunpack.c.l.b16 %v3886
        %v3935 = vunpack.c.l.b16 %v3887
        %v3936 = vunpack.c.l.b16 %v3888
        %v3937 = vunpack.c.l.b16 %v3889
        %v3938 = vunpack.c.l.b16 %v3890
        %v3939 = vunpack.c.l.b16 %v3891
        %v3940 = vunpack.c.l.b16 %v3892
        %v3941 = vunpack.c.l.b16 %v3893
        %v3942 = vunpack.c.l.b16 %v3894
        %v3943 = vunpack.c.l.b16 %v3895
        %v3944 = vunpack.c.l.b16 %v3896
        %v3945 = vunpack.c.l.b16 %v3897
        %v3946 = vunpack.c.l.b16 %v3898
        %v3947 = vunpack.c.l.b16 %v3899
        %v3948 = vunpack.c.l.b16 %v3900
        %v3949 = vpack.c.b16 %v3934, %v3933
        %v3950 = vpack.c.b16 %v3936, %v3935
        %v3951 = vpack.c.b16 %v3938, %v3937
        %v3952 = vpack.c.b16 %v3940, %v3939
        %v3953 = vpack.c.b16 %v3942, %v3941
        %v3954 = vpack.c.b16 %v3944, %v3943
        %v3955 = vpack.c.b16 %v3946, %v3945
        %v3956 = vpack.c.b16 %v3948, %v3947
        %3965 = vmatprep.subr.bf16.mxu0 0
        %3966 = vmatpush1.bf16.msra.mxu0 %v3956
        %3967 = vmatprep.subr.bf16.mxu0 0
        %3968 = vmatpush1.bf16.msra.mxu0 %v3955
        %3969 = vmatprep.subr.bf16.mxu0 0
        %3970 = vmatpush1.bf16.msra.mxu0 %v3954
        %3971 = vmatprep.subr.bf16.mxu0 0
        %3972 = vmatpush1.bf16.msra.mxu0 %v3953
        %3973 = vmatprep.subr.bf16.mxu0 0
        %3974 = vmatpush1.bf16.msra.mxu0 %v3952
        %3975 = vmatprep.subr.bf16.mxu0 0
        %3976 = vmatpush1.bf16.msra.mxu0 %v3951
        %3977 = vmatprep.subr.bf16.mxu0 0
        %3978 = vmatpush1.bf16.msra.mxu0 %v3950
        %3979 = vmatprep.subr.bf16.mxu0 0
        %3980 = vmatpush1.bf16.msra.mxu0 %v3949
        %3981 = vmatprep.subr.bf16.mxu0 0
        %3982 = vmatpush2.bf16.msra.mxu0 0
        %3983 = vmatprep.subr.bf16.mxu0 0
        %3984 = vmatpush2.bf16.msra.mxu0 0
        %3985 = vmatprep.subr.bf16.mxu0 0
        %3986 = vmatpush2.bf16.msra.mxu0 0
        %3987 = vmatprep.subr.bf16.mxu0 0
        %3988 = vmatpush2.bf16.msra.mxu0 0
        %3989 = vmatprep.subr.bf16.mxu0 0
        %3990 = vmatpush2.bf16.msra.mxu0 0
        %3991 = vmatprep.subr.bf16.mxu0 0
        %3992 = vmatpush2.bf16.msra.mxu0 0
        %3993 = vmatprep.subr.bf16.mxu0 0
        %3994 = vmatpush2.bf16.msra.mxu0 0
        %3995 = vmatprep.subr.bf16.mxu0 0
        %3996 = vmatpush2.bf16.msra.mxu0 0
        %3997 = vmatprep.mubr.bf16.mxu0 0
        %3998 = vmatmul.mubr.bf16.gmra.mxu0 %v3909
        %v3999 = vpop.f32.mrf.mxu0
        %v4000 = vadd.f32 0.0, %v3999
        %v4001 = vpop.f32.mrf.mxu0
        %v4002 = vpop.f32.mrf.mxu0
        %v4003 = vadd.f32 0.0, %v4002
        %v4004 = vpop.f32.mrf.mxu0
        %4005 = vmatprep.mubr.bf16.mxu0 0
        %4006 = vmatmul.mubr.bf16.gmra.mxu0 %v3910
        %v4007 = vpop.f32.mrf.mxu0
        %v4008 = vadd.f32 0.0, %v4007
        %v4009 = vpop.f32.mrf.mxu0
        %v4010 = vpop.f32.mrf.mxu0
        %v4011 = vadd.f32 0.0, %v4010
        %v4012 = vpop.f32.mrf.mxu0
        %4013 = vmatprep.mubr.bf16.mxu0 0
        %4014 = vmatmul.mubr.bf16.gmra.mxu0 %v3911
        %v4015 = vpop.f32.mrf.mxu0
        %v4016 = vadd.f32 0.0, %v4015
        %v4017 = vpop.f32.mrf.mxu0
        %v4018 = vpop.f32.mrf.mxu0
        %v4019 = vadd.f32 0.0, %v4018
        %v4020 = vpop.f32.mrf.mxu0
        %4021 = vmatprep.mubr.bf16.mxu0 0
        %4022 = vmatmul.mubr.bf16.gmra.mxu0 %v3912
        %v4023 = vpop.f32.mrf.mxu0
        %v4024 = vadd.f32 0.0, %v4023
        %v4025 = vpop.f32.mrf.mxu0
        %v4026 = vpop.f32.mrf.mxu0
        %v4027 = vadd.f32 0.0, %v4026
        %v4028 = vpop.f32.mrf.mxu0
        %4029 = vdwg.mxu0
        %v4030 = vadd.f32 %v3820, %v4000
        %v4031 = vadd.f32 %v3821, %v4003
        %v4032 = vadd.f32 %v3822, %v4008
        %v4033 = vadd.f32 %v3823, %v4011
        %v4034 = vadd.f32 %v3824, %v4016
        %v4035 = vadd.f32 %v3825, %v4019
        %v4036 = vadd.f32 %v3826, %v4024
        %v4037 = vadd.f32 %v3827, %v4027
        %v4038 = vld [vmem:[%s1842] sm:$0xf]
        %v4039 = vld [vmem:[%s1842 + $0x8] sm:$0xf]
        %v4040 = vld [vmem:[%s1842 + $0x10] sm:$0xf]
        %v4041 = vld [vmem:[%s1842 + $0x18] sm:$0xf]
        %v4042 = vld [vmem:[%s1842 + $0x20] sm:$0xf]
        %v4043 = vld [vmem:[%s1842 + $0x28] sm:$0xf]
        %v4044 = vld [vmem:[%s1842 + $0x30] sm:$0xf]
        %v4045 = vld [vmem:[%s1842 + $0x38] sm:$0xf]
        %s4046 = scalar_lea.vmem [#allocation8], 384
        %v4047 = vld [vmem:[%s4046] sm:$0xf]
        %v4048 = vld [vmem:[%s4046 + $0x4] sm:$0xf]
        %v4049 = vld [vmem:[%s4046 + $0x8] sm:$0xf]
        %v4050 = vld [vmem:[%s4046 + $0xc] sm:$0xf]
        %v4051 = vld [vmem:[%s4046 + $0x10] sm:$0xf]
        %v4052 = vld [vmem:[%s4046 + $0x14] sm:$0xf]
        %v4053 = vld [vmem:[%s4046 + $0x18] sm:$0xf]
        %v4054 = vld [vmem:[%s4046 + $0x1c] sm:$0xf]
        %v4055 = vld [vmem:[%s4046 + $0x20] sm:$0xf]
        %v4056 = vld [vmem:[%s4046 + $0x24] sm:$0xf]
        %v4057 = vld [vmem:[%s4046 + $0x28] sm:$0xf]
        %v4058 = vld [vmem:[%s4046 + $0x2c] sm:$0xf]
        %v4059 = vld [vmem:[%s4046 + $0x30] sm:$0xf]
        %v4060 = vld [vmem:[%s4046 + $0x34] sm:$0xf]
        %v4061 = vld [vmem:[%s4046 + $0x38] sm:$0xf]
        %v4062 = vld [vmem:[%s4046 + $0x3c] sm:$0xf]
        %v4071 = vunpack.c.l.b16 %v4038
        %v4072 = vunpack.c.l.b16 %v4039
        %v4073 = vunpack.c.l.b16 %v4040
        %v4074 = vunpack.c.l.b16 %v4041
        %v4075 = vunpack.c.l.b16 %v4042
        %v4076 = vunpack.c.l.b16 %v4043
        %v4077 = vunpack.c.l.b16 %v4044
        %v4078 = vunpack.c.l.b16 %v4045
        %v4079 = vpack.c.b16 %v4072, %v4071
        %v4080 = vpack.c.b16 %v4074, %v4073
        %v4081 = vpack.c.b16 %v4076, %v4075
        %v4082 = vpack.c.b16 %v4078, %v4077
        %v4103 = vunpack.c.l.b16 %v4047
        %v4104 = vunpack.c.l.b16 %v4048
        %v4105 = vunpack.c.l.b16 %v4049
        %v4106 = vunpack.c.l.b16 %v4050
        %v4107 = vunpack.c.l.b16 %v4051
        %v4108 = vunpack.c.l.b16 %v4052
        %v4109 = vunpack.c.l.b16 %v4053
        %v4110 = vunpack.c.l.b16 %v4054
        %v4111 = vunpack.c.l.b16 %v4055
        %v4112 = vunpack.c.l.b16 %v4056
        %v4113 = vunpack.c.l.b16 %v4057
        %v4114 = vunpack.c.l.b16 %v4058
        %v4115 = vunpack.c.l.b16 %v4059
        %v4116 = vunpack.c.l.b16 %v4060
        %v4117 = vunpack.c.l.b16 %v4061
        %v4118 = vunpack.c.l.b16 %v4062
        %v4119 = vpack.c.b16 %v4104, %v4103
        %v4120 = vpack.c.b16 %v4106, %v4105
        %v4121 = vpack.c.b16 %v4108, %v4107
        %v4122 = vpack.c.b16 %v4110, %v4109
        %v4123 = vpack.c.b16 %v4112, %v4111
        %v4124 = vpack.c.b16 %v4114, %v4113
        %v4125 = vpack.c.b16 %v4116, %v4115
        %v4126 = vpack.c.b16 %v4118, %v4117
        %4135 = vmatprep.subr.bf16.mxu0 0
        %4136 = vmatpush1.bf16.msra.mxu0 %v4126
        %4137 = vmatprep.subr.bf16.mxu0 0
        %4138 = vmatpush1.bf16.msra.mxu0 %v4125
        %4139 = vmatprep.subr.bf16.mxu0 0
        %4140 = vmatpush1.bf16.msra.mxu0 %v4124
        %4141 = vmatprep.subr.bf16.mxu0 0
        %4142 = vmatpush1.bf16.msra.mxu0 %v4123
        %4143 = vmatprep.subr.bf16.mxu0 0
        %4144 = vmatpush1.bf16.msra.mxu0 %v4122
        %4145 = vmatprep.subr.bf16.mxu0 0
        %4146 = vmatpush1.bf16.msra.mxu0 %v4121
        %4147 = vmatprep.subr.bf16.mxu0 0
        %4148 = vmatpush1.bf16.msra.mxu0 %v4120
        %4149 = vmatprep.subr.bf16.mxu0 0
        %4150 = vmatpush1.bf16.msra.mxu0 %v4119
        %4151 = vmatprep.subr.bf16.mxu0 0
        %4152 = vmatpush2.bf16.msra.mxu0 0
        %4153 = vmatprep.subr.bf16.mxu0 0
        %4154 = vmatpush2.bf16.msra.mxu0 0
        %4155 = vmatprep.subr.bf16.mxu0 0
        %4156 = vmatpush2.bf16.msra.mxu0 0
        %4157 = vmatprep.subr.bf16.mxu0 0
        %4158 = vmatpush2.bf16.msra.mxu0 0
        %4159 = vmatprep.subr.bf16.mxu0 0
        %4160 = vmatpush2.bf16.msra.mxu0 0
        %4161 = vmatprep.subr.bf16.mxu0 0
        %4162 = vmatpush2.bf16.msra.mxu0 0
        %4163 = vmatprep.subr.bf16.mxu0 0
        %4164 = vmatpush2.bf16.msra.mxu0 0
        %4165 = vmatprep.subr.bf16.mxu0 0
        %4166 = vmatpush2.bf16.msra.mxu0 0
        %4167 = vmatprep.mubr.bf16.mxu0 0
        %4168 = vmatmul.mubr.bf16.gmra.mxu0 %v4079
        %v4169 = vpop.f32.mrf.mxu0
        %v4170 = vadd.f32 0.0, %v4169
        %v4171 = vpop.f32.mrf.mxu0
        %v4172 = vpop.f32.mrf.mxu0
        %v4173 = vadd.f32 0.0, %v4172
        %v4174 = vpop.f32.mrf.mxu0
        %4175 = vmatprep.mubr.bf16.mxu0 0
        %4176 = vmatmul.mubr.bf16.gmra.mxu0 %v4080
        %v4177 = vpop.f32.mrf.mxu0
        %v4178 = vadd.f32 0.0, %v4177
        %v4179 = vpop.f32.mrf.mxu0
        %v4180 = vpop.f32.mrf.mxu0
        %v4181 = vadd.f32 0.0, %v4180
        %v4182 = vpop.f32.mrf.mxu0
        %4183 = vmatprep.mubr.bf16.mxu0 0
        %4184 = vmatmul.mubr.bf16.gmra.mxu0 %v4081
        %v4185 = vpop.f32.mrf.mxu0
        %v4186 = vadd.f32 0.0, %v4185
        %v4187 = vpop.f32.mrf.mxu0
        %v4188 = vpop.f32.mrf.mxu0
        %v4189 = vadd.f32 0.0, %v4188
        %v4190 = vpop.f32.mrf.mxu0
        %4191 = vmatprep.mubr.bf16.mxu0 0
        %4192 = vmatmul.mubr.bf16.gmra.mxu0 %v4082
        %v4193 = vpop.f32.mrf.mxu0
        %v4194 = vadd.f32 0.0, %v4193
        %v4195 = vpop.f32.mrf.mxu0
        %v4196 = vpop.f32.mrf.mxu0
        %v4197 = vadd.f32 0.0, %v4196
        %v4198 = vpop.f32.mrf.mxu0
        %4199 = vdwg.mxu0
        %v4200 = vadd.f32 %v4030, %v4170
        %v4201 = vadd.f32 %v4031, %v4173
        %v4202 = vadd.f32 %v4032, %v4178
        %v4203 = vadd.f32 %v4033, %v4181
        %v4204 = vadd.f32 %v4034, %v4186
        %v4205 = vadd.f32 %v4035, %v4189
        %v4206 = vadd.f32 %v4036, %v4194
        %v4207 = vadd.f32 %v4037, %v4197
        %v4208 = vld [vmem:[%s1842] sm:$0xf]
        %v4209 = vld [vmem:[%s1842 + $0x4] sm:$0x1]
        %v4210 = vld [vmem:[%s1842 + $0x8] sm:$0xf]
        %v4211 = vld [vmem:[%s1842 + $0xc] sm:$0x1]
        %v4212 = vld [vmem:[%s1842 + $0x10] sm:$0xf]
        %v4213 = vld [vmem:[%s1842 + $0x14] sm:$0x1]
        %v4214 = vld [vmem:[%s1842 + $0x18] sm:$0xf]
        %v4215 = vld [vmem:[%s1842 + $0x1c] sm:$0x1]
        %v4216 = vld [vmem:[%s1842 + $0x20] sm:$0xf]
        %v4217 = vld [vmem:[%s1842 + $0x24] sm:$0x1]
        %v4218 = vld [vmem:[%s1842 + $0x28] sm:$0xf]
        %v4219 = vld [vmem:[%s1842 + $0x2c] sm:$0x1]
        %v4220 = vld [vmem:[%s1842 + $0x30] sm:$0xf]
        %v4221 = vld [vmem:[%s1842 + $0x34] sm:$0x1]
        %v4222 = vld [vmem:[%s1842 + $0x38] sm:$0xf]
        %v4223 = vld [vmem:[%s1842 + $0x3c] sm:$0x1]
        %v4225 = vshrl.u32 %v4208, 16
        %v4227 = vrot.slane %v4225, 4
        %v4228 = vshll.u32 %v4208, 16
        %v4230 = vrot.slane %v4228, 5
        %v4231 = vor.u32 %v4227, %v4230
        %v4232 = vrot.slane %v4231, 4
        %v4234 = vshll.u32 %v4209, 16
        %v4236 = vrot.slane %v4234, 5
        %v4237 = vsel %vm571, %v4232, %v4236
        %v4239 = vshrl.u32 %v4210, 16
        %v4241 = vrot.slane %v4239, 4
        %v4242 = vshll.u32 %v4210, 16
        %v4244 = vrot.slane %v4242, 5
        %v4245 = vor.u32 %v4241, %v4244
        %v4246 = vrot.slane %v4245, 4
        %v4248 = vshll.u32 %v4211, 16
        %v4250 = vrot.slane %v4248, 5
        %v4251 = vsel %vm571, %v4246, %v4250
        %v4253 = vshrl.u32 %v4212, 16
        %v4255 = vrot.slane %v4253, 4
        %v4256 = vshll.u32 %v4212, 16
        %v4258 = vrot.slane %v4256, 5
        %v4259 = vor.u32 %v4255, %v4258
        %v4260 = vrot.slane %v4259, 4
        %v4262 = vshll.u32 %v4213, 16
        %v4264 = vrot.slane %v4262, 5
        %v4265 = vsel %vm571, %v4260, %v4264
        %v4267 = vshrl.u32 %v4214, 16
        %v4269 = vrot.slane %v4267, 4
        %v4270 = vshll.u32 %v4214, 16
        %v4272 = vrot.slane %v4270, 5
        %v4273 = vor.u32 %v4269, %v4272
        %v4274 = vrot.slane %v4273, 4
        %v4276 = vshll.u32 %v4215, 16
        %v4278 = vrot.slane %v4276, 5
        %v4279 = vsel %vm571, %v4274, %v4278
        %v4281 = vshrl.u32 %v4216, 16
        %v4283 = vrot.slane %v4281, 4
        %v4284 = vshll.u32 %v4216, 16
        %v4286 = vrot.slane %v4284, 5
        %v4287 = vor.u32 %v4283, %v4286
        %v4288 = vrot.slane %v4287, 4
        %v4290 = vshll.u32 %v4217, 16
        %v4292 = vrot.slane %v4290, 5
        %v4293 = vsel %vm571, %v4288, %v4292
        %v4295 = vshrl.u32 %v4218, 16
        %v4297 = vrot.slane %v4295, 4
        %v4298 = vshll.u32 %v4218, 16
        %v4300 = vrot.slane %v4298, 5
        %v4301 = vor.u32 %v4297, %v4300
        %v4302 = vrot.slane %v4301, 4
        %v4304 = vshll.u32 %v4219, 16
        %v4306 = vrot.slane %v4304, 5
        %v4307 = vsel %vm571, %v4302, %v4306
        %v4309 = vshrl.u32 %v4220, 16
        %v4311 = vrot.slane %v4309, 4
        %v4312 = vshll.u32 %v4220, 16
        %v4314 = vrot.slane %v4312, 5
        %v4315 = vor.u32 %v4311, %v4314
        %v4316 = vrot.slane %v4315, 4
        %v4318 = vshll.u32 %v4221, 16
        %v4320 = vrot.slane %v4318, 5
        %v4321 = vsel %vm571, %v4316, %v4320
        %v4323 = vshrl.u32 %v4222, 16
        %v4325 = vrot.slane %v4323, 4
        %v4326 = vshll.u32 %v4222, 16
        %v4328 = vrot.slane %v4326, 5
        %v4329 = vor.u32 %v4325, %v4328
        %v4330 = vrot.slane %v4329, 4
        %v4332 = vshll.u32 %v4223, 16
        %v4334 = vrot.slane %v4332, 5
        %v4335 = vsel %vm571, %v4330, %v4334
        %s4336 = scalar_lea.vmem [#allocation8], 448
        %v4337 = vld [vmem:[%s4336] sm:$0xf]
        %v4338 = vld [vmem:[%s4336 + $0x4] sm:$0xf]
        %v4339 = vld [vmem:[%s4336 + $0x8] sm:$0xf]
        %v4340 = vld [vmem:[%s4336 + $0xc] sm:$0xf]
        %v4341 = vld [vmem:[%s4336 + $0x10] sm:$0xf]
        %v4342 = vld [vmem:[%s4336 + $0x14] sm:$0xf]
        %v4343 = vld [vmem:[%s4336 + $0x18] sm:$0xf]
        %v4344 = vld [vmem:[%s4336 + $0x1c] sm:$0xf]
        %v4345 = vld [vmem:[%s4336 + $0x20] sm:$0xf]
        %v4346 = vld [vmem:[%s4336 + $0x24] sm:$0xf]
        %v4347 = vld [vmem:[%s4336 + $0x28] sm:$0xf]
        %v4348 = vld [vmem:[%s4336 + $0x2c] sm:$0xf]
        %v4349 = vld [vmem:[%s4336 + $0x30] sm:$0xf]
        %v4350 = vld [vmem:[%s4336 + $0x34] sm:$0xf]
        %v4351 = vld [vmem:[%s4336 + $0x38] sm:$0xf]
        %v4352 = vld [vmem:[%s4336 + $0x3c] sm:$0xf]
        %v4353 = vunpack.c.l.b16 %v4237
        %v4354 = vunpack.c.l.b16 %v4251
        %v4355 = vunpack.c.l.b16 %v4265
        %v4356 = vunpack.c.l.b16 %v4279
        %v4357 = vunpack.c.l.b16 %v4293
        %v4358 = vunpack.c.l.b16 %v4307
        %v4359 = vunpack.c.l.b16 %v4321
        %v4360 = vunpack.c.l.b16 %v4335
        %v4361 = vpack.c.b16 %v4354, %v4353
        %v4362 = vpack.c.b16 %v4356, %v4355
        %v4363 = vpack.c.b16 %v4358, %v4357
        %v4364 = vpack.c.b16 %v4360, %v4359
        %v4385 = vunpack.c.l.b16 %v4337
        %v4386 = vunpack.c.l.b16 %v4338
        %v4387 = vunpack.c.l.b16 %v4339
        %v4388 = vunpack.c.l.b16 %v4340
        %v4389 = vunpack.c.l.b16 %v4341
        %v4390 = vunpack.c.l.b16 %v4342
        %v4391 = vunpack.c.l.b16 %v4343
        %v4392 = vunpack.c.l.b16 %v4344
        %v4393 = vunpack.c.l.b16 %v4345
        %v4394 = vunpack.c.l.b16 %v4346
        %v4395 = vunpack.c.l.b16 %v4347
        %v4396 = vunpack.c.l.b16 %v4348
        %v4397 = vunpack.c.l.b16 %v4349
        %v4398 = vunpack.c.l.b16 %v4350
        %v4399 = vunpack.c.l.b16 %v4351
        %v4400 = vunpack.c.l.b16 %v4352
        %v4401 = vpack.c.b16 %v4386, %v4385
        %v4402 = vpack.c.b16 %v4388, %v4387
        %v4403 = vpack.c.b16 %v4390, %v4389
        %v4404 = vpack.c.b16 %v4392, %v4391
        %v4405 = vpack.c.b16 %v4394, %v4393
        %v4406 = vpack.c.b16 %v4396, %v4395
        %v4407 = vpack.c.b16 %v4398, %v4397
        %v4408 = vpack.c.b16 %v4400, %v4399
        %4417 = vmatprep.subr.bf16.mxu0 0
        %4418 = vmatpush1.bf16.msra.mxu0 %v4408
        %4419 = vmatprep.subr.bf16.mxu0 0
        %4420 = vmatpush1.bf16.msra.mxu0 %v4407
        %4421 = vmatprep.subr.bf16.mxu0 0
        %4422 = vmatpush1.bf16.msra.mxu0 %v4406
        %4423 = vmatprep.subr.bf16.mxu0 0
        %4424 = vmatpush1.bf16.msra.mxu0 %v4405
        %4425 = vmatprep.subr.bf16.mxu0 0
        %4426 = vmatpush1.bf16.msra.mxu0 %v4404
        %4427 = vmatprep.subr.bf16.mxu0 0
        %4428 = vmatpush1.bf16.msra.mxu0 %v4403
        %4429 = vmatprep.subr.bf16.mxu0 0
        %4430 = vmatpush1.bf16.msra.mxu0 %v4402
        %4431 = vmatprep.subr.bf16.mxu0 0
        %4432 = vmatpush1.bf16.msra.mxu0 %v4401
        %4433 = vmatprep.subr.bf16.mxu0 0
        %4434 = vmatpush2.bf16.msra.mxu0 0
        %4435 = vmatprep.subr.bf16.mxu0 0
        %4436 = vmatpush2.bf16.msra.mxu0 0
        %4437 = vmatprep.subr.bf16.mxu0 0
        %4438 = vmatpush2.bf16.msra.mxu0 0
        %4439 = vmatprep.subr.bf16.mxu0 0
        %4440 = vmatpush2.bf16.msra.mxu0 0
        %4441 = vmatprep.subr.bf16.mxu0 0
        %4442 = vmatpush2.bf16.msra.mxu0 0
        %4443 = vmatprep.subr.bf16.mxu0 0
        %4444 = vmatpush2.bf16.msra.mxu0 0
        %4445 = vmatprep.subr.bf16.mxu0 0
        %4446 = vmatpush2.bf16.msra.mxu0 0
        %4447 = vmatprep.subr.bf16.mxu0 0
        %4448 = vmatpush2.bf16.msra.mxu0 0
        %4449 = vmatprep.mubr.bf16.mxu0 0
        %4450 = vmatmul.mubr.bf16.gmra.mxu0 %v4361
        %v4451 = vpop.f32.mrf.mxu0
        %v4452 = vadd.f32 0.0, %v4451
        %v4453 = vpop.f32.mrf.mxu0
        %v4454 = vpop.f32.mrf.mxu0
        %v4455 = vadd.f32 0.0, %v4454
        %v4456 = vpop.f32.mrf.mxu0
        %4457 = vmatprep.mubr.bf16.mxu0 0
        %4458 = vmatmul.mubr.bf16.gmra.mxu0 %v4362
        %v4459 = vpop.f32.mrf.mxu0
        %v4460 = vadd.f32 0.0, %v4459
        %v4461 = vpop.f32.mrf.mxu0
        %v4462 = vpop.f32.mrf.mxu0
        %v4463 = vadd.f32 0.0, %v4462
        %v4464 = vpop.f32.mrf.mxu0
        %4465 = vmatprep.mubr.bf16.mxu0 0
        %4466 = vmatmul.mubr.bf16.gmra.mxu0 %v4363
        %v4467 = vpop.f32.mrf.mxu0
        %v4468 = vadd.f32 0.0, %v4467
        %v4469 = vpop.f32.mrf.mxu0
        %v4470 = vpop.f32.mrf.mxu0
        %v4471 = vadd.f32 0.0, %v4470
        %v4472 = vpop.f32.mrf.mxu0
        %4473 = vmatprep.mubr.bf16.mxu0 0
        %4474 = vmatmul.mubr.bf16.gmra.mxu0 %v4364
        %v4475 = vpop.f32.mrf.mxu0
        %v4476 = vadd.f32 0.0, %v4475
        %v4477 = vpop.f32.mrf.mxu0
        %v4478 = vpop.f32.mrf.mxu0
        %v4479 = vadd.f32 0.0, %v4478
        %v4480 = vpop.f32.mrf.mxu0
        %4481 = vdwg.mxu0
        %v4482 = vadd.f32 %v4200, %v4452
        %v4483 = vadd.f32 %v4201, %v4455
        %v4484 = vadd.f32 %v4202, %v4460
        %v4485 = vadd.f32 %v4203, %v4463
        %v4486 = vadd.f32 %v4204, %v4468
        %v4487 = vadd.f32 %v4205, %v4471
        %v4488 = vadd.f32 %v4206, %v4476
        %v4489 = vadd.f32 %v4207, %v4479
        %v4490 = vld [vmem:[%s1842] sm:$0xe]
        %v4491 = vld [vmem:[%s1842 + $0x8] sm:$0xe]
        %v4492 = vld [vmem:[%s1842 + $0x10] sm:$0xe]
        %v4493 = vld [vmem:[%s1842 + $0x18] sm:$0xe]
        %v4494 = vld [vmem:[%s1842 + $0x20] sm:$0xe]
        %v4495 = vld [vmem:[%s1842 + $0x28] sm:$0xe]
        %v4496 = vld [vmem:[%s1842 + $0x30] sm:$0xe]
        %v4497 = vld [vmem:[%s1842 + $0x38] sm:$0xe]
        %v4514 = vrot.slane %v4490, 5
        %v4515 = vrot.slane %v4514, 4
        %v4516 = vrot.slane %v4209, 5
        %v4517 = vsel %vm993, %v4515, %v4516
        %v4518 = vrot.slane %v4491, 5
        %v4519 = vrot.slane %v4518, 4
        %v4520 = vrot.slane %v4211, 5
        %v4521 = vsel %vm993, %v4519, %v4520
        %v4522 = vrot.slane %v4492, 5
        %v4523 = vrot.slane %v4522, 4
        %v4524 = vrot.slane %v4213, 5
        %v4525 = vsel %vm993, %v4523, %v4524
        %v4526 = vrot.slane %v4493, 5
        %v4527 = vrot.slane %v4526, 4
        %v4528 = vrot.slane %v4215, 5
        %v4529 = vsel %vm993, %v4527, %v4528
        %v4530 = vrot.slane %v4494, 5
        %v4531 = vrot.slane %v4530, 4
        %v4532 = vrot.slane %v4217, 5
        %v4533 = vsel %vm993, %v4531, %v4532
        %v4534 = vrot.slane %v4495, 5
        %v4535 = vrot.slane %v4534, 4
        %v4536 = vrot.slane %v4219, 5
        %v4537 = vsel %vm993, %v4535, %v4536
        %v4538 = vrot.slane %v4496, 5
        %v4539 = vrot.slane %v4538, 4
        %v4540 = vrot.slane %v4221, 5
        %v4541 = vsel %vm993, %v4539, %v4540
        %v4542 = vrot.slane %v4497, 5
        %v4543 = vrot.slane %v4542, 4
        %v4544 = vrot.slane %v4223, 5
        %v4545 = vsel %vm993, %v4543, %v4544
        %s4546 = scalar_lea.vmem [#allocation8], 512
        %v4547 = vld [vmem:[%s4546] sm:$0xf]
        %v4548 = vld [vmem:[%s4546 + $0x4] sm:$0xf]
        %v4549 = vld [vmem:[%s4546 + $0x8] sm:$0xf]
        %v4550 = vld [vmem:[%s4546 + $0xc] sm:$0xf]
        %v4551 = vld [vmem:[%s4546 + $0x10] sm:$0xf]
        %v4552 = vld [vmem:[%s4546 + $0x14] sm:$0xf]
        %v4553 = vld [vmem:[%s4546 + $0x18] sm:$0xf]
        %v4554 = vld [vmem:[%s4546 + $0x1c] sm:$0xf]
        %v4555 = vld [vmem:[%s4546 + $0x20] sm:$0xf]
        %v4556 = vld [vmem:[%s4546 + $0x24] sm:$0xf]
        %v4557 = vld [vmem:[%s4546 + $0x28] sm:$0xf]
        %v4558 = vld [vmem:[%s4546 + $0x2c] sm:$0xf]
        %v4559 = vld [vmem:[%s4546 + $0x30] sm:$0xf]
        %v4560 = vld [vmem:[%s4546 + $0x34] sm:$0xf]
        %v4561 = vld [vmem:[%s4546 + $0x38] sm:$0xf]
        %v4562 = vld [vmem:[%s4546 + $0x3c] sm:$0xf]
        %v4563 = vunpack.c.l.b16 %v4517
        %v4564 = vunpack.c.l.b16 %v4521
        %v4565 = vunpack.c.l.b16 %v4525
        %v4566 = vunpack.c.l.b16 %v4529
        %v4567 = vunpack.c.l.b16 %v4533
        %v4568 = vunpack.c.l.b16 %v4537
        %v4569 = vunpack.c.l.b16 %v4541
        %v4570 = vunpack.c.l.b16 %v4545
        %v4571 = vpack.c.b16 %v4564, %v4563
        %v4572 = vpack.c.b16 %v4566, %v4565
        %v4573 = vpack.c.b16 %v4568, %v4567
        %v4574 = vpack.c.b16 %v4570, %v4569
        %v4595 = vunpack.c.l.b16 %v4547
        %v4596 = vunpack.c.l.b16 %v4548
        %v4597 = vunpack.c.l.b16 %v4549
        %v4598 = vunpack.c.l.b16 %v4550
        %v4599 = vunpack.c.l.b16 %v4551
        %v4600 = vunpack.c.l.b16 %v4552
        %v4601 = vunpack.c.l.b16 %v4553
        %v4602 = vunpack.c.l.b16 %v4554
        %v4603 = vunpack.c.l.b16 %v4555
        %v4604 = vunpack.c.l.b16 %v4556
        %v4605 = vunpack.c.l.b16 %v4557
        %v4606 = vunpack.c.l.b16 %v4558
        %v4607 = vunpack.c.l.b16 %v4559
        %v4608 = vunpack.c.l.b16 %v4560
        %v4609 = vunpack.c.l.b16 %v4561
        %v4610 = vunpack.c.l.b16 %v4562
        %v4611 = vpack.c.b16 %v4596, %v4595
        %v4612 = vpack.c.b16 %v4598, %v4597
        %v4613 = vpack.c.b16 %v4600, %v4599
        %v4614 = vpack.c.b16 %v4602, %v4601
        %v4615 = vpack.c.b16 %v4604, %v4603
        %v4616 = vpack.c.b16 %v4606, %v4605
        %v4617 = vpack.c.b16 %v4608, %v4607
        %v4618 = vpack.c.b16 %v4610, %v4609
        %4627 = vmatprep.subr.bf16.mxu0 0
        %4628 = vmatpush1.bf16.msra.mxu0 %v4618
        %4629 = vmatprep.subr.bf16.mxu0 0
        %4630 = vmatpush1.bf16.msra.mxu0 %v4617
        %4631 = vmatprep.subr.bf16.mxu0 0
        %4632 = vmatpush1.bf16.msra.mxu0 %v4616
        %4633 = vmatprep.subr.bf16.mxu0 0
        %4634 = vmatpush1.bf16.msra.mxu0 %v4615
        %4635 = vmatprep.subr.bf16.mxu0 0
        %4636 = vmatpush1.bf16.msra.mxu0 %v4614
        %4637 = vmatprep.subr.bf16.mxu0 0
        %4638 = vmatpush1.bf16.msra.mxu0 %v4613
        %4639 = vmatprep.subr.bf16.mxu0 0
        %4640 = vmatpush1.bf16.msra.mxu0 %v4612
        %4641 = vmatprep.subr.bf16.mxu0 0
        %4642 = vmatpush1.bf16.msra.mxu0 %v4611
        %4643 = vmatprep.subr.bf16.mxu0 0
        %4644 = vmatpush2.bf16.msra.mxu0 0
        %4645 = vmatprep.subr.bf16.mxu0 0
        %4646 = vmatpush2.bf16.msra.mxu0 0
        %4647 = vmatprep.subr.bf16.mxu0 0
        %4648 = vmatpush2.bf16.msra.mxu0 0
        %4649 = vmatprep.subr.bf16.mxu0 0
        %4650 = vmatpush2.bf16.msra.mxu0 0
        %4651 = vmatprep.subr.bf16.mxu0 0
        %4652 = vmatpush2.bf16.msra.mxu0 0
        %4653 = vmatprep.subr.bf16.mxu0 0
        %4654 = vmatpush2.bf16.msra.mxu0 0
        %4655 = vmatprep.subr.bf16.mxu0 0
        %4656 = vmatpush2.bf16.msra.mxu0 0
        %4657 = vmatprep.subr.bf16.mxu0 0
        %4658 = vmatpush2.bf16.msra.mxu0 0
        %4659 = vmatprep.mubr.bf16.mxu0 0
        %4660 = vmatmul.mubr.bf16.gmra.mxu0 %v4571
        %v4661 = vpop.f32.mrf.mxu0
        %v4662 = vadd.f32 0.0, %v4661
        %v4663 = vpop.f32.mrf.mxu0
        %v4664 = vpop.f32.mrf.mxu0
        %v4665 = vadd.f32 0.0, %v4664
        %v4666 = vpop.f32.mrf.mxu0
        %4667 = vmatprep.mubr.bf16.mxu0 0
        %4668 = vmatmul.mubr.bf16.gmra.mxu0 %v4572
        %v4669 = vpop.f32.mrf.mxu0
        %v4670 = vadd.f32 0.0, %v4669
        %v4671 = vpop.f32.mrf.mxu0
        %v4672 = vpop.f32.mrf.mxu0
        %v4673 = vadd.f32 0.0, %v4672
        %v4674 = vpop.f32.mrf.mxu0
        %4675 = vmatprep.mubr.bf16.mxu0 0
        %4676 = vmatmul.mubr.bf16.gmra.mxu0 %v4573
        %v4677 = vpop.f32.mrf.mxu0
        %v4678 = vadd.f32 0.0, %v4677
        %v4679 = vpop.f32.mrf.mxu0
        %v4680 = vpop.f32.mrf.mxu0
        %v4681 = vadd.f32 0.0, %v4680
        %v4682 = vpop.f32.mrf.mxu0
        %4683 = vmatprep.mubr.bf16.mxu0 0
        %4684 = vmatmul.mubr.bf16.gmra.mxu0 %v4574
        %v4685 = vpop.f32.mrf.mxu0
        %v4686 = vadd.f32 0.0, %v4685
        %v4687 = vpop.f32.mrf.mxu0
        %v4688 = vpop.f32.mrf.mxu0
        %v4689 = vadd.f32 0.0, %v4688
        %v4690 = vpop.f32.mrf.mxu0
        %4691 = vdwg.mxu0
        %v4692 = vadd.f32 %v4482, %v4662
        %v4693 = vadd.f32 %v4483, %v4665
        %v4694 = vadd.f32 %v4484, %v4670
        %v4695 = vadd.f32 %v4485, %v4673
        %v4696 = vadd.f32 %v4486, %v4678
        %v4697 = vadd.f32 %v4487, %v4681
        %v4698 = vadd.f32 %v4488, %v4686
        %v4699 = vadd.f32 %v4489, %v4689
        %v4700 = vld [vmem:[%s5] sm:$0x1]
        %v4702 = vlaneseq
        %v4703 = vshrl.u32 %v4702, 7
        %v4704 = vsub.s32 0, %v4703
        %v4705 = vrot.slane %v4700, %v4704
        %v4707 = vadd.f32 %v4692, %v4705
        %v4708 = vadd.f32 %v4693, %v4705
        %v4709 = vadd.f32 %v4694, %v4705
        %v4710 = vadd.f32 %v4695, %v4705
        %v4711 = vadd.f32 %v4696, %v4705
        %v4712 = vadd.f32 %v4697, %v4705
        %v4713 = vadd.f32 %v4698, %v4705
        %v4714 = vadd.f32 %v4699, %v4705
        %v4715 = vxor.u32 %v4707, 2147483648
        %v4716 = vxor.u32 %v4708, 2147483648
        %v4717 = vxor.u32 %v4709, 2147483648
        %v4718 = vxor.u32 %v4710, 2147483648
        %v4719 = vxor.u32 %v4711, 2147483648
        %v4720 = vxor.u32 %v4712, 2147483648
        %v4721 = vxor.u32 %v4713, 2147483648
        %v4722 = vxor.u32 %v4714, 2147483648
        %v4723 = vmul.f32 %v4715, 1.442695
        %v4724 = vpow.pop %v4723
        %v4725 = vmul.f32 %v4716, 1.442695
        %v4726 = vpow.pop %v4725
        %v4727 = vmul.f32 %v4717, 1.442695
        %v4728 = vpow.pop %v4727
        %v4729 = vmul.f32 %v4718, 1.442695
        %v4730 = vpow.pop %v4729
        %v4731 = vmul.f32 %v4719, 1.442695
        %v4732 = vpow.pop %v4731
        %v4733 = vmul.f32 %v4720, 1.442695
        %v4734 = vpow.pop %v4733
        %v4735 = vmul.f32 %v4721, 1.442695
        %v4736 = vpow.pop %v4735
        %v4737 = vmul.f32 %v4722, 1.442695
        %v4738 = vpow.pop %v4737
        %v4739 = vadd.f32 %v4724, 1.0
        %v4740 = vadd.f32 %v4726, 1.0
        %v4741 = vadd.f32 %v4728, 1.0
        %v4742 = vadd.f32 %v4730, 1.0
        %v4743 = vadd.f32 %v4732, 1.0
        %v4744 = vadd.f32 %v4734, 1.0
        %v4745 = vadd.f32 %v4736, 1.0
        %v4746 = vadd.f32 %v4738, 1.0
        %v4747 = vrcp.pop %v4739
        %v4748 = vmul.f32 1.0, %v4747
        %v4749 = vrcp.pop %v4740
        %v4750 = vmul.f32 1.0, %v4749
        %v4751 = vrcp.pop %v4741
        %v4752 = vmul.f32 1.0, %v4751
        %v4753 = vrcp.pop %v4742
        %v4754 = vmul.f32 1.0, %v4753
        %v4755 = vrcp.pop %v4743
        %v4756 = vmul.f32 1.0, %v4755
        %v4757 = vrcp.pop %v4744
        %v4758 = vmul.f32 1.0, %v4757
        %v4759 = vrcp.pop %v4745
        %v4760 = vmul.f32 1.0, %v4759
        %v4761 = vrcp.pop %v4746
        %v4762 = vmul.f32 1.0, %v4761
        %v4763 = vmul.f32 %v4707, %v4748
        %v4764 = vmul.f32 %v4708, %v4750
        %v4765 = vmul.f32 %v4709, %v4752
        %v4766 = vmul.f32 %v4710, %v4754
        %v4767 = vmul.f32 %v4711, %v4756
        %v4768 = vmul.f32 %v4712, %v4758
        %v4769 = vmul.f32 %v4713, %v4760
        %v4770 = vmul.f32 %v4714, %v4762
        %v4771 = vpack.c.bf16 %v4763, %v4763
        %v4772 = vpack.c.bf16 %v4764, %v4764
        %v4773 = vpack.c.bf16 %v4765, %v4765
        %v4774 = vpack.c.bf16 %v4766, %v4766
        %v4775 = vpack.c.bf16 %v4767, %v4767
        %v4776 = vpack.c.bf16 %v4768, %v4768
        %v4777 = vpack.c.bf16 %v4769, %v4769
        %v4778 = vpack.c.bf16 %v4770, %v4770
        %v4787 = vunpack.c.l.b16 %v4771
        %v4788 = vunpack.c.l.b16 %v4772
        %v4789 = vunpack.c.l.b16 %v4773
        %v4790 = vunpack.c.l.b16 %v4774
        %v4791 = vunpack.c.l.b16 %v4775
        %v4792 = vunpack.c.l.b16 %v4776
        %v4793 = vunpack.c.l.b16 %v4777
        %v4794 = vunpack.c.l.b16 %v4778
        %v4795 = vpack.c.b16 %v4787, %v4787
        %v4796 = vpack.c.b16 %v4788, %v4788
        %v4797 = vpack.c.b16 %v4789, %v4789
        %v4798 = vpack.c.b16 %v4790, %v4790
        %v4799 = vpack.c.b16 %v4791, %v4791
        %v4800 = vpack.c.b16 %v4792, %v4792
        %v4801 = vpack.c.b16 %v4793, %v4793
        %v4802 = vpack.c.b16 %v4794, %v4794
        %v4804 = vshrl.u32 %v4795, 16
        %v4806 = vrot.slane %v4804, 7
        %v4807 = vshll.u32 %v4795, 16
        %v4809 = vor.u32 %v4806, %v4807
        %v4810 = vrot.slane %v4806, 4
        %v4812 = vshrl.u32 %v4796, 16
        %v4814 = vrot.slane %v4812, 7
        %v4815 = vshll.u32 %v4796, 16
        %v4817 = vor.u32 %v4814, %v4815
        %v4818 = vrot.slane %v4814, 4
        %v4820 = vshrl.u32 %v4797, 16
        %v4822 = vrot.slane %v4820, 7
        %v4823 = vshll.u32 %v4797, 16
        %v4825 = vor.u32 %v4822, %v4823
        %v4826 = vrot.slane %v4822, 4
        %v4828 = vshrl.u32 %v4798, 16
        %v4830 = vrot.slane %v4828, 7
        %v4831 = vshll.u32 %v4798, 16
        %v4833 = vor.u32 %v4830, %v4831
        %v4834 = vrot.slane %v4830, 4
        %v4836 = vshrl.u32 %v4799, 16
        %v4838 = vrot.slane %v4836, 7
        %v4839 = vshll.u32 %v4799, 16
        %v4841 = vor.u32 %v4838, %v4839
        %v4842 = vrot.slane %v4838, 4
        %v4844 = vshrl.u32 %v4800, 16
        %v4846 = vrot.slane %v4844, 7
        %v4847 = vshll.u32 %v4800, 16
        %v4849 = vor.u32 %v4846, %v4847
        %v4850 = vrot.slane %v4846, 4
        %v4852 = vshrl.u32 %v4801, 16
        %v4854 = vrot.slane %v4852, 7
        %v4855 = vshll.u32 %v4801, 16
        %v4857 = vor.u32 %v4854, %v4855
        %v4858 = vrot.slane %v4854, 4
        %v4860 = vshrl.u32 %v4802, 16
        %v4862 = vrot.slane %v4860, 7
        %v4863 = vshll.u32 %v4802, 16
        %v4865 = vor.u32 %v4862, %v4863
        %v4866 = vrot.slane %v4862, 4
        %v4883 = vsel %vm2689, %v4809, %v3546
        %4884 = vst [vmem:[%s482] sm:$0xf] %v4883
        %v4885 = vld [vmem:[%s482 + $0x4] sm:$0x1]
        %v4886 = vsel %vm2693, %v4810, %v4885
        %4887 = vst [vmem:[%s482 + $0x4] sm:$0x1] %v4886
        %v4888 = vld [vmem:[%s482 + $0x8] sm:$0xf]
        %v4889 = vsel %vm2689, %v4817, %v4888
        %4890 = vst [vmem:[%s482 + $0x8] sm:$0xf] %v4889
        %v4891 = vld [vmem:[%s482 + $0xc] sm:$0x1]
        %v4892 = vsel %vm2693, %v4818, %v4891
        %4893 = vst [vmem:[%s482 + $0xc] sm:$0x1] %v4892
        %v4894 = vld [vmem:[%s482 + $0x10] sm:$0xf]
        %v4895 = vsel %vm2689, %v4825, %v4894
        %4896 = vst [vmem:[%s482 + $0x10] sm:$0xf] %v4895
        %v4897 = vld [vmem:[%s482 + $0x14] sm:$0x1]
        %v4898 = vsel %vm2693, %v4826, %v4897
        %4899 = vst [vmem:[%s482 + $0x14] sm:$0x1] %v4898
        %v4900 = vld [vmem:[%s482 + $0x18] sm:$0xf]
        %v4901 = vsel %vm2689, %v4833, %v4900
        %4902 = vst [vmem:[%s482 + $0x18] sm:$0xf] %v4901
        %v4903 = vld [vmem:[%s482 + $0x1c] sm:$0x1]
        %v4904 = vsel %vm2693, %v4834, %v4903
        %4905 = vst [vmem:[%s482 + $0x1c] sm:$0x1] %v4904
        %v4906 = vld [vmem:[%s482 + $0x20] sm:$0xf]
        %v4907 = vsel %vm2689, %v4841, %v4906
        %4908 = vst [vmem:[%s482 + $0x20] sm:$0xf] %v4907
        %v4909 = vld [vmem:[%s482 + $0x24] sm:$0x1]
        %v4910 = vsel %vm2693, %v4842, %v4909
        %4911 = vst [vmem:[%s482 + $0x24] sm:$0x1] %v4910
        %v4912 = vld [vmem:[%s482 + $0x28] sm:$0xf]
        %v4913 = vsel %vm2689, %v4849, %v4912
        %4914 = vst [vmem:[%s482 + $0x28] sm:$0xf] %v4913
        %v4915 = vld [vmem:[%s482 + $0x2c] sm:$0x1]
        %v4916 = vsel %vm2693, %v4850, %v4915
        %4917 = vst [vmem:[%s482 + $0x2c] sm:$0x1] %v4916
        %v4918 = vld [vmem:[%s482 + $0x30] sm:$0xf]
        %v4919 = vsel %vm2689, %v4857, %v4918
        %4920 = vst [vmem:[%s482 + $0x30] sm:$0xf] %v4919
        %v4921 = vld [vmem:[%s482 + $0x34] sm:$0x1]
        %v4922 = vsel %vm2693, %v4858, %v4921
        %4923 = vst [vmem:[%s482 + $0x34] sm:$0x1] %v4922
        %v4924 = vld [vmem:[%s482 + $0x38] sm:$0xf]
        %v4925 = vsel %vm2689, %v4865, %v4924
        %4926 = vst [vmem:[%s482 + $0x38] sm:$0xf] %v4925
        %v4927 = vld [vmem:[%s482 + $0x3c] sm:$0x1]
        %v4928 = vsel %vm2693, %v4866, %v4927
        %4929 = vst [vmem:[%s482 + $0x3c] sm:$0x1] %v4928
        %v4930 = vld [vmem:[#allocation2] sm:$0xf]
        %v4931 = vld [vmem:[#allocation2 + $0x8] sm:$0xf]
        %v4932 = vld [vmem:[#allocation2 + $0x10] sm:$0xf]
        %v4933 = vld [vmem:[#allocation2 + $0x18] sm:$0xf]
        %v4934 = vld [vmem:[#allocation2 + $0x20] sm:$0xf]
        %v4935 = vld [vmem:[#allocation2 + $0x28] sm:$0xf]
        %v4936 = vld [vmem:[#allocation2 + $0x30] sm:$0xf]
        %v4937 = vld [vmem:[#allocation2 + $0x38] sm:$0xf]
        %v4938 = vld [vmem:[#allocation9] sm:$0xf]
        %v4939 = vld [vmem:[#allocation9 + $0x4] sm:$0xf]
        %v4940 = vld [vmem:[#allocation9 + $0x8] sm:$0xf]
        %v4941 = vld [vmem:[#allocation9 + $0xc] sm:$0xf]
        %v4942 = vld [vmem:[#allocation9 + $0x10] sm:$0xf]
        %v4943 = vld [vmem:[#allocation9 + $0x14] sm:$0xf]
        %v4944 = vld [vmem:[#allocation9 + $0x18] sm:$0xf]
        %v4945 = vld [vmem:[#allocation9 + $0x1c] sm:$0xf]
        %v4946 = vld [vmem:[#allocation9 + $0x20] sm:$0xf]
        %v4947 = vld [vmem:[#allocation9 + $0x24] sm:$0xf]
        %v4948 = vld [vmem:[#allocation9 + $0x28] sm:$0xf]
        %v4949 = vld [vmem:[#allocation9 + $0x2c] sm:$0xf]
        %v4950 = vld [vmem:[#allocation9 + $0x30] sm:$0xf]
        %v4951 = vld [vmem:[#allocation9 + $0x34] sm:$0xf]
        %v4952 = vld [vmem:[#allocation9 + $0x38] sm:$0xf]
        %v4953 = vld [vmem:[#allocation9 + $0x3c] sm:$0xf]
        %v4954 = vld [vmem:[#allocation2 + $0x4] sm:$0x1]
        %v4955 = vld [vmem:[#allocation2 + $0xc] sm:$0x1]
        %v4956 = vld [vmem:[#allocation2 + $0x14] sm:$0x1]
        %v4957 = vld [vmem:[#allocation2 + $0x1c] sm:$0x1]
        %v4958 = vld [vmem:[#allocation2 + $0x24] sm:$0x1]
        %v4959 = vld [vmem:[#allocation2 + $0x2c] sm:$0x1]
        %v4960 = vld [vmem:[#allocation2 + $0x34] sm:$0x1]
        %v4961 = vld [vmem:[#allocation2 + $0x3c] sm:$0x1]
        %v4963 = vshrl.u32 %v4930, 16
        %v4965 = vrot.slane %v4963, 4
        %v4966 = vshll.u32 %v4930, 16
        %v4968 = vrot.slane %v4966, 5
        %v4969 = vor.u32 %v4965, %v4968
        %v4970 = vrot.slane %v4969, 4
        %v4972 = vshll.u32 %v4954, 16
        %v4974 = vrot.slane %v4972, 5
        %v4975 = vsel %vm571, %v4970, %v4974
        %v4977 = vshrl.u32 %v4931, 16
        %v4979 = vrot.slane %v4977, 4
        %v4980 = vshll.u32 %v4931, 16
        %v4982 = vrot.slane %v4980, 5
        %v4983 = vor.u32 %v4979, %v4982
        %v4984 = vrot.slane %v4983, 4
        %v4986 = vshll.u32 %v4955, 16
        %v4988 = vrot.slane %v4986, 5
        %v4989 = vsel %vm571, %v4984, %v4988
        %v4991 = vshrl.u32 %v4932, 16
        %v4993 = vrot.slane %v4991, 4
        %v4994 = vshll.u32 %v4932, 16
        %v4996 = vrot.slane %v4994, 5
        %v4997 = vor.u32 %v4993, %v4996
        %v4998 = vrot.slane %v4997, 4
        %v5000 = vshll.u32 %v4956, 16
        %v5002 = vrot.slane %v5000, 5
        %v5003 = vsel %vm571, %v4998, %v5002
        %v5005 = vshrl.u32 %v4933, 16
        %v5007 = vrot.slane %v5005, 4
        %v5008 = vshll.u32 %v4933, 16
        %v5010 = vrot.slane %v5008, 5
        %v5011 = vor.u32 %v5007, %v5010
        %v5012 = vrot.slane %v5011, 4
        %v5014 = vshll.u32 %v4957, 16
        %v5016 = vrot.slane %v5014, 5
        %v5017 = vsel %vm571, %v5012, %v5016
        %v5019 = vshrl.u32 %v4934, 16
        %v5021 = vrot.slane %v5019, 4
        %v5022 = vshll.u32 %v4934, 16
        %v5024 = vrot.slane %v5022, 5
        %v5025 = vor.u32 %v5021, %v5024
        %v5026 = vrot.slane %v5025, 4
        %v5028 = vshll.u32 %v4958, 16
        %v5030 = vrot.slane %v5028, 5
        %v5031 = vsel %vm571, %v5026, %v5030
        %v5033 = vshrl.u32 %v4935, 16
        %v5035 = vrot.slane %v5033, 4
        %v5036 = vshll.u32 %v4935, 16
        %v5038 = vrot.slane %v5036, 5
        %v5039 = vor.u32 %v5035, %v5038
        %v5040 = vrot.slane %v5039, 4
        %v5042 = vshll.u32 %v4959, 16
        %v5044 = vrot.slane %v5042, 5
        %v5045 = vsel %vm571, %v5040, %v5044
        %v5047 = vshrl.u32 %v4936, 16
        %v5049 = vrot.slane %v5047, 4
        %v5050 = vshll.u32 %v4936, 16
        %v5052 = vrot.slane %v5050, 5
        %v5053 = vor.u32 %v5049, %v5052
        %v5054 = vrot.slane %v5053, 4
        %v5056 = vshll.u32 %v4960, 16
        %v5058 = vrot.slane %v5056, 5
        %v5059 = vsel %vm571, %v5054, %v5058
        %v5061 = vshrl.u32 %v4937, 16
        %v5063 = vrot.slane %v5061, 4
        %v5064 = vshll.u32 %v4937, 16
        %v5066 = vrot.slane %v5064, 5
        %v5067 = vor.u32 %v5063, %v5066
        %v5068 = vrot.slane %v5067, 4
        %v5070 = vshll.u32 %v4961, 16
        %v5072 = vrot.slane %v5070, 5
        %v5073 = vsel %vm571, %v5068, %v5072
        %s5074 = scalar_lea.vmem [#allocation9], 64
        %v5075 = vld [vmem:[%s5074] sm:$0xf]
        %v5076 = vld [vmem:[%s5074 + $0x4] sm:$0xf]
        %v5077 = vld [vmem:[%s5074 + $0x8] sm:$0xf]
        %v5078 = vld [vmem:[%s5074 + $0xc] sm:$0xf]
        %v5079 = vld [vmem:[%s5074 + $0x10] sm:$0xf]
        %v5080 = vld [vmem:[%s5074 + $0x14] sm:$0xf]
        %v5081 = vld [vmem:[%s5074 + $0x18] sm:$0xf]
        %v5082 = vld [vmem:[%s5074 + $0x1c] sm:$0xf]
        %v5083 = vld [vmem:[%s5074 + $0x20] sm:$0xf]
        %v5084 = vld [vmem:[%s5074 + $0x24] sm:$0xf]
        %v5085 = vld [vmem:[%s5074 + $0x28] sm:$0xf]
        %v5086 = vld [vmem:[%s5074 + $0x2c] sm:$0xf]
        %v5087 = vld [vmem:[%s5074 + $0x30] sm:$0xf]
        %v5088 = vld [vmem:[%s5074 + $0x34] sm:$0xf]
        %v5089 = vld [vmem:[%s5074 + $0x38] sm:$0xf]
        %v5090 = vld [vmem:[%s5074 + $0x3c] sm:$0xf]
        %v5091 = vunpack.c.l.b16 %v4975
        %v5092 = vunpack.c.l.b16 %v4989
        %v5093 = vunpack.c.l.b16 %v5003
        %v5094 = vunpack.c.l.b16 %v5017
        %v5095 = vunpack.c.l.b16 %v5031
        %v5096 = vunpack.c.l.b16 %v5045
        %v5097 = vunpack.c.l.b16 %v5059
        %v5098 = vunpack.c.l.b16 %v5073
        %v5099 = vpack.c.b16 %v5092, %v5091
        %v5100 = vpack.c.b16 %v5094, %v5093
        %v5101 = vpack.c.b16 %v5096, %v5095
        %v5102 = vpack.c.b16 %v5098, %v5097
        %v5123 = vunpack.c.l.b16 %v5075
        %v5124 = vunpack.c.l.b16 %v5076
        %v5125 = vunpack.c.l.b16 %v5077
        %v5126 = vunpack.c.l.b16 %v5078
        %v5127 = vunpack.c.l.b16 %v5079
        %v5128 = vunpack.c.l.b16 %v5080
        %v5129 = vunpack.c.l.b16 %v5081
        %v5130 = vunpack.c.l.b16 %v5082
        %v5131 = vunpack.c.l.b16 %v5083
        %v5132 = vunpack.c.l.b16 %v5084
        %v5133 = vunpack.c.l.b16 %v5085
        %v5134 = vunpack.c.l.b16 %v5086
        %v5135 = vunpack.c.l.b16 %v5087
        %v5136 = vunpack.c.l.b16 %v5088
        %v5137 = vunpack.c.l.b16 %v5089
        %v5138 = vunpack.c.l.b16 %v5090
        %v5139 = vpack.c.b16 %v5124, %v5123
        %v5140 = vpack.c.b16 %v5126, %v5125
        %v5141 = vpack.c.b16 %v5128, %v5127
        %v5142 = vpack.c.b16 %v5130, %v5129
        %v5143 = vpack.c.b16 %v5132, %v5131
        %v5144 = vpack.c.b16 %v5134, %v5133
        %v5145 = vpack.c.b16 %v5136, %v5135
        %v5146 = vpack.c.b16 %v5138, %v5137
        %5155 = vmatprep.subr.bf16.mxu0 0
        %5156 = vmatpush1.bf16.msra.mxu0 %v5146
        %5157 = vmatprep.subr.bf16.mxu0 0
        %5158 = vmatpush1.bf16.msra.mxu0 %v5145
        %5159 = vmatprep.subr.bf16.mxu0 0
        %5160 = vmatpush1.bf16.msra.mxu0 %v5144
        %5161 = vmatprep.subr.bf16.mxu0 0
        %5162 = vmatpush1.bf16.msra.mxu0 %v5143
        %5163 = vmatprep.subr.bf16.mxu0 0
        %5164 = vmatpush1.bf16.msra.mxu0 %v5142
        %5165 = vmatprep.subr.bf16.mxu0 0
        %5166 = vmatpush1.bf16.msra.mxu0 %v5141
        %5167 = vmatprep.subr.bf16.mxu0 0
        %5168 = vmatpush1.bf16.msra.mxu0 %v5140
        %5169 = vmatprep.subr.bf16.mxu0 0
        %5170 = vmatpush1.bf16.msra.mxu0 %v5139
        %5171 = vmatprep.subr.bf16.mxu0 0
        %5172 = vmatpush2.bf16.msra.mxu0 0
        %5173 = vmatprep.subr.bf16.mxu0 0
        %5174 = vmatpush2.bf16.msra.mxu0 0
        %5175 = vmatprep.subr.bf16.mxu0 0
        %5176 = vmatpush2.bf16.msra.mxu0 0
        %5177 = vmatprep.subr.bf16.mxu0 0
        %5178 = vmatpush2.bf16.msra.mxu0 0
        %5179 = vmatprep.subr.bf16.mxu0 0
        %5180 = vmatpush2.bf16.msra.mxu0 0
        %5181 = vmatprep.subr.bf16.mxu0 0
        %5182 = vmatpush2.bf16.msra.mxu0 0
        %5183 = vmatprep.subr.bf16.mxu0 0
        %5184 = vmatpush2.bf16.msra.mxu0 0
        %5185 = vmatprep.subr.bf16.mxu0 0
        %5186 = vmatpush2.bf16.msra.mxu0 0
        %5187 = vmatprep.mubr.bf16.mxu0 0
        %5188 = vmatmul.mubr.bf16.gmra.mxu0 %v5099
        %v5189 = vpop.f32.mrf.mxu0
        %v5190 = vadd.f32 0.0, %v5189
        %v5191 = vpop.f32.mrf.mxu0
        %v5192 = vpop.f32.mrf.mxu0
        %v5193 = vadd.f32 0.0, %v5192
        %v5194 = vpop.f32.mrf.mxu0
        %5195 = vmatprep.mubr.bf16.mxu0 0
        %5196 = vmatmul.mubr.bf16.gmra.mxu0 %v5100
        %v5197 = vpop.f32.mrf.mxu0
        %v5198 = vadd.f32 0.0, %v5197
        %v5199 = vpop.f32.mrf.mxu0
        %v5200 = vpop.f32.mrf.mxu0
        %v5201 = vadd.f32 0.0, %v5200
        %v5202 = vpop.f32.mrf.mxu0
        %5203 = vmatprep.mubr.bf16.mxu0 0
        %5204 = vmatmul.mubr.bf16.gmra.mxu0 %v5101
        %v5205 = vpop.f32.mrf.mxu0
        %v5206 = vadd.f32 0.0, %v5205
        %v5207 = vpop.f32.mrf.mxu0
        %v5208 = vpop.f32.mrf.mxu0
        %v5209 = vadd.f32 0.0, %v5208
        %v5210 = vpop.f32.mrf.mxu0
        %5211 = vmatprep.mubr.bf16.mxu0 0
        %5212 = vmatmul.mubr.bf16.gmra.mxu0 %v5102
        %v5213 = vpop.f32.mrf.mxu0
        %v5214 = vadd.f32 0.0, %v5213
        %v5215 = vpop.f32.mrf.mxu0
        %v5216 = vpop.f32.mrf.mxu0
        %v5217 = vadd.f32 0.0, %v5216
        %v5218 = vpop.f32.mrf.mxu0
        %5219 = vdwg.mxu0
        %v5228 = vunpack.c.l.b16 %v4930
        %v5229 = vunpack.c.l.b16 %v4931
        %v5230 = vunpack.c.l.b16 %v4932
        %v5231 = vunpack.c.l.b16 %v4933
        %v5232 = vunpack.c.l.b16 %v4934
        %v5233 = vunpack.c.l.b16 %v4935
        %v5234 = vunpack.c.l.b16 %v4936
        %v5235 = vunpack.c.l.b16 %v4937
        %v5236 = vpack.c.b16 %v5229, %v5228
        %v5237 = vpack.c.b16 %v5231, %v5230
        %v5238 = vpack.c.b16 %v5233, %v5232
        %v5239 = vpack.c.b16 %v5235, %v5234
        %v5260 = vunpack.c.l.b16 %v4938
        %v5261 = vunpack.c.l.b16 %v4939
        %v5262 = vunpack.c.l.b16 %v4940
        %v5263 = vunpack.c.l.b16 %v4941
        %v5264 = vunpack.c.l.b16 %v4942
        %v5265 = vunpack.c.l.b16 %v4943
        %v5266 = vunpack.c.l.b16 %v4944
        %v5267 = vunpack.c.l.b16 %v4945
        %v5268 = vunpack.c.l.b16 %v4946
        %v5269 = vunpack.c.l.b16 %v4947
        %v5270 = vunpack.c.l.b16 %v4948
        %v5271 = vunpack.c.l.b16 %v4949
        %v5272 = vunpack.c.l.b16 %v4950
        %v5273 = vunpack.c.l.b16 %v4951
        %v5274 = vunpack.c.l.b16 %v4952
        %v5275 = vunpack.c.l.b16 %v4953
        %v5276 = vpack.c.b16 %v5261, %v5260
        %v5277 = vpack.c.b16 %v5263, %v5262
        %v5278 = vpack.c.b16 %v5265, %v5264
        %v5279 = vpack.c.b16 %v5267, %v5266
        %v5280 = vpack.c.b16 %v5269, %v5268
        %v5281 = vpack.c.b16 %v5271, %v5270
        %v5282 = vpack.c.b16 %v5273, %v5272
        %v5283 = vpack.c.b16 %v5275, %v5274
        %5292 = vmatprep.subr.bf16.mxu0 0
        %5293 = vmatpush1.bf16.msra.mxu0 %v5283
        %5294 = vmatprep.subr.bf16.mxu0 0
        %5295 = vmatpush1.bf16.msra.mxu0 %v5282
        %5296 = vmatprep.subr.bf16.mxu0 0
        %5297 = vmatpush1.bf16.msra.mxu0 %v5281
        %5298 = vmatprep.subr.bf16.mxu0 0
        %5299 = vmatpush1.bf16.msra.mxu0 %v5280
        %5300 = vmatprep.subr.bf16.mxu0 0
        %5301 = vmatpush1.bf16.msra.mxu0 %v5279
        %5302 = vmatprep.subr.bf16.mxu0 0
        %5303 = vmatpush1.bf16.msra.mxu0 %v5278
        %5304 = vmatprep.subr.bf16.mxu0 0
        %5305 = vmatpush1.bf16.msra.mxu0 %v5277
        %5306 = vmatprep.subr.bf16.mxu0 0
        %5307 = vmatpush1.bf16.msra.mxu0 %v5276
        %5308 = vmatprep.subr.bf16.mxu0 0
        %5309 = vmatpush2.bf16.msra.mxu0 0
        %5310 = vmatprep.subr.bf16.mxu0 0
        %5311 = vmatpush2.bf16.msra.mxu0 0
        %5312 = vmatprep.subr.bf16.mxu0 0
        %5313 = vmatpush2.bf16.msra.mxu0 0
        %5314 = vmatprep.subr.bf16.mxu0 0
        %5315 = vmatpush2.bf16.msra.mxu0 0
        %5316 = vmatprep.subr.bf16.mxu0 0
        %5317 = vmatpush2.bf16.msra.mxu0 0
        %5318 = vmatprep.subr.bf16.mxu0 0
        %5319 = vmatpush2.bf16.msra.mxu0 0
        %5320 = vmatprep.subr.bf16.mxu0 0
        %5321 = vmatpush2.bf16.msra.mxu0 0
        %5322 = vmatprep.subr.bf16.mxu0 0
        %5323 = vmatpush2.bf16.msra.mxu0 0
        %5324 = vmatprep.mubr.bf16.mxu0 0
        %5325 = vmatmul.mubr.bf16.gmra.mxu0 %v5236
        %v5326 = vpop.f32.mrf.mxu0
        %v5327 = vadd.f32 %v5190, %v5326
        %v5328 = vpop.f32.mrf.mxu0
        %v5329 = vpop.f32.mrf.mxu0
        %v5330 = vadd.f32 %v5193, %v5329
        %v5331 = vpop.f32.mrf.mxu0
        %5332 = vmatprep.mubr.bf16.mxu0 0
        %5333 = vmatmul.mubr.bf16.gmra.mxu0 %v5237
        %v5334 = vpop.f32.mrf.mxu0
        %v5335 = vadd.f32 %v5198, %v5334
        %v5336 = vpop.f32.mrf.mxu0
        %v5337 = vpop.f32.mrf.mxu0
        %v5338 = vadd.f32 %v5201, %v5337
        %v5339 = vpop.f32.mrf.mxu0
        %5340 = vmatprep.mubr.bf16.mxu0 0
        %5341 = vmatmul.mubr.bf16.gmra.mxu0 %v5238
        %v5342 = vpop.f32.mrf.mxu0
        %v5343 = vadd.f32 %v5206, %v5342
        %v5344 = vpop.f32.mrf.mxu0
        %v5345 = vpop.f32.mrf.mxu0
        %v5346 = vadd.f32 %v5209, %v5345
        %v5347 = vpop.f32.mrf.mxu0
        %5348 = vmatprep.mubr.bf16.mxu0 0
        %5349 = vmatmul.mubr.bf16.gmra.mxu0 %v5239
        %v5350 = vpop.f32.mrf.mxu0
        %v5351 = vadd.f32 %v5214, %v5350
        %v5352 = vpop.f32.mrf.mxu0
        %v5353 = vpop.f32.mrf.mxu0
        %v5354 = vadd.f32 %v5217, %v5353
        %v5355 = vpop.f32.mrf.mxu0
        %5356 = vdwg.mxu0
        %v5357 = vld [vmem:[#allocation2] sm:$0xe]
        %v5358 = vld [vmem:[#allocation2 + $0x8] sm:$0xe]
        %v5359 = vld [vmem:[#allocation2 + $0x10] sm:$0xe]
        %v5360 = vld [vmem:[#allocation2 + $0x18] sm:$0xe]
        %v5361 = vld [vmem:[#allocation2 + $0x20] sm:$0xe]
        %v5362 = vld [vmem:[#allocation2 + $0x28] sm:$0xe]
        %v5363 = vld [vmem:[#allocation2 + $0x30] sm:$0xe]
        %v5364 = vld [vmem:[#allocation2 + $0x38] sm:$0xe]
        %v5381 = vrot.slane %v5357, 5
        %v5382 = vrot.slane %v5381, 4
        %v5383 = vrot.slane %v4954, 5
        %v5384 = vsel %vm993, %v5382, %v5383
        %v5385 = vrot.slane %v5358, 5
        %v5386 = vrot.slane %v5385, 4
        %v5387 = vrot.slane %v4955, 5
        %v5388 = vsel %vm993, %v5386, %v5387
        %v5389 = vrot.slane %v5359, 5
        %v5390 = vrot.slane %v5389, 4
        %v5391 = vrot.slane %v4956, 5
        %v5392 = vsel %vm993, %v5390, %v5391
        %v5393 = vrot.slane %v5360, 5
        %v5394 = vrot.slane %v5393, 4
        %v5395 = vrot.slane %v4957, 5
        %v5396 = vsel %vm993, %v5394, %v5395
        %v5397 = vrot.slane %v5361, 5
        %v5398 = vrot.slane %v5397, 4
        %v5399 = vrot.slane %v4958, 5
        %v5400 = vsel %vm993, %v5398, %v5399
        %v5401 = vrot.slane %v5362, 5
        %v5402 = vrot.slane %v5401, 4
        %v5403 = vrot.slane %v4959, 5
        %v5404 = vsel %vm993, %v5402, %v5403
        %v5405 = vrot.slane %v5363, 5
        %v5406 = vrot.slane %v5405, 4
        %v5407 = vrot.slane %v4960, 5
        %v5408 = vsel %vm993, %v5406, %v5407
        %v5409 = vrot.slane %v5364, 5
        %v5410 = vrot.slane %v5409, 4
        %v5411 = vrot.slane %v4961, 5
        %v5412 = vsel %vm993, %v5410, %v5411
        %s5413 = scalar_lea.vmem [#allocation9], 128
        %v5414 = vld [vmem:[%s5413] sm:$0xf]
        %v5415 = vld [vmem:[%s5413 + $0x4] sm:$0xf]
        %v5416 = vld [vmem:[%s5413 + $0x8] sm:$0xf]
        %v5417 = vld [vmem:[%s5413 + $0xc] sm:$0xf]
        %v5418 = vld [vmem:[%s5413 + $0x10] sm:$0xf]
        %v5419 = vld [vmem:[%s5413 + $0x14] sm:$0xf]
        %v5420 = vld [vmem:[%s5413 + $0x18] sm:$0xf]
        %v5421 = vld [vmem:[%s5413 + $0x1c] sm:$0xf]
        %v5422 = vld [vmem:[%s5413 + $0x20] sm:$0xf]
        %v5423 = vld [vmem:[%s5413 + $0x24] sm:$0xf]
        %v5424 = vld [vmem:[%s5413 + $0x28] sm:$0xf]
        %v5425 = vld [vmem:[%s5413 + $0x2c] sm:$0xf]
        %v5426 = vld [vmem:[%s5413 + $0x30] sm:$0xf]
        %v5427 = vld [vmem:[%s5413 + $0x34] sm:$0xf]
        %v5428 = vld [vmem:[%s5413 + $0x38] sm:$0xf]
        %v5429 = vld [vmem:[%s5413 + $0x3c] sm:$0xf]
        %v5430 = vunpack.c.l.b16 %v5384
        %v5431 = vunpack.c.l.b16 %v5388
        %v5432 = vunpack.c.l.b16 %v5392
        %v5433 = vunpack.c.l.b16 %v5396
        %v5434 = vunpack.c.l.b16 %v5400
        %v5435 = vunpack.c.l.b16 %v5404
        %v5436 = vunpack.c.l.b16 %v5408
        %v5437 = vunpack.c.l.b16 %v5412
        %v5438 = vpack.c.b16 %v5431, %v5430
        %v5439 = vpack.c.b16 %v5433, %v5432
        %v5440 = vpack.c.b16 %v5435, %v5434
        %v5441 = vpack.c.b16 %v5437, %v5436
        %v5462 = vunpack.c.l.b16 %v5414
        %v5463 = vunpack.c.l.b16 %v5415
        %v5464 = vunpack.c.l.b16 %v5416
        %v5465 = vunpack.c.l.b16 %v5417
        %v5466 = vunpack.c.l.b16 %v5418
        %v5467 = vunpack.c.l.b16 %v5419
        %v5468 = vunpack.c.l.b16 %v5420
        %v5469 = vunpack.c.l.b16 %v5421
        %v5470 = vunpack.c.l.b16 %v5422
        %v5471 = vunpack.c.l.b16 %v5423
        %v5472 = vunpack.c.l.b16 %v5424
        %v5473 = vunpack.c.l.b16 %v5425
        %v5474 = vunpack.c.l.b16 %v5426
        %v5475 = vunpack.c.l.b16 %v5427
        %v5476 = vunpack.c.l.b16 %v5428
        %v5477 = vunpack.c.l.b16 %v5429
        %v5478 = vpack.c.b16 %v5463, %v5462
        %v5479 = vpack.c.b16 %v5465, %v5464
        %v5480 = vpack.c.b16 %v5467, %v5466
        %v5481 = vpack.c.b16 %v5469, %v5468
        %v5482 = vpack.c.b16 %v5471, %v5470
        %v5483 = vpack.c.b16 %v5473, %v5472
        %v5484 = vpack.c.b16 %v5475, %v5474
        %v5485 = vpack.c.b16 %v5477, %v5476
        %5494 = vmatprep.subr.bf16.mxu0 0
        %5495 = vmatpush1.bf16.msra.mxu0 %v5485
        %5496 = vmatprep.subr.bf16.mxu0 0
        %5497 = vmatpush1.bf16.msra.mxu0 %v5484
        %5498 = vmatprep.subr.bf16.mxu0 0
        %5499 = vmatpush1.bf16.msra.mxu0 %v5483
        %5500 = vmatprep.subr.bf16.mxu0 0
        %5501 = vmatpush1.bf16.msra.mxu0 %v5482
        %5502 = vmatprep.subr.bf16.mxu0 0
        %5503 = vmatpush1.bf16.msra.mxu0 %v5481
        %5504 = vmatprep.subr.bf16.mxu0 0
        %5505 = vmatpush1.bf16.msra.mxu0 %v5480
        %5506 = vmatprep.subr.bf16.mxu0 0
        %5507 = vmatpush1.bf16.msra.mxu0 %v5479
        %5508 = vmatprep.subr.bf16.mxu0 0
        %5509 = vmatpush1.bf16.msra.mxu0 %v5478
        %5510 = vmatprep.subr.bf16.mxu0 0
        %5511 = vmatpush2.bf16.msra.mxu0 0
        %5512 = vmatprep.subr.bf16.mxu0 0
        %5513 = vmatpush2.bf16.msra.mxu0 0
        %5514 = vmatprep.subr.bf16.mxu0 0
        %5515 = vmatpush2.bf16.msra.mxu0 0
        %5516 = vmatprep.subr.bf16.mxu0 0
        %5517 = vmatpush2.bf16.msra.mxu0 0
        %5518 = vmatprep.subr.bf16.mxu0 0
        %5519 = vmatpush2.bf16.msra.mxu0 0
        %5520 = vmatprep.subr.bf16.mxu0 0
        %5521 = vmatpush2.bf16.msra.mxu0 0
        %5522 = vmatprep.subr.bf16.mxu0 0
        %5523 = vmatpush2.bf16.msra.mxu0 0
        %5524 = vmatprep.subr.bf16.mxu0 0
        %5525 = vmatpush2.bf16.msra.mxu0 0
        %5526 = vmatprep.mubr.bf16.mxu0 0
        %5527 = vmatmul.mubr.bf16.gmra.mxu0 %v5438
        %v5528 = vpop.f32.mrf.mxu0
        %v5529 = vadd.f32 0.0, %v5528
        %v5530 = vpop.f32.mrf.mxu0
        %v5531 = vpop.f32.mrf.mxu0
        %v5532 = vadd.f32 0.0, %v5531
        %v5533 = vpop.f32.mrf.mxu0
        %5534 = vmatprep.mubr.bf16.mxu0 0
        %5535 = vmatmul.mubr.bf16.gmra.mxu0 %v5439
        %v5536 = vpop.f32.mrf.mxu0
        %v5537 = vadd.f32 0.0, %v5536
        %v5538 = vpop.f32.mrf.mxu0
        %v5539 = vpop.f32.mrf.mxu0
        %v5540 = vadd.f32 0.0, %v5539
        %v5541 = vpop.f32.mrf.mxu0
        %5542 = vmatprep.mubr.bf16.mxu0 0
        %5543 = vmatmul.mubr.bf16.gmra.mxu0 %v5440
        %v5544 = vpop.f32.mrf.mxu0
        %v5545 = vadd.f32 0.0, %v5544
        %v5546 = vpop.f32.mrf.mxu0
        %v5547 = vpop.f32.mrf.mxu0
        %v5548 = vadd.f32 0.0, %v5547
        %v5549 = vpop.f32.mrf.mxu0
        %5550 = vmatprep.mubr.bf16.mxu0 0
        %5551 = vmatmul.mubr.bf16.gmra.mxu0 %v5441
        %v5552 = vpop.f32.mrf.mxu0
        %v5553 = vadd.f32 0.0, %v5552
        %v5554 = vpop.f32.mrf.mxu0
        %v5555 = vpop.f32.mrf.mxu0
        %v5556 = vadd.f32 0.0, %v5555
        %v5557 = vpop.f32.mrf.mxu0
        %5558 = vdwg.mxu0
        %v5559 = vadd.f32 %v5327, %v5529
        %v5560 = vadd.f32 %v5330, %v5532
        %v5561 = vadd.f32 %v5335, %v5537
        %v5562 = vadd.f32 %v5338, %v5540
        %v5563 = vadd.f32 %v5343, %v5545
        %v5564 = vadd.f32 %v5346, %v5548
        %v5565 = vadd.f32 %v5351, %v5553
        %v5566 = vadd.f32 %v5354, %v5556
        %v5567 = vld [vmem:[%s482] sm:$0xf]
        %v5568 = vld [vmem:[%s482 + $0x8] sm:$0xf]
        %v5569 = vld [vmem:[%s482 + $0x10] sm:$0xf]
        %v5570 = vld [vmem:[%s482 + $0x18] sm:$0xf]
        %v5571 = vld [vmem:[%s482 + $0x20] sm:$0xf]
        %v5572 = vld [vmem:[%s482 + $0x28] sm:$0xf]
        %v5573 = vld [vmem:[%s482 + $0x30] sm:$0xf]
        %v5574 = vld [vmem:[%s482 + $0x38] sm:$0xf]
        %s5575 = scalar_lea.vmem [#allocation9], 192
        %v5576 = vld [vmem:[%s5575] sm:$0xf]
        %v5577 = vld [vmem:[%s5575 + $0x4] sm:$0xf]
        %v5578 = vld [vmem:[%s5575 + $0x8] sm:$0xf]
        %v5579 = vld [vmem:[%s5575 + $0xc] sm:$0xf]
        %v5580 = vld [vmem:[%s5575 + $0x10] sm:$0xf]
        %v5581 = vld [vmem:[%s5575 + $0x14] sm:$0xf]
        %v5582 = vld [vmem:[%s5575 + $0x18] sm:$0xf]
        %v5583 = vld [vmem:[%s5575 + $0x1c] sm:$0xf]
        %v5584 = vld [vmem:[%s5575 + $0x20] sm:$0xf]
        %v5585 = vld [vmem:[%s5575 + $0x24] sm:$0xf]
        %v5586 = vld [vmem:[%s5575 + $0x28] sm:$0xf]
        %v5587 = vld [vmem:[%s5575 + $0x2c] sm:$0xf]
        %v5588 = vld [vmem:[%s5575 + $0x30] sm:$0xf]
        %v5589 = vld [vmem:[%s5575 + $0x34] sm:$0xf]
        %v5590 = vld [vmem:[%s5575 + $0x38] sm:$0xf]
        %v5591 = vld [vmem:[%s5575 + $0x3c] sm:$0xf]
        %v5600 = vunpack.c.l.b16 %v5567
        %v5601 = vunpack.c.l.b16 %v5568
        %v5602 = vunpack.c.l.b16 %v5569
        %v5603 = vunpack.c.l.b16 %v5570
        %v5604 = vunpack.c.l.b16 %v5571
        %v5605 = vunpack.c.l.b16 %v5572
        %v5606 = vunpack.c.l.b16 %v5573
        %v5607 = vunpack.c.l.b16 %v5574
        %v5608 = vpack.c.b16 %v5601, %v5600
        %v5609 = vpack.c.b16 %v5603, %v5602
        %v5610 = vpack.c.b16 %v5605, %v5604
        %v5611 = vpack.c.b16 %v5607, %v5606
        %v5632 = vunpack.c.l.b16 %v5576
        %v5633 = vunpack.c.l.b16 %v5577
        %v5634 = vunpack.c.l.b16 %v5578
        %v5635 = vunpack.c.l.b16 %v5579
        %v5636 = vunpack.c.l.b16 %v5580
        %v5637 = vunpack.c.l.b16 %v5581
        %v5638 = vunpack.c.l.b16 %v5582
        %v5639 = vunpack.c.l.b16 %v5583
        %v5640 = vunpack.c.l.b16 %v5584
        %v5641 = vunpack.c.l.b16 %v5585
        %v5642 = vunpack.c.l.b16 %v5586
        %v5643 = vunpack.c.l.b16 %v5587
        %v5644 = vunpack.c.l.b16 %v5588
        %v5645 = vunpack.c.l.b16 %v5589
        %v5646 = vunpack.c.l.b16 %v5590
        %v5647 = vunpack.c.l.b16 %v5591
        %v5648 = vpack.c.b16 %v5633, %v5632
        %v5649 = vpack.c.b16 %v5635, %v5634
        %v5650 = vpack.c.b16 %v5637, %v5636
        %v5651 = vpack.c.b16 %v5639, %v5638
        %v5652 = vpack.c.b16 %v5641, %v5640
        %v5653 = vpack.c.b16 %v5643, %v5642
        %v5654 = vpack.c.b16 %v5645, %v5644
        %v5655 = vpack.c.b16 %v5647, %v5646
        %5664 = vmatprep.subr.bf16.mxu0 0
        %5665 = vmatpush1.bf16.msra.mxu0 %v5655
        %5666 = vmatprep.subr.bf16.mxu0 0
        %5667 = vmatpush1.bf16.msra.mxu0 %v5654
        %5668 = vmatprep.subr.bf16.mxu0 0
        %5669 = vmatpush1.bf16.msra.mxu0 %v5653
        %5670 = vmatprep.subr.bf16.mxu0 0
        %5671 = vmatpush1.bf16.msra.mxu0 %v5652
        %5672 = vmatprep.subr.bf16.mxu0 0
        %5673 = vmatpush1.bf16.msra.mxu0 %v5651
        %5674 = vmatprep.subr.bf16.mxu0 0
        %5675 = vmatpush1.bf16.msra.mxu0 %v5650
        %5676 = vmatprep.subr.bf16.mxu0 0
        %5677 = vmatpush1.bf16.msra.mxu0 %v5649
        %5678 = vmatprep.subr.bf16.mxu0 0
        %5679 = vmatpush1.bf16.msra.mxu0 %v5648
        %5680 = vmatprep.subr.bf16.mxu0 0
        %5681 = vmatpush2.bf16.msra.mxu0 0
        %5682 = vmatprep.subr.bf16.mxu0 0
        %5683 = vmatpush2.bf16.msra.mxu0 0
        %5684 = vmatprep.subr.bf16.mxu0 0
        %5685 = vmatpush2.bf16.msra.mxu0 0
        %5686 = vmatprep.subr.bf16.mxu0 0
        %5687 = vmatpush2.bf16.msra.mxu0 0
        %5688 = vmatprep.subr.bf16.mxu0 0
        %5689 = vmatpush2.bf16.msra.mxu0 0
        %5690 = vmatprep.subr.bf16.mxu0 0
        %5691 = vmatpush2.bf16.msra.mxu0 0
        %5692 = vmatprep.subr.bf16.mxu0 0
        %5693 = vmatpush2.bf16.msra.mxu0 0
        %5694 = vmatprep.subr.bf16.mxu0 0
        %5695 = vmatpush2.bf16.msra.mxu0 0
        %5696 = vmatprep.mubr.bf16.mxu0 0
        %5697 = vmatmul.mubr.bf16.gmra.mxu0 %v5608
        %v5698 = vpop.f32.mrf.mxu0
        %v5699 = vadd.f32 0.0, %v5698
        %v5700 = vpop.f32.mrf.mxu0
        %v5701 = vpop.f32.mrf.mxu0
        %v5702 = vadd.f32 0.0, %v5701
        %v5703 = vpop.f32.mrf.mxu0
        %5704 = vmatprep.mubr.bf16.mxu0 0
        %5705 = vmatmul.mubr.bf16.gmra.mxu0 %v5609
        %v5706 = vpop.f32.mrf.mxu0
        %v5707 = vadd.f32 0.0, %v5706
        %v5708 = vpop.f32.mrf.mxu0
        %v5709 = vpop.f32.mrf.mxu0
        %v5710 = vadd.f32 0.0, %v5709
        %v5711 = vpop.f32.mrf.mxu0
        %5712 = vmatprep.mubr.bf16.mxu0 0
        %5713 = vmatmul.mubr.bf16.gmra.mxu0 %v5610
        %v5714 = vpop.f32.mrf.mxu0
        %v5715 = vadd.f32 0.0, %v5714
        %v5716 = vpop.f32.mrf.mxu0
        %v5717 = vpop.f32.mrf.mxu0
        %v5718 = vadd.f32 0.0, %v5717
        %v5719 = vpop.f32.mrf.mxu0
        %5720 = vmatprep.mubr.bf16.mxu0 0
        %5721 = vmatmul.mubr.bf16.gmra.mxu0 %v5611
        %v5722 = vpop.f32.mrf.mxu0
        %v5723 = vadd.f32 0.0, %v5722
        %v5724 = vpop.f32.mrf.mxu0
        %v5725 = vpop.f32.mrf.mxu0
        %v5726 = vadd.f32 0.0, %v5725
        %v5727 = vpop.f32.mrf.mxu0
        %5728 = vdwg.mxu0
        %v5729 = vadd.f32 %v5559, %v5699
        %v5730 = vadd.f32 %v5560, %v5702
        %v5731 = vadd.f32 %v5561, %v5707
        %v5732 = vadd.f32 %v5562, %v5710
        %v5733 = vadd.f32 %v5563, %v5715
        %v5734 = vadd.f32 %v5564, %v5718
        %v5735 = vadd.f32 %v5565, %v5723
        %v5736 = vadd.f32 %v5566, %v5726
        %v5737 = vld [vmem:[%s482] sm:$0xf]
        %v5738 = vld [vmem:[%s482 + $0x4] sm:$0x1]
        %v5739 = vld [vmem:[%s482 + $0x8] sm:$0xf]
        %v5740 = vld [vmem:[%s482 + $0xc] sm:$0x1]
        %v5741 = vld [vmem:[%s482 + $0x10] sm:$0xf]
        %v5742 = vld [vmem:[%s482 + $0x14] sm:$0x1]
        %v5743 = vld [vmem:[%s482 + $0x18] sm:$0xf]
        %v5744 = vld [vmem:[%s482 + $0x1c] sm:$0x1]
        %v5745 = vld [vmem:[%s482 + $0x20] sm:$0xf]
        %v5746 = vld [vmem:[%s482 + $0x24] sm:$0x1]
        %v5747 = vld [vmem:[%s482 + $0x28] sm:$0xf]
        %v5748 = vld [vmem:[%s482 + $0x2c] sm:$0x1]
        %v5749 = vld [vmem:[%s482 + $0x30] sm:$0xf]
        %v5750 = vld [vmem:[%s482 + $0x34] sm:$0x1]
        %v5751 = vld [vmem:[%s482 + $0x38] sm:$0xf]
        %v5752 = vld [vmem:[%s482 + $0x3c] sm:$0x1]
        %v5754 = vshrl.u32 %v5737, 16
        %v5756 = vrot.slane %v5754, 4
        %v5757 = vshll.u32 %v5737, 16
        %v5759 = vrot.slane %v5757, 5
        %v5760 = vor.u32 %v5756, %v5759
        %v5761 = vrot.slane %v5760, 4
        %v5763 = vshll.u32 %v5738, 16
        %v5765 = vrot.slane %v5763, 5
        %v5766 = vsel %vm571, %v5761, %v5765
        %v5768 = vshrl.u32 %v5739, 16
        %v5770 = vrot.slane %v5768, 4
        %v5771 = vshll.u32 %v5739, 16
        %v5773 = vrot.slane %v5771, 5
        %v5774 = vor.u32 %v5770, %v5773
        %v5775 = vrot.slane %v5774, 4
        %v5777 = vshll.u32 %v5740, 16
        %v5779 = vrot.slane %v5777, 5
        %v5780 = vsel %vm571, %v5775, %v5779
        %v5782 = vshrl.u32 %v5741, 16
        %v5784 = vrot.slane %v5782, 4
        %v5785 = vshll.u32 %v5741, 16
        %v5787 = vrot.slane %v5785, 5
        %v5788 = vor.u32 %v5784, %v5787
        %v5789 = vrot.slane %v5788, 4
        %v5791 = vshll.u32 %v5742, 16
        %v5793 = vrot.slane %v5791, 5
        %v5794 = vsel %vm571, %v5789, %v5793
        %v5796 = vshrl.u32 %v5743, 16
        %v5798 = vrot.slane %v5796, 4
        %v5799 = vshll.u32 %v5743, 16
        %v5801 = vrot.slane %v5799, 5
        %v5802 = vor.u32 %v5798, %v5801
        %v5803 = vrot.slane %v5802, 4
        %v5805 = vshll.u32 %v5744, 16
        %v5807 = vrot.slane %v5805, 5
        %v5808 = vsel %vm571, %v5803, %v5807
        %v5810 = vshrl.u32 %v5745, 16
        %v5812 = vrot.slane %v5810, 4
        %v5813 = vshll.u32 %v5745, 16
        %v5815 = vrot.slane %v5813, 5
        %v5816 = vor.u32 %v5812, %v5815
        %v5817 = vrot.slane %v5816, 4
        %v5819 = vshll.u32 %v5746, 16
        %v5821 = vrot.slane %v5819, 5
        %v5822 = vsel %vm571, %v5817, %v5821
        %v5824 = vshrl.u32 %v5747, 16
        %v5826 = vrot.slane %v5824, 4
        %v5827 = vshll.u32 %v5747, 16
        %v5829 = vrot.slane %v5827, 5
        %v5830 = vor.u32 %v5826, %v5829
        %v5831 = vrot.slane %v5830, 4
        %v5833 = vshll.u32 %v5748, 16
        %v5835 = vrot.slane %v5833, 5
        %v5836 = vsel %vm571, %v5831, %v5835
        %v5838 = vshrl.u32 %v5749, 16
        %v5840 = vrot.slane %v5838, 4
        %v5841 = vshll.u32 %v5749, 16
        %v5843 = vrot.slane %v5841, 5
        %v5844 = vor.u32 %v5840, %v5843
        %v5845 = vrot.slane %v5844, 4
        %v5847 = vshll.u32 %v5750, 16
        %v5849 = vrot.slane %v5847, 5
        %v5850 = vsel %vm571, %v5845, %v5849
        %v5852 = vshrl.u32 %v5751, 16
        %v5854 = vrot.slane %v5852, 4
        %v5855 = vshll.u32 %v5751, 16
        %v5857 = vrot.slane %v5855, 5
        %v5858 = vor.u32 %v5854, %v5857
        %v5859 = vrot.slane %v5858, 4
        %v5861 = vshll.u32 %v5752, 16
        %v5863 = vrot.slane %v5861, 5
        %v5864 = vsel %vm571, %v5859, %v5863
        %s5865 = scalar_lea.vmem [#allocation9], 256
        %v5866 = vld [vmem:[%s5865] sm:$0xf]
        %v5867 = vld [vmem:[%s5865 + $0x4] sm:$0xf]
        %v5868 = vld [vmem:[%s5865 + $0x8] sm:$0xf]
        %v5869 = vld [vmem:[%s5865 + $0xc] sm:$0xf]
        %v5870 = vld [vmem:[%s5865 + $0x10] sm:$0xf]
        %v5871 = vld [vmem:[%s5865 + $0x14] sm:$0xf]
        %v5872 = vld [vmem:[%s5865 + $0x18] sm:$0xf]
        %v5873 = vld [vmem:[%s5865 + $0x1c] sm:$0xf]
        %v5874 = vld [vmem:[%s5865 + $0x20] sm:$0xf]
        %v5875 = vld [vmem:[%s5865 + $0x24] sm:$0xf]
        %v5876 = vld [vmem:[%s5865 + $0x28] sm:$0xf]
        %v5877 = vld [vmem:[%s5865 + $0x2c] sm:$0xf]
        %v5878 = vld [vmem:[%s5865 + $0x30] sm:$0xf]
        %v5879 = vld [vmem:[%s5865 + $0x34] sm:$0xf]
        %v5880 = vld [vmem:[%s5865 + $0x38] sm:$0xf]
        %v5881 = vld [vmem:[%s5865 + $0x3c] sm:$0xf]
        %v5882 = vunpack.c.l.b16 %v5766
        %v5883 = vunpack.c.l.b16 %v5780
        %v5884 = vunpack.c.l.b16 %v5794
        %v5885 = vunpack.c.l.b16 %v5808
        %v5886 = vunpack.c.l.b16 %v5822
        %v5887 = vunpack.c.l.b16 %v5836
        %v5888 = vunpack.c.l.b16 %v5850
        %v5889 = vunpack.c.l.b16 %v5864
        %v5890 = vpack.c.b16 %v5883, %v5882
        %v5891 = vpack.c.b16 %v5885, %v5884
        %v5892 = vpack.c.b16 %v5887, %v5886
        %v5893 = vpack.c.b16 %v5889, %v5888
        %v5914 = vunpack.c.l.b16 %v5866
        %v5915 = vunpack.c.l.b16 %v5867
        %v5916 = vunpack.c.l.b16 %v5868
        %v5917 = vunpack.c.l.b16 %v5869
        %v5918 = vunpack.c.l.b16 %v5870
        %v5919 = vunpack.c.l.b16 %v5871
        %v5920 = vunpack.c.l.b16 %v5872
        %v5921 = vunpack.c.l.b16 %v5873
        %v5922 = vunpack.c.l.b16 %v5874
        %v5923 = vunpack.c.l.b16 %v5875
        %v5924 = vunpack.c.l.b16 %v5876
        %v5925 = vunpack.c.l.b16 %v5877
        %v5926 = vunpack.c.l.b16 %v5878
        %v5927 = vunpack.c.l.b16 %v5879
        %v5928 = vunpack.c.l.b16 %v5880
        %v5929 = vunpack.c.l.b16 %v5881
        %v5930 = vpack.c.b16 %v5915, %v5914
        %v5931 = vpack.c.b16 %v5917, %v5916
        %v5932 = vpack.c.b16 %v5919, %v5918
        %v5933 = vpack.c.b16 %v5921, %v5920
        %v5934 = vpack.c.b16 %v5923, %v5922
        %v5935 = vpack.c.b16 %v5925, %v5924
        %v5936 = vpack.c.b16 %v5927, %v5926
        %v5937 = vpack.c.b16 %v5929, %v5928
        %5946 = vmatprep.subr.bf16.mxu0 0
        %5947 = vmatpush1.bf16.msra.mxu0 %v5937
        %5948 = vmatprep.subr.bf16.mxu0 0
        %5949 = vmatpush1.bf16.msra.mxu0 %v5936
        %5950 = vmatprep.subr.bf16.mxu0 0
        %5951 = vmatpush1.bf16.msra.mxu0 %v5935
        %5952 = vmatprep.subr.bf16.mxu0 0
        %5953 = vmatpush1.bf16.msra.mxu0 %v5934
        %5954 = vmatprep.subr.bf16.mxu0 0
        %5955 = vmatpush1.bf16.msra.mxu0 %v5933
        %5956 = vmatprep.subr.bf16.mxu0 0
        %5957 = vmatpush1.bf16.msra.mxu0 %v5932
        %5958 = vmatprep.subr.bf16.mxu0 0
        %5959 = vmatpush1.bf16.msra.mxu0 %v5931
        %5960 = vmatprep.subr.bf16.mxu0 0
        %5961 = vmatpush1.bf16.msra.mxu0 %v5930
        %5962 = vmatprep.subr.bf16.mxu0 0
        %5963 = vmatpush2.bf16.msra.mxu0 0
        %5964 = vmatprep.subr.bf16.mxu0 0
        %5965 = vmatpush2.bf16.msra.mxu0 0
        %5966 = vmatprep.subr.bf16.mxu0 0
        %5967 = vmatpush2.bf16.msra.mxu0 0
        %5968 = vmatprep.subr.bf16.mxu0 0
        %5969 = vmatpush2.bf16.msra.mxu0 0
        %5970 = vmatprep.subr.bf16.mxu0 0
        %5971 = vmatpush2.bf16.msra.mxu0 0
        %5972 = vmatprep.subr.bf16.mxu0 0
        %5973 = vmatpush2.bf16.msra.mxu0 0
        %5974 = vmatprep.subr.bf16.mxu0 0
        %5975 = vmatpush2.bf16.msra.mxu0 0
        %5976 = vmatprep.subr.bf16.mxu0 0
        %5977 = vmatpush2.bf16.msra.mxu0 0
        %5978 = vmatprep.mubr.bf16.mxu0 0
        %5979 = vmatmul.mubr.bf16.gmra.mxu0 %v5890
        %v5980 = vpop.f32.mrf.mxu0
        %v5981 = vadd.f32 0.0, %v5980
        %v5982 = vpop.f32.mrf.mxu0
        %v5983 = vpop.f32.mrf.mxu0
        %v5984 = vadd.f32 0.0, %v5983
        %v5985 = vpop.f32.mrf.mxu0
        %5986 = vmatprep.mubr.bf16.mxu0 0
        %5987 = vmatmul.mubr.bf16.gmra.mxu0 %v5891
        %v5988 = vpop.f32.mrf.mxu0
        %v5989 = vadd.f32 0.0, %v5988
        %v5990 = vpop.f32.mrf.mxu0
        %v5991 = vpop.f32.mrf.mxu0
        %v5992 = vadd.f32 0.0, %v5991
        %v5993 = vpop.f32.mrf.mxu0
        %5994 = vmatprep.mubr.bf16.mxu0 0
        %5995 = vmatmul.mubr.bf16.gmra.mxu0 %v5892
        %v5996 = vpop.f32.mrf.mxu0
        %v5997 = vadd.f32 0.0, %v5996
        %v5998 = vpop.f32.mrf.mxu0
        %v5999 = vpop.f32.mrf.mxu0
        %v6000 = vadd.f32 0.0, %v5999
        %v6001 = vpop.f32.mrf.mxu0
        %6002 = vmatprep.mubr.bf16.mxu0 0
        %6003 = vmatmul.mubr.bf16.gmra.mxu0 %v5893
        %v6004 = vpop.f32.mrf.mxu0
        %v6005 = vadd.f32 0.0, %v6004
        %v6006 = vpop.f32.mrf.mxu0
        %v6007 = vpop.f32.mrf.mxu0
        %v6008 = vadd.f32 0.0, %v6007
        %v6009 = vpop.f32.mrf.mxu0
        %6010 = vdwg.mxu0
        %v6011 = vadd.f32 %v5729, %v5981
        %v6012 = vadd.f32 %v5730, %v5984
        %v6013 = vadd.f32 %v5731, %v5989
        %v6014 = vadd.f32 %v5732, %v5992
        %v6015 = vadd.f32 %v5733, %v5997
        %v6016 = vadd.f32 %v5734, %v6000
        %v6017 = vadd.f32 %v5735, %v6005
        %v6018 = vadd.f32 %v5736, %v6008
        %v6019 = vld [vmem:[%s482] sm:$0xe]
        %v6020 = vld [vmem:[%s482 + $0x8] sm:$0xe]
        %v6021 = vld [vmem:[%s482 + $0x10] sm:$0xe]
        %v6022 = vld [vmem:[%s482 + $0x18] sm:$0xe]
        %v6023 = vld [vmem:[%s482 + $0x20] sm:$0xe]
        %v6024 = vld [vmem:[%s482 + $0x28] sm:$0xe]
        %v6025 = vld [vmem:[%s482 + $0x30] sm:$0xe]
        %v6026 = vld [vmem:[%s482 + $0x38] sm:$0xe]
        %v6043 = vrot.slane %v6019, 5
        %v6044 = vrot.slane %v6043, 4
        %v6045 = vrot.slane %v5738, 5
        %v6046 = vsel %vm993, %v6044, %v6045
        %v6047 = vrot.slane %v6020, 5
        %v6048 = vrot.slane %v6047, 4
        %v6049 = vrot.slane %v5740, 5
        %v6050 = vsel %vm993, %v6048, %v6049
        %v6051 = vrot.slane %v6021, 5
        %v6052 = vrot.slane %v6051, 4
        %v6053 = vrot.slane %v5742, 5
        %v6054 = vsel %vm993, %v6052, %v6053
        %v6055 = vrot.slane %v6022, 5
        %v6056 = vrot.slane %v6055, 4
        %v6057 = vrot.slane %v5744, 5
        %v6058 = vsel %vm993, %v6056, %v6057
        %v6059 = vrot.slane %v6023, 5
        %v6060 = vrot.slane %v6059, 4
        %v6061 = vrot.slane %v5746, 5
        %v6062 = vsel %vm993, %v6060, %v6061
        %v6063 = vrot.slane %v6024, 5
        %v6064 = vrot.slane %v6063, 4
        %v6065 = vrot.slane %v5748, 5
        %v6066 = vsel %vm993, %v6064, %v6065
        %v6067 = vrot.slane %v6025, 5
        %v6068 = vrot.slane %v6067, 4
        %v6069 = vrot.slane %v5750, 5
        %v6070 = vsel %vm993, %v6068, %v6069
        %v6071 = vrot.slane %v6026, 5
        %v6072 = vrot.slane %v6071, 4
        %v6073 = vrot.slane %v5752, 5
        %v6074 = vsel %vm993, %v6072, %v6073
        %s6075 = scalar_lea.vmem [#allocation9], 320
        %v6076 = vld [vmem:[%s6075] sm:$0xf]
        %v6077 = vld [vmem:[%s6075 + $0x4] sm:$0xf]
        %v6078 = vld [vmem:[%s6075 + $0x8] sm:$0xf]
        %v6079 = vld [vmem:[%s6075 + $0xc] sm:$0xf]
        %v6080 = vld [vmem:[%s6075 + $0x10] sm:$0xf]
        %v6081 = vld [vmem:[%s6075 + $0x14] sm:$0xf]
        %v6082 = vld [vmem:[%s6075 + $0x18] sm:$0xf]
        %v6083 = vld [vmem:[%s6075 + $0x1c] sm:$0xf]
        %v6084 = vld [vmem:[%s6075 + $0x20] sm:$0xf]
        %v6085 = vld [vmem:[%s6075 + $0x24] sm:$0xf]
        %v6086 = vld [vmem:[%s6075 + $0x28] sm:$0xf]
        %v6087 = vld [vmem:[%s6075 + $0x2c] sm:$0xf]
        %v6088 = vld [vmem:[%s6075 + $0x30] sm:$0xf]
        %v6089 = vld [vmem:[%s6075 + $0x34] sm:$0xf]
        %v6090 = vld [vmem:[%s6075 + $0x38] sm:$0xf]
        %v6091 = vld [vmem:[%s6075 + $0x3c] sm:$0xf]
        %v6092 = vunpack.c.l.b16 %v6046
        %v6093 = vunpack.c.l.b16 %v6050
        %v6094 = vunpack.c.l.b16 %v6054
        %v6095 = vunpack.c.l.b16 %v6058
        %v6096 = vunpack.c.l.b16 %v6062
        %v6097 = vunpack.c.l.b16 %v6066
        %v6098 = vunpack.c.l.b16 %v6070
        %v6099 = vunpack.c.l.b16 %v6074
        %v6100 = vpack.c.b16 %v6093, %v6092
        %v6101 = vpack.c.b16 %v6095, %v6094
        %v6102 = vpack.c.b16 %v6097, %v6096
        %v6103 = vpack.c.b16 %v6099, %v6098
        %v6124 = vunpack.c.l.b16 %v6076
        %v6125 = vunpack.c.l.b16 %v6077
        %v6126 = vunpack.c.l.b16 %v6078
        %v6127 = vunpack.c.l.b16 %v6079
        %v6128 = vunpack.c.l.b16 %v6080
        %v6129 = vunpack.c.l.b16 %v6081
        %v6130 = vunpack.c.l.b16 %v6082
        %v6131 = vunpack.c.l.b16 %v6083
        %v6132 = vunpack.c.l.b16 %v6084
        %v6133 = vunpack.c.l.b16 %v6085
        %v6134 = vunpack.c.l.b16 %v6086
        %v6135 = vunpack.c.l.b16 %v6087
        %v6136 = vunpack.c.l.b16 %v6088
        %v6137 = vunpack.c.l.b16 %v6089
        %v6138 = vunpack.c.l.b16 %v6090
        %v6139 = vunpack.c.l.b16 %v6091
        %v6140 = vpack.c.b16 %v6125, %v6124
        %v6141 = vpack.c.b16 %v6127, %v6126
        %v6142 = vpack.c.b16 %v6129, %v6128
        %v6143 = vpack.c.b16 %v6131, %v6130
        %v6144 = vpack.c.b16 %v6133, %v6132
        %v6145 = vpack.c.b16 %v6135, %v6134
        %v6146 = vpack.c.b16 %v6137, %v6136
        %v6147 = vpack.c.b16 %v6139, %v6138
        %6156 = vmatprep.subr.bf16.mxu0 0
        %6157 = vmatpush1.bf16.msra.mxu0 %v6147
        %6158 = vmatprep.subr.bf16.mxu0 0
        %6159 = vmatpush1.bf16.msra.mxu0 %v6146
        %6160 = vmatprep.subr.bf16.mxu0 0
        %6161 = vmatpush1.bf16.msra.mxu0 %v6145
        %6162 = vmatprep.subr.bf16.mxu0 0
        %6163 = vmatpush1.bf16.msra.mxu0 %v6144
        %6164 = vmatprep.subr.bf16.mxu0 0
        %6165 = vmatpush1.bf16.msra.mxu0 %v6143
        %6166 = vmatprep.subr.bf16.mxu0 0
        %6167 = vmatpush1.bf16.msra.mxu0 %v6142
        %6168 = vmatprep.subr.bf16.mxu0 0
        %6169 = vmatpush1.bf16.msra.mxu0 %v6141
        %6170 = vmatprep.subr.bf16.mxu0 0
        %6171 = vmatpush1.bf16.msra.mxu0 %v6140
        %6172 = vmatprep.subr.bf16.mxu0 0
        %6173 = vmatpush2.bf16.msra.mxu0 0
        %6174 = vmatprep.subr.bf16.mxu0 0
        %6175 = vmatpush2.bf16.msra.mxu0 0
        %6176 = vmatprep.subr.bf16.mxu0 0
        %6177 = vmatpush2.bf16.msra.mxu0 0
        %6178 = vmatprep.subr.bf16.mxu0 0
        %6179 = vmatpush2.bf16.msra.mxu0 0
        %6180 = vmatprep.subr.bf16.mxu0 0
        %6181 = vmatpush2.bf16.msra.mxu0 0
        %6182 = vmatprep.subr.bf16.mxu0 0
        %6183 = vmatpush2.bf16.msra.mxu0 0
        %6184 = vmatprep.subr.bf16.mxu0 0
        %6185 = vmatpush2.bf16.msra.mxu0 0
        %6186 = vmatprep.subr.bf16.mxu0 0
        %6187 = vmatpush2.bf16.msra.mxu0 0
        %6188 = vmatprep.mubr.bf16.mxu0 0
        %6189 = vmatmul.mubr.bf16.gmra.mxu0 %v6100
        %v6190 = vpop.f32.mrf.mxu0
        %v6191 = vadd.f32 0.0, %v6190
        %v6192 = vpop.f32.mrf.mxu0
        %v6193 = vpop.f32.mrf.mxu0
        %v6194 = vadd.f32 0.0, %v6193
        %v6195 = vpop.f32.mrf.mxu0
        %6196 = vmatprep.mubr.bf16.mxu0 0
        %6197 = vmatmul.mubr.bf16.gmra.mxu0 %v6101
        %v6198 = vpop.f32.mrf.mxu0
        %v6199 = vadd.f32 0.0, %v6198
        %v6200 = vpop.f32.mrf.mxu0
        %v6201 = vpop.f32.mrf.mxu0
        %v6202 = vadd.f32 0.0, %v6201
        %v6203 = vpop.f32.mrf.mxu0
        %6204 = vmatprep.mubr.bf16.mxu0 0
        %6205 = vmatmul.mubr.bf16.gmra.mxu0 %v6102
        %v6206 = vpop.f32.mrf.mxu0
        %v6207 = vadd.f32 0.0, %v6206
        %v6208 = vpop.f32.mrf.mxu0
        %v6209 = vpop.f32.mrf.mxu0
        %v6210 = vadd.f32 0.0, %v6209
        %v6211 = vpop.f32.mrf.mxu0
        %6212 = vmatprep.mubr.bf16.mxu0 0
        %6213 = vmatmul.mubr.bf16.gmra.mxu0 %v6103
        %v6214 = vpop.f32.mrf.mxu0
        %v6215 = vadd.f32 0.0, %v6214
        %v6216 = vpop.f32.mrf.mxu0
        %v6217 = vpop.f32.mrf.mxu0
        %v6218 = vadd.f32 0.0, %v6217
        %v6219 = vpop.f32.mrf.mxu0
        %6220 = vdwg.mxu0
        %v6221 = vadd.f32 %v6011, %v6191
        %v6222 = vadd.f32 %v6012, %v6194
        %v6223 = vadd.f32 %v6013, %v6199
        %v6224 = vadd.f32 %v6014, %v6202
        %v6225 = vadd.f32 %v6015, %v6207
        %v6226 = vadd.f32 %v6016, %v6210
        %v6227 = vadd.f32 %v6017, %v6215
        %v6228 = vadd.f32 %v6018, %v6218
        %v6229 = vld [vmem:[%s1842] sm:$0xf]
        %v6230 = vld [vmem:[%s1842 + $0x8] sm:$0xf]
        %v6231 = vld [vmem:[%s1842 + $0x10] sm:$0xf]
        %v6232 = vld [vmem:[%s1842 + $0x18] sm:$0xf]
        %v6233 = vld [vmem:[%s1842 + $0x20] sm:$0xf]
        %v6234 = vld [vmem:[%s1842 + $0x28] sm:$0xf]
        %v6235 = vld [vmem:[%s1842 + $0x30] sm:$0xf]
        %v6236 = vld [vmem:[%s1842 + $0x38] sm:$0xf]
        %s6237 = scalar_lea.vmem [#allocation9], 384
        %v6238 = vld [vmem:[%s6237] sm:$0xf]
        %v6239 = vld [vmem:[%s6237 + $0x4] sm:$0xf]
        %v6240 = vld [vmem:[%s6237 + $0x8] sm:$0xf]
        %v6241 = vld [vmem:[%s6237 + $0xc] sm:$0xf]
        %v6242 = vld [vmem:[%s6237 + $0x10] sm:$0xf]
        %v6243 = vld [vmem:[%s6237 + $0x14] sm:$0xf]
        %v6244 = vld [vmem:[%s6237 + $0x18] sm:$0xf]
        %v6245 = vld [vmem:[%s6237 + $0x1c] sm:$0xf]
        %v6246 = vld [vmem:[%s6237 + $0x20] sm:$0xf]
        %v6247 = vld [vmem:[%s6237 + $0x24] sm:$0xf]
        %v6248 = vld [vmem:[%s6237 + $0x28] sm:$0xf]
        %v6249 = vld [vmem:[%s6237 + $0x2c] sm:$0xf]
        %v6250 = vld [vmem:[%s6237 + $0x30] sm:$0xf]
        %v6251 = vld [vmem:[%s6237 + $0x34] sm:$0xf]
        %v6252 = vld [vmem:[%s6237 + $0x38] sm:$0xf]
        %v6253 = vld [vmem:[%s6237 + $0x3c] sm:$0xf]
        %v6262 = vunpack.c.l.b16 %v6229
        %v6263 = vunpack.c.l.b16 %v6230
        %v6264 = vunpack.c.l.b16 %v6231
        %v6265 = vunpack.c.l.b16 %v6232
        %v6266 = vunpack.c.l.b16 %v6233
        %v6267 = vunpack.c.l.b16 %v6234
        %v6268 = vunpack.c.l.b16 %v6235
        %v6269 = vunpack.c.l.b16 %v6236
        %v6270 = vpack.c.b16 %v6263, %v6262
        %v6271 = vpack.c.b16 %v6265, %v6264
        %v6272 = vpack.c.b16 %v6267, %v6266
        %v6273 = vpack.c.b16 %v6269, %v6268
        %v6294 = vunpack.c.l.b16 %v6238
        %v6295 = vunpack.c.l.b16 %v6239
        %v6296 = vunpack.c.l.b16 %v6240
        %v6297 = vunpack.c.l.b16 %v6241
        %v6298 = vunpack.c.l.b16 %v6242
        %v6299 = vunpack.c.l.b16 %v6243
        %v6300 = vunpack.c.l.b16 %v6244
        %v6301 = vunpack.c.l.b16 %v6245
        %v6302 = vunpack.c.l.b16 %v6246
        %v6303 = vunpack.c.l.b16 %v6247
        %v6304 = vunpack.c.l.b16 %v6248
        %v6305 = vunpack.c.l.b16 %v6249
        %v6306 = vunpack.c.l.b16 %v6250
        %v6307 = vunpack.c.l.b16 %v6251
        %v6308 = vunpack.c.l.b16 %v6252
        %v6309 = vunpack.c.l.b16 %v6253
        %v6310 = vpack.c.b16 %v6295, %v6294
        %v6311 = vpack.c.b16 %v6297, %v6296
        %v6312 = vpack.c.b16 %v6299, %v6298
        %v6313 = vpack.c.b16 %v6301, %v6300
        %v6314 = vpack.c.b16 %v6303, %v6302
        %v6315 = vpack.c.b16 %v6305, %v6304
        %v6316 = vpack.c.b16 %v6307, %v6306
        %v6317 = vpack.c.b16 %v6309, %v6308
        %6326 = vmatprep.subr.bf16.mxu0 0
        %6327 = vmatpush1.bf16.msra.mxu0 %v6317
        %6328 = vmatprep.subr.bf16.mxu0 0
        %6329 = vmatpush1.bf16.msra.mxu0 %v6316
        %6330 = vmatprep.subr.bf16.mxu0 0
        %6331 = vmatpush1.bf16.msra.mxu0 %v6315
        %6332 = vmatprep.subr.bf16.mxu0 0
        %6333 = vmatpush1.bf16.msra.mxu0 %v6314
        %6334 = vmatprep.subr.bf16.mxu0 0
        %6335 = vmatpush1.bf16.msra.mxu0 %v6313
        %6336 = vmatprep.subr.bf16.mxu0 0
        %6337 = vmatpush1.bf16.msra.mxu0 %v6312
        %6338 = vmatprep.subr.bf16.mxu0 0
        %6339 = vmatpush1.bf16.msra.mxu0 %v6311
        %6340 = vmatprep.subr.bf16.mxu0 0
        %6341 = vmatpush1.bf16.msra.mxu0 %v6310
        %6342 = vmatprep.subr.bf16.mxu0 0
        %6343 = vmatpush2.bf16.msra.mxu0 0
        %6344 = vmatprep.subr.bf16.mxu0 0
        %6345 = vmatpush2.bf16.msra.mxu0 0
        %6346 = vmatprep.subr.bf16.mxu0 0
        %6347 = vmatpush2.bf16.msra.mxu0 0
        %6348 = vmatprep.subr.bf16.mxu0 0
        %6349 = vmatpush2.bf16.msra.mxu0 0
        %6350 = vmatprep.subr.bf16.mxu0 0
        %6351 = vmatpush2.bf16.msra.mxu0 0
        %6352 = vmatprep.subr.bf16.mxu0 0
        %6353 = vmatpush2.bf16.msra.mxu0 0
        %6354 = vmatprep.subr.bf16.mxu0 0
        %6355 = vmatpush2.bf16.msra.mxu0 0
        %6356 = vmatprep.subr.bf16.mxu0 0
        %6357 = vmatpush2.bf16.msra.mxu0 0
        %6358 = vmatprep.mubr.bf16.mxu0 0
        %6359 = vmatmul.mubr.bf16.gmra.mxu0 %v6270
        %v6360 = vpop.f32.mrf.mxu0
        %v6361 = vadd.f32 0.0, %v6360
        %v6362 = vpop.f32.mrf.mxu0
        %v6363 = vpop.f32.mrf.mxu0
        %v6364 = vadd.f32 0.0, %v6363
        %v6365 = vpop.f32.mrf.mxu0
        %6366 = vmatprep.mubr.bf16.mxu0 0
        %6367 = vmatmul.mubr.bf16.gmra.mxu0 %v6271
        %v6368 = vpop.f32.mrf.mxu0
        %v6369 = vadd.f32 0.0, %v6368
        %v6370 = vpop.f32.mrf.mxu0
        %v6371 = vpop.f32.mrf.mxu0
        %v6372 = vadd.f32 0.0, %v6371
        %v6373 = vpop.f32.mrf.mxu0
        %6374 = vmatprep.mubr.bf16.mxu0 0
        %6375 = vmatmul.mubr.bf16.gmra.mxu0 %v6272
        %v6376 = vpop.f32.mrf.mxu0
        %v6377 = vadd.f32 0.0, %v6376
        %v6378 = vpop.f32.mrf.mxu0
        %v6379 = vpop.f32.mrf.mxu0
        %v6380 = vadd.f32 0.0, %v6379
        %v6381 = vpop.f32.mrf.mxu0
        %6382 = vmatprep.mubr.bf16.mxu0 0
        %6383 = vmatmul.mubr.bf16.gmra.mxu0 %v6273
        %v6384 = vpop.f32.mrf.mxu0
        %v6385 = vadd.f32 0.0, %v6384
        %v6386 = vpop.f32.mrf.mxu0
        %v6387 = vpop.f32.mrf.mxu0
        %v6388 = vadd.f32 0.0, %v6387
        %v6389 = vpop.f32.mrf.mxu0
        %6390 = vdwg.mxu0
        %v6391 = vadd.f32 %v6221, %v6361
        %v6392 = vadd.f32 %v6222, %v6364
        %v6393 = vadd.f32 %v6223, %v6369
        %v6394 = vadd.f32 %v6224, %v6372
        %v6395 = vadd.f32 %v6225, %v6377
        %v6396 = vadd.f32 %v6226, %v6380
        %v6397 = vadd.f32 %v6227, %v6385
        %v6398 = vadd.f32 %v6228, %v6388
        %v6399 = vld [vmem:[%s1842] sm:$0xf]
        %v6400 = vld [vmem:[%s1842 + $0x4] sm:$0x1]
        %v6401 = vld [vmem:[%s1842 + $0x8] sm:$0xf]
        %v6402 = vld [vmem:[%s1842 + $0xc] sm:$0x1]
        %v6403 = vld [vmem:[%s1842 + $0x10] sm:$0xf]
        %v6404 = vld [vmem:[%s1842 + $0x14] sm:$0x1]
        %v6405 = vld [vmem:[%s1842 + $0x18] sm:$0xf]
        %v6406 = vld [vmem:[%s1842 + $0x1c] sm:$0x1]
        %v6407 = vld [vmem:[%s1842 + $0x20] sm:$0xf]
        %v6408 = vld [vmem:[%s1842 + $0x24] sm:$0x1]
        %v6409 = vld [vmem:[%s1842 + $0x28] sm:$0xf]
        %v6410 = vld [vmem:[%s1842 + $0x2c] sm:$0x1]
        %v6411 = vld [vmem:[%s1842 + $0x30] sm:$0xf]
        %v6412 = vld [vmem:[%s1842 + $0x34] sm:$0x1]
        %v6413 = vld [vmem:[%s1842 + $0x38] sm:$0xf]
        %v6414 = vld [vmem:[%s1842 + $0x3c] sm:$0x1]
        %v6416 = vshrl.u32 %v6399, 16
        %v6418 = vrot.slane %v6416, 4
        %v6419 = vshll.u32 %v6399, 16
        %v6421 = vrot.slane %v6419, 5
        %v6422 = vor.u32 %v6418, %v6421
        %v6423 = vrot.slane %v6422, 4
        %v6425 = vshll.u32 %v6400, 16
        %v6427 = vrot.slane %v6425, 5
        %v6428 = vsel %vm571, %v6423, %v6427
        %v6430 = vshrl.u32 %v6401, 16
        %v6432 = vrot.slane %v6430, 4
        %v6433 = vshll.u32 %v6401, 16
        %v6435 = vrot.slane %v6433, 5
        %v6436 = vor.u32 %v6432, %v6435
        %v6437 = vrot.slane %v6436, 4
        %v6439 = vshll.u32 %v6402, 16
        %v6441 = vrot.slane %v6439, 5
        %v6442 = vsel %vm571, %v6437, %v6441
        %v6444 = vshrl.u32 %v6403, 16
        %v6446 = vrot.slane %v6444, 4
        %v6447 = vshll.u32 %v6403, 16
        %v6449 = vrot.slane %v6447, 5
        %v6450 = vor.u32 %v6446, %v6449
        %v6451 = vrot.slane %v6450, 4
        %v6453 = vshll.u32 %v6404, 16
        %v6455 = vrot.slane %v6453, 5
        %v6456 = vsel %vm571, %v6451, %v6455
        %v6458 = vshrl.u32 %v6405, 16
        %v6460 = vrot.slane %v6458, 4
        %v6461 = vshll.u32 %v6405, 16
        %v6463 = vrot.slane %v6461, 5
        %v6464 = vor.u32 %v6460, %v6463
        %v6465 = vrot.slane %v6464, 4
        %v6467 = vshll.u32 %v6406, 16
        %v6469 = vrot.slane %v6467, 5
        %v6470 = vsel %vm571, %v6465, %v6469
        %v6472 = vshrl.u32 %v6407, 16
        %v6474 = vrot.slane %v6472, 4
        %v6475 = vshll.u32 %v6407, 16
        %v6477 = vrot.slane %v6475, 5
        %v6478 = vor.u32 %v6474, %v6477
        %v6479 = vrot.slane %v6478, 4
        %v6481 = vshll.u32 %v6408, 16
        %v6483 = vrot.slane %v6481, 5
        %v6484 = vsel %vm571, %v6479, %v6483
        %v6486 = vshrl.u32 %v6409, 16
        %v6488 = vrot.slane %v6486, 4
        %v6489 = vshll.u32 %v6409, 16
        %v6491 = vrot.slane %v6489, 5
        %v6492 = vor.u32 %v6488, %v6491
        %v6493 = vrot.slane %v6492, 4
        %v6495 = vshll.u32 %v6410, 16
        %v6497 = vrot.slane %v6495, 5
        %v6498 = vsel %vm571, %v6493, %v6497
        %v6500 = vshrl.u32 %v6411, 16
        %v6502 = vrot.slane %v6500, 4
        %v6503 = vshll.u32 %v6411, 16
        %v6505 = vrot.slane %v6503, 5
        %v6506 = vor.u32 %v6502, %v6505
        %v6507 = vrot.slane %v6506, 4
        %v6509 = vshll.u32 %v6412, 16
        %v6511 = vrot.slane %v6509, 5
        %v6512 = vsel %vm571, %v6507, %v6511
        %v6514 = vshrl.u32 %v6413, 16
        %v6516 = vrot.slane %v6514, 4
        %v6517 = vshll.u32 %v6413, 16
        %v6519 = vrot.slane %v6517, 5
        %v6520 = vor.u32 %v6516, %v6519
        %v6521 = vrot.slane %v6520, 4
        %v6523 = vshll.u32 %v6414, 16
        %v6525 = vrot.slane %v6523, 5
        %v6526 = vsel %vm571, %v6521, %v6525
        %s6527 = scalar_lea.vmem [#allocation9], 448
        %v6528 = vld [vmem:[%s6527] sm:$0xf]
        %v6529 = vld [vmem:[%s6527 + $0x4] sm:$0xf]
        %v6530 = vld [vmem:[%s6527 + $0x8] sm:$0xf]
        %v6531 = vld [vmem:[%s6527 + $0xc] sm:$0xf]
        %v6532 = vld [vmem:[%s6527 + $0x10] sm:$0xf]
        %v6533 = vld [vmem:[%s6527 + $0x14] sm:$0xf]
        %v6534 = vld [vmem:[%s6527 + $0x18] sm:$0xf]
        %v6535 = vld [vmem:[%s6527 + $0x1c] sm:$0xf]
        %v6536 = vld [vmem:[%s6527 + $0x20] sm:$0xf]
        %v6537 = vld [vmem:[%s6527 + $0x24] sm:$0xf]
        %v6538 = vld [vmem:[%s6527 + $0x28] sm:$0xf]
        %v6539 = vld [vmem:[%s6527 + $0x2c] sm:$0xf]
        %v6540 = vld [vmem:[%s6527 + $0x30] sm:$0xf]
        %v6541 = vld [vmem:[%s6527 + $0x34] sm:$0xf]
        %v6542 = vld [vmem:[%s6527 + $0x38] sm:$0xf]
        %v6543 = vld [vmem:[%s6527 + $0x3c] sm:$0xf]
        %v6544 = vunpack.c.l.b16 %v6428
        %v6545 = vunpack.c.l.b16 %v6442
        %v6546 = vunpack.c.l.b16 %v6456
        %v6547 = vunpack.c.l.b16 %v6470
        %v6548 = vunpack.c.l.b16 %v6484
        %v6549 = vunpack.c.l.b16 %v6498
        %v6550 = vunpack.c.l.b16 %v6512
        %v6551 = vunpack.c.l.b16 %v6526
        %v6552 = vpack.c.b16 %v6545, %v6544
        %v6553 = vpack.c.b16 %v6547, %v6546
        %v6554 = vpack.c.b16 %v6549, %v6548
        %v6555 = vpack.c.b16 %v6551, %v6550
        %v6576 = vunpack.c.l.b16 %v6528
        %v6577 = vunpack.c.l.b16 %v6529
        %v6578 = vunpack.c.l.b16 %v6530
        %v6579 = vunpack.c.l.b16 %v6531
        %v6580 = vunpack.c.l.b16 %v6532
        %v6581 = vunpack.c.l.b16 %v6533
        %v6582 = vunpack.c.l.b16 %v6534
        %v6583 = vunpack.c.l.b16 %v6535
        %v6584 = vunpack.c.l.b16 %v6536
        %v6585 = vunpack.c.l.b16 %v6537
        %v6586 = vunpack.c.l.b16 %v6538
        %v6587 = vunpack.c.l.b16 %v6539
        %v6588 = vunpack.c.l.b16 %v6540
        %v6589 = vunpack.c.l.b16 %v6541
        %v6590 = vunpack.c.l.b16 %v6542
        %v6591 = vunpack.c.l.b16 %v6543
        %v6592 = vpack.c.b16 %v6577, %v6576
        %v6593 = vpack.c.b16 %v6579, %v6578
        %v6594 = vpack.c.b16 %v6581, %v6580
        %v6595 = vpack.c.b16 %v6583, %v6582
        %v6596 = vpack.c.b16 %v6585, %v6584
        %v6597 = vpack.c.b16 %v6587, %v6586
        %v6598 = vpack.c.b16 %v6589, %v6588
        %v6599 = vpack.c.b16 %v6591, %v6590
        %6608 = vmatprep.subr.bf16.mxu0 0
        %6609 = vmatpush1.bf16.msra.mxu0 %v6599
        %6610 = vmatprep.subr.bf16.mxu0 0
        %6611 = vmatpush1.bf16.msra.mxu0 %v6598
        %6612 = vmatprep.subr.bf16.mxu0 0
        %6613 = vmatpush1.bf16.msra.mxu0 %v6597
        %6614 = vmatprep.subr.bf16.mxu0 0
        %6615 = vmatpush1.bf16.msra.mxu0 %v6596
        %6616 = vmatprep.subr.bf16.mxu0 0
        %6617 = vmatpush1.bf16.msra.mxu0 %v6595
        %6618 = vmatprep.subr.bf16.mxu0 0
        %6619 = vmatpush1.bf16.msra.mxu0 %v6594
        %6620 = vmatprep.subr.bf16.mxu0 0
        %6621 = vmatpush1.bf16.msra.mxu0 %v6593
        %6622 = vmatprep.subr.bf16.mxu0 0
        %6623 = vmatpush1.bf16.msra.mxu0 %v6592
        %6624 = vmatprep.subr.bf16.mxu0 0
        %6625 = vmatpush2.bf16.msra.mxu0 0
        %6626 = vmatprep.subr.bf16.mxu0 0
        %6627 = vmatpush2.bf16.msra.mxu0 0
        %6628 = vmatprep.subr.bf16.mxu0 0
        %6629 = vmatpush2.bf16.msra.mxu0 0
        %6630 = vmatprep.subr.bf16.mxu0 0
        %6631 = vmatpush2.bf16.msra.mxu0 0
        %6632 = vmatprep.subr.bf16.mxu0 0
        %6633 = vmatpush2.bf16.msra.mxu0 0
        %6634 = vmatprep.subr.bf16.mxu0 0
        %6635 = vmatpush2.bf16.msra.mxu0 0
        %6636 = vmatprep.subr.bf16.mxu0 0
        %6637 = vmatpush2.bf16.msra.mxu0 0
        %6638 = vmatprep.subr.bf16.mxu0 0
        %6639 = vmatpush2.bf16.msra.mxu0 0
        %6640 = vmatprep.mubr.bf16.mxu0 0
        %6641 = vmatmul.mubr.bf16.gmra.mxu0 %v6552
        %v6642 = vpop.f32.mrf.mxu0
        %v6643 = vadd.f32 0.0, %v6642
        %v6644 = vpop.f32.mrf.mxu0
        %v6645 = vpop.f32.mrf.mxu0
        %v6646 = vadd.f32 0.0, %v6645
        %v6647 = vpop.f32.mrf.mxu0
        %6648 = vmatprep.mubr.bf16.mxu0 0
        %6649 = vmatmul.mubr.bf16.gmra.mxu0 %v6553
        %v6650 = vpop.f32.mrf.mxu0
        %v6651 = vadd.f32 0.0, %v6650
        %v6652 = vpop.f32.mrf.mxu0
        %v6653 = vpop.f32.mrf.mxu0
        %v6654 = vadd.f32 0.0, %v6653
        %v6655 = vpop.f32.mrf.mxu0
        %6656 = vmatprep.mubr.bf16.mxu0 0
        %6657 = vmatmul.mubr.bf16.gmra.mxu0 %v6554
        %v6658 = vpop.f32.mrf.mxu0
        %v6659 = vadd.f32 0.0, %v6658
        %v6660 = vpop.f32.mrf.mxu0
        %v6661 = vpop.f32.mrf.mxu0
        %v6662 = vadd.f32 0.0, %v6661
        %v6663 = vpop.f32.mrf.mxu0
        %6664 = vmatprep.mubr.bf16.mxu0 0
        %6665 = vmatmul.mubr.bf16.gmra.mxu0 %v6555
        %v6666 = vpop.f32.mrf.mxu0
        %v6667 = vadd.f32 0.0, %v6666
        %v6668 = vpop.f32.mrf.mxu0
        %v6669 = vpop.f32.mrf.mxu0
        %v6670 = vadd.f32 0.0, %v6669
        %v6671 = vpop.f32.mrf.mxu0
        %6672 = vdwg.mxu0
        %v6673 = vadd.f32 %v6391, %v6643
        %v6674 = vadd.f32 %v6392, %v6646
        %v6675 = vadd.f32 %v6393, %v6651
        %v6676 = vadd.f32 %v6394, %v6654
        %v6677 = vadd.f32 %v6395, %v6659
        %v6678 = vadd.f32 %v6396, %v6662
        %v6679 = vadd.f32 %v6397, %v6667
        %v6680 = vadd.f32 %v6398, %v6670
        %v6681 = vld [vmem:[%s1842] sm:$0xe]
        %v6682 = vld [vmem:[%s1842 + $0x8] sm:$0xe]
        %v6683 = vld [vmem:[%s1842 + $0x10] sm:$0xe]
        %v6684 = vld [vmem:[%s1842 + $0x18] sm:$0xe]
        %v6685 = vld [vmem:[%s1842 + $0x20] sm:$0xe]
        %v6686 = vld [vmem:[%s1842 + $0x28] sm:$0xe]
        %v6687 = vld [vmem:[%s1842 + $0x30] sm:$0xe]
        %v6688 = vld [vmem:[%s1842 + $0x38] sm:$0xe]
        %v6705 = vrot.slane %v6681, 5
        %v6706 = vrot.slane %v6705, 4
        %v6707 = vrot.slane %v6400, 5
        %v6708 = vsel %vm993, %v6706, %v6707
        %v6709 = vrot.slane %v6682, 5
        %v6710 = vrot.slane %v6709, 4
        %v6711 = vrot.slane %v6402, 5
        %v6712 = vsel %vm993, %v6710, %v6711
        %v6713 = vrot.slane %v6683, 5
        %v6714 = vrot.slane %v6713, 4
        %v6715 = vrot.slane %v6404, 5
        %v6716 = vsel %vm993, %v6714, %v6715
        %v6717 = vrot.slane %v6684, 5
        %v6718 = vrot.slane %v6717, 4
        %v6719 = vrot.slane %v6406, 5
        %v6720 = vsel %vm993, %v6718, %v6719
        %v6721 = vrot.slane %v6685, 5
        %v6722 = vrot.slane %v6721, 4
        %v6723 = vrot.slane %v6408, 5
        %v6724 = vsel %vm993, %v6722, %v6723
        %v6725 = vrot.slane %v6686, 5
        %v6726 = vrot.slane %v6725, 4
        %v6727 = vrot.slane %v6410, 5
        %v6728 = vsel %vm993, %v6726, %v6727
        %v6729 = vrot.slane %v6687, 5
        %v6730 = vrot.slane %v6729, 4
        %v6731 = vrot.slane %v6412, 5
        %v6732 = vsel %vm993, %v6730, %v6731
        %v6733 = vrot.slane %v6688, 5
        %v6734 = vrot.slane %v6733, 4
        %v6735 = vrot.slane %v6414, 5
        %v6736 = vsel %vm993, %v6734, %v6735
        %s6737 = scalar_lea.vmem [#allocation9], 512
        %v6738 = vld [vmem:[%s6737] sm:$0xf]
        %v6739 = vld [vmem:[%s6737 + $0x4] sm:$0xf]
        %v6740 = vld [vmem:[%s6737 + $0x8] sm:$0xf]
        %v6741 = vld [vmem:[%s6737 + $0xc] sm:$0xf]
        %v6742 = vld [vmem:[%s6737 + $0x10] sm:$0xf]
        %v6743 = vld [vmem:[%s6737 + $0x14] sm:$0xf]
        %v6744 = vld [vmem:[%s6737 + $0x18] sm:$0xf]
        %v6745 = vld [vmem:[%s6737 + $0x1c] sm:$0xf]
        %v6746 = vld [vmem:[%s6737 + $0x20] sm:$0xf]
        %v6747 = vld [vmem:[%s6737 + $0x24] sm:$0xf]
        %v6748 = vld [vmem:[%s6737 + $0x28] sm:$0xf]
        %v6749 = vld [vmem:[%s6737 + $0x2c] sm:$0xf]
        %v6750 = vld [vmem:[%s6737 + $0x30] sm:$0xf]
        %v6751 = vld [vmem:[%s6737 + $0x34] sm:$0xf]
        %v6752 = vld [vmem:[%s6737 + $0x38] sm:$0xf]
        %v6753 = vld [vmem:[%s6737 + $0x3c] sm:$0xf]
        %v6754 = vunpack.c.l.b16 %v6708
        %v6755 = vunpack.c.l.b16 %v6712
        %v6756 = vunpack.c.l.b16 %v6716
        %v6757 = vunpack.c.l.b16 %v6720
        %v6758 = vunpack.c.l.b16 %v6724
        %v6759 = vunpack.c.l.b16 %v6728
        %v6760 = vunpack.c.l.b16 %v6732
        %v6761 = vunpack.c.l.b16 %v6736
        %v6762 = vpack.c.b16 %v6755, %v6754
        %v6763 = vpack.c.b16 %v6757, %v6756
        %v6764 = vpack.c.b16 %v6759, %v6758
        %v6765 = vpack.c.b16 %v6761, %v6760
        %v6786 = vunpack.c.l.b16 %v6738
        %v6787 = vunpack.c.l.b16 %v6739
        %v6788 = vunpack.c.l.b16 %v6740
        %v6789 = vunpack.c.l.b16 %v6741
        %v6790 = vunpack.c.l.b16 %v6742
        %v6791 = vunpack.c.l.b16 %v6743
        %v6792 = vunpack.c.l.b16 %v6744
        %v6793 = vunpack.c.l.b16 %v6745
        %v6794 = vunpack.c.l.b16 %v6746
        %v6795 = vunpack.c.l.b16 %v6747
        %v6796 = vunpack.c.l.b16 %v6748
        %v6797 = vunpack.c.l.b16 %v6749
        %v6798 = vunpack.c.l.b16 %v6750
        %v6799 = vunpack.c.l.b16 %v6751
        %v6800 = vunpack.c.l.b16 %v6752
        %v6801 = vunpack.c.l.b16 %v6753
        %v6802 = vpack.c.b16 %v6787, %v6786
        %v6803 = vpack.c.b16 %v6789, %v6788
        %v6804 = vpack.c.b16 %v6791, %v6790
        %v6805 = vpack.c.b16 %v6793, %v6792
        %v6806 = vpack.c.b16 %v6795, %v6794
        %v6807 = vpack.c.b16 %v6797, %v6796
        %v6808 = vpack.c.b16 %v6799, %v6798
        %v6809 = vpack.c.b16 %v6801, %v6800
        %6818 = vmatprep.subr.bf16.mxu0 0
        %6819 = vmatpush1.bf16.msra.mxu0 %v6809
        %6820 = vmatprep.subr.bf16.mxu0 0
        %6821 = vmatpush1.bf16.msra.mxu0 %v6808
        %6822 = vmatprep.subr.bf16.mxu0 0
        %6823 = vmatpush1.bf16.msra.mxu0 %v6807
        %6824 = vmatprep.subr.bf16.mxu0 0
        %6825 = vmatpush1.bf16.msra.mxu0 %v6806
        %6826 = vmatprep.subr.bf16.mxu0 0
        %6827 = vmatpush1.bf16.msra.mxu0 %v6805
        %6828 = vmatprep.subr.bf16.mxu0 0
        %6829 = vmatpush1.bf16.msra.mxu0 %v6804
        %6830 = vmatprep.subr.bf16.mxu0 0
        %6831 = vmatpush1.bf16.msra.mxu0 %v6803
        %6832 = vmatprep.subr.bf16.mxu0 0
        %6833 = vmatpush1.bf16.msra.mxu0 %v6802
        %6834 = vmatprep.subr.bf16.mxu0 0
        %6835 = vmatpush2.bf16.msra.mxu0 0
        %6836 = vmatprep.subr.bf16.mxu0 0
        %6837 = vmatpush2.bf16.msra.mxu0 0
        %6838 = vmatprep.subr.bf16.mxu0 0
        %6839 = vmatpush2.bf16.msra.mxu0 0
        %6840 = vmatprep.subr.bf16.mxu0 0
        %6841 = vmatpush2.bf16.msra.mxu0 0
        %6842 = vmatprep.subr.bf16.mxu0 0
        %6843 = vmatpush2.bf16.msra.mxu0 0
        %6844 = vmatprep.subr.bf16.mxu0 0
        %6845 = vmatpush2.bf16.msra.mxu0 0
        %6846 = vmatprep.subr.bf16.mxu0 0
        %6847 = vmatpush2.bf16.msra.mxu0 0
        %6848 = vmatprep.subr.bf16.mxu0 0
        %6849 = vmatpush2.bf16.msra.mxu0 0
        %6850 = vmatprep.mubr.bf16.mxu0 0
        %6851 = vmatmul.mubr.bf16.gmra.mxu0 %v6762
        %v6852 = vpop.f32.mrf.mxu0
        %v6853 = vadd.f32 0.0, %v6852
        %v6854 = vpop.f32.mrf.mxu0
        %v6855 = vpop.f32.mrf.mxu0
        %v6856 = vadd.f32 0.0, %v6855
        %v6857 = vpop.f32.mrf.mxu0
        %6858 = vmatprep.mubr.bf16.mxu0 0
        %6859 = vmatmul.mubr.bf16.gmra.mxu0 %v6763
        %v6860 = vpop.f32.mrf.mxu0
        %v6861 = vadd.f32 0.0, %v6860
        %v6862 = vpop.f32.mrf.mxu0
        %v6863 = vpop.f32.mrf.mxu0
        %v6864 = vadd.f32 0.0, %v6863
        %v6865 = vpop.f32.mrf.mxu0
        %6866 = vmatprep.mubr.bf16.mxu0 0
        %6867 = vmatmul.mubr.bf16.gmra.mxu0 %v6764
        %v6868 = vpop.f32.mrf.mxu0
        %v6869 = vadd.f32 0.0, %v6868
        %v6870 = vpop.f32.mrf.mxu0
        %v6871 = vpop.f32.mrf.mxu0
        %v6872 = vadd.f32 0.0, %v6871
        %v6873 = vpop.f32.mrf.mxu0
        %6874 = vmatprep.mubr.bf16.mxu0 0
        %6875 = vmatmul.mubr.bf16.gmra.mxu0 %v6765
        %v6876 = vpop.f32.mrf.mxu0
        %v6877 = vadd.f32 0.0, %v6876
        %v6878 = vpop.f32.mrf.mxu0
        %v6879 = vpop.f32.mrf.mxu0
        %v6880 = vadd.f32 0.0, %v6879
        %v6881 = vpop.f32.mrf.mxu0
        %6882 = vdwg.mxu0
        %v6883 = vadd.f32 %v6673, %v6853
        %v6884 = vadd.f32 %v6674, %v6856
        %v6885 = vadd.f32 %v6675, %v6861
        %v6886 = vadd.f32 %v6676, %v6864
        %v6887 = vadd.f32 %v6677, %v6869
        %v6888 = vadd.f32 %v6678, %v6872
        %v6889 = vadd.f32 %v6679, %v6877
        %v6890 = vadd.f32 %v6680, %v6880
        %v6891 = vld [vmem:[%s6] sm:$0x1]
        %v6893 = vlaneseq
        %v6894 = vshrl.u32 %v6893, 7
        %v6895 = vsub.s32 0, %v6894
        %v6896 = vrot.slane %v6891, %v6895
        %v6898 = vadd.f32 %v6883, %v6896
        %v6899 = vadd.f32 %v6884, %v6896
        %v6900 = vadd.f32 %v6885, %v6896
        %v6901 = vadd.f32 %v6886, %v6896
        %v6902 = vadd.f32 %v6887, %v6896
        %v6903 = vadd.f32 %v6888, %v6896
        %v6904 = vadd.f32 %v6889, %v6896
        %v6905 = vadd.f32 %v6890, %v6896
        %6906 = vst [vmem:[%s340] sm:$0xff] %v6898
        %6907 = vst [vmem:[%s340 + $0x8] sm:$0xff] %v6899
        %6908 = vst [vmem:[%s340 + $0x10] sm:$0xff] %v6900
        %6909 = vst [vmem:[%s340 + $0x18] sm:$0xff] %v6901
        %6910 = vst [vmem:[%s340 + $0x20] sm:$0xff] %v6902
        %6911 = vst [vmem:[%s340 + $0x28] sm:$0xff] %v6903
        %6912 = vst [vmem:[%s340 + $0x30] sm:$0xff] %v6904
        %6913 = vst [vmem:[%s340 + $0x38] sm:$0xff] %v6905
        %s6914 = sand.u32 %s186, 1
        %s6915 = scalar_lea.sflag [#allocation5], %s6914
        %s6916 = sand.u32 %s186, 1
        %s6917 = smul.addr %s6916, 64
        %s6918 = scalar_lea.vmem [#allocation11], %s6917
        // Predicated region
        $region65: #{tpu_custom_call.1} parent=47 // pred_check
          %p6919 = pneg %p196
        $region66: #{tpu_custom_call.1} parent=47 // pred_check_branch
          %6921 = sbr.rel (%p6919) target = $region68
        $region67: #{tpu_custom_call.1} parent=47 // pred_region
          %s6923 = ssub.s32 1024, 1024
          %6924 = vsyncadd %s6915, %s6923
          %s6925 = smul.addr %s26, 8
          %s6926 = smul.addr %s6925, 128
          %s6927 = scalar_lea.hbm %s7, %s6926
          %s6928 = sshll.u32 %s6918, 4
          %s6929 = int_to_ptr.vmem [resolvable:$true] %s6928
          %6934 = dma.vmem_to_hbm [thread:$0]  %s6929, 1024, %s6927, %s6915, 128, 128, 8
        $region68: #{tpu_custom_call.1} parent=47 // pred_fallthru
          _
      $region48: #{tpu_custom_call.1} parent=5 // pred_fallthru
        _
      %p6935 = scmp.le.s32.totalorder 2, %s21
      // Predicated region
      $region69: #{tpu_custom_call.1} parent=5 // pred_check
        %p6936 = pneg %p6935
      $region70: #{tpu_custom_call.1} parent=5 // pred_check_branch
        %6938 = sbr.rel (%p6936) target = $region72
      $region71: #{tpu_custom_call.1} parent=5 // pred_region
        %s6939 = ssub.s32 %s21, 2
        // Predicated region
        $region73: #{tpu_custom_call.1} parent=71 // pred_check
          %p6940 = pneg %p202
        $region74: #{tpu_custom_call.1} parent=71 // pred_check_branch
          %6942 = sbr.rel (%p6940) target = $region76
        $region75: #{tpu_custom_call.1} parent=71 // pred_region
          %s6943 = sand.u32 %s187, 1
          %s6944 = scalar_lea.sflag [#allocation5], %s6943
          %s6945 = sand.u32 %s187, 1
          %s6946 = smul.addr %s6945, 64
          %s6947 = scalar_lea.vmem [#allocation11], %s6946
          %6948 = dma.done %s6944, 1024
        $region76: #{tpu_custom_call.1} parent=71 // pred_fallthru
          _
      $region72: #{tpu_custom_call.1} parent=5 // pred_fallthru
        _
    $region6: #{tpu_custom_call.1} parent=1 // loop_footer
      %s25 = sadd.s32 1, %s21
    $region7: #{tpu_custom_call.1} parent=1 // loop_footer_branch
      %20 = sbr.rel target = $region3
    $region8: #{tpu_custom_call.1} parent=1 // loop_exit
      _
    %6949 = vsyncpa [#allocation4], 1
    %s6950 = scalar_lea.sflag [#allocation4], 1
    %6951 = vsyncpa %s6950, 1
    %6952 = vsyncpa [#allocation7], 1
    %6953 = vsyncpa [#allocation10], 1
    %6954 = vsyncpa [#allocation5], 1
    %s6955 = scalar_lea.sflag [#allocation5], 1
    %6956 = vsyncpa %s6955, 1

</llo_original>
